<compile_context>
chip_gen: v5e
topology: v5e:2x2
jax: 0.10.0
libtpu: 0.0.40
codegen_flags: <defaults>
</compile_context>

<pallas_src>
import functools

import jax
import jax.numpy as jnp
from jax.experimental import pallas as pl
from jax.experimental.pallas import tpu as pltpu

_VMEM_LIMIT_BYTES = 48 * 1024 * 1024   # well below v7x's 64 MiB physical VMEM


def _round_up(x, m):
    return ((x + m - 1) // m) * m


# ----------------------------- Pallas kernels -----------------------------

def _tconv_stats_kernel(x_ref, w_ref, b_ref, o_ref, stats_ref, *,
                        K, stride, V, T_out):
    """(K,1) temporal conv + bias for one (batch, T-tile) grid step, with fused
    BatchNorm partial statistics.

    x_ref     : (1, Tp, V, Cp)   zero-padded channel-last input (bf16), whole batch elem
    w_ref     : (K, Cp, Op)      conv weight, tap-major (bf16)
    b_ref     : (1, Op)          conv bias (f32)
    o_ref     : (1, Tt*V, Op)    conv output tile (bf16)
    stats_ref : (1, 1, 8, Op)    row 0 = sum, row 1 = sum-of-squares (f32)
    """
    _, TV, Op = o_ref.shape
    Cp = x_ref.shape[-1]
    Tt = TV // V
    t0 = pl.program_id(1) * Tt                      # first output frame of this tile

    def tap_dot(k):
        # padded-input frames used by output frames [t0, t0+Tt) for tap k
        if stride == 1:
            tap = x_ref[0, pl.ds(t0 + k, Tt), :, :]                 # (Tt, V, Cp)
        else:
            # TODO(synk): verify Mosaic lowers this strided (non-lane-axis) slice
            #             without materializing a gather copy for stride > 1.
            tap = x_ref[0, pl.ds(t0 * stride + k, Tt, stride), :, :]
        return jnp.dot(tap.reshape(TV, Cp), w_ref[k],
                       preferred_element_type=jnp.float32)

    acc = tap_dot(0)
    for k in range(1, K):                            # static unroll, K is small
        acc = acc + tap_dot(k)

    y = acc + b_ref[...]                             # fused conv bias (f32)
    o_ref[0] = y.astype(o_ref.dtype)

    # Fused BatchNorm partial statistics over the VALID rows of this tile only
    # (the last T-tile may be partial; masked rows contribute nothing).
    valid_rows = jnp.minimum(TV, (T_out - t0) * V)
    ridx = jax.lax.broadcasted_iota(jnp.int32, (TV, 1), 0)
    m = (ridx < valid_rows).astype(jnp.float32)      # (TV, 1)
    ym = y * m
    s = jnp.sum(ym, axis=0, keepdims=True)           # (1, Op)
    sq = jnp.sum(ym * y, axis=0, keepdims=True)      # (1, Op) == sum(mask * y^2)
    stats_ref[0, 0] = jnp.concatenate(
        [s, sq, jnp.zeros((6, Op), jnp.float32)], axis=0)


def _bn_affine_kernel(y_ref, scale_ref, shift_ref, o_ref):
    """Lane-dense BatchNorm affine: o = y * scale + shift (per output channel)."""
    o_ref[...] = y_ref[...].astype(jnp.float32) * scale_ref[...] + shift_ref[...]


# ----------------------------- module forward -----------------------------

def unit_tcn_forward(x, params, *, kernel_size=9, stride=1, eps=1e-5,
                     mxu_dtype=jnp.bfloat16):
    """unit_tcn.forward: BatchNorm2d(Conv2d(x)); x NCHW (N, C, T, V) -> (N, O, T_out, V).

    BatchNorm uses per-batch (training-mode, biased-variance) statistics, matching
    a freshly constructed PyTorch module's forward.
    # TODO(synk): eval-mode inference with running_mean/running_var would take the
    #             stats as inputs and skip the fused-statistics outputs.
    """
    N, C, T, V = x.shape
    w = params["w"]                                  # (O, C, K)
    b = params["b"]                                  # (O,)
    gamma, beta = params["gamma"], params["beta"]    # (O,)
    O = w.shape[0]
    K = kernel_size
    pad = (K - 1) // 2
    T_out = (T + 2 * pad - K) // stride + 1

    # lane-alignment padding (full vreg/MXU fill, unmasked stores); stripped at exit
    Cp = _round_up(C, 128)
    Op = _round_up(O, 128)

    # temporal tile: Tt output frames per grid step (Tt*V multiple of 8, or == T_out)
    Tt = T_out if T_out <= 32 else 32
    nT = (T_out + Tt - 1) // Tt
    # padded-input frames the kernel may touch (includes tile round-up overreach)
    Tp = max((nT * Tt - 1) * stride + K, T + 2 * pad)
    pad_r = Tp - (T + pad)

    # entry relayout: cast to bf16 FIRST, then NCHW -> (N, T, V, C), then one
    # combined zero-pad (temporal halo + lane padding of C).
    xl = jnp.transpose(x.astype(mxu_dtype), (0, 2, 3, 1))
    xp = jnp.pad(xl, ((0, 0), (pad, pad_r), (0, 0), (0, Cp - C)))

    # weight: (O, C, K) -> tap-major (K, Cp, Op), zero-padded, bf16
    wk = jnp.pad(jnp.transpose(w, (2, 1, 0)), ((0, 0), (0, Cp - C), (0, Op - O)))
    wk = wk.astype(mxu_dtype)
    b2 = jnp.pad(b, (0, Op - O)).reshape(1, Op).astype(jnp.float32)

    conv = functools.partial(_tconv_stats_kernel, K=K, stride=stride, V=V,
                             T_out=T_out)
    yf, stats = pl.pallas_call(
        conv,
        grid=(N, nT),
        in_specs=[
            pl.BlockSpec((1, Tp, V, Cp), lambda n, t: (n, 0, 0, 0)),   # reused over t
            pl.BlockSpec((K, Cp, Op), lambda n, t: (0, 0, 0)),
            pl.BlockSpec((1, Op), lambda n, t: (0, 0)),
        ],
        out_specs=(
            pl.BlockSpec((1, Tt * V, Op), lambda n, t: (n, t, 0)),
            pl.BlockSpec((1, 1, 8, Op), lambda n, t: (n, t, 0, 0)),
        ),
        out_shape=(
            jax.ShapeDtypeStruct((N, T_out * V, Op), mxu_dtype),   # bf16 intermediate
            jax.ShapeDtypeStruct((N, nT, 8, Op), jnp.float32),     # partial BN stats
        ),
        compiler_params=pltpu.CompilerParams(
            dimension_semantics=("parallel", "parallel"),
            vmem_limit_bytes=_VMEM_LIMIT_BYTES),
    )(xp, wk, b2)

    # BatchNorm2d statistics (training mode, biased variance) from the fused
    # per-tile partials -- the large conv output is never re-read for statistics.
    cnt = float(N * T_out * V)
    ssum = jnp.sum(stats[:, :, 0, :], axis=(0, 1))                 # (Op,)
    ssq = jnp.sum(stats[:, :, 1, :], axis=(0, 1))                  # (Op,)
    mean = ssum / cnt
    var = jnp.maximum(ssq / cnt - mean * mean, 0.0)
    gp = jnp.pad(gamma, (0, Op - O)).astype(jnp.float32)
    bp = jnp.pad(beta, (0, Op - O)).astype(jnp.float32)
    scale = gp * jax.lax.rsqrt(var + eps)
    shift = bp - mean * scale

    # BN affine: lane-dense (rows, V*Op) pass; row tile sized for ~4 MB blocks.
    rows, L = N * T_out, V * Op
    y2 = yf.reshape(rows, L)                          # contiguous reshape
    s2 = jnp.tile(scale, V).reshape(1, L)             # column v*Op+o -> scale[o]
    t2 = jnp.tile(shift, V).reshape(1, L)
    if rows <= 8:
        tile_r = rows
    else:
        tile_r = min(rows, max(8, ((4 * 1024 * 1024) // (L * 6)) // 8 * 8))
    n_row_tiles = (rows + tile_r - 1) // tile_r

    z = pl.pallas_call(
        _bn_affine_kernel,
        grid=(n_row_tiles,),
        in_specs=[pl.BlockSpec((tile_r, L), lambda i: (i, 0)),
                  pl.BlockSpec((1, L), lambda i: (0, 0)),
                  pl.BlockSpec((1, L), lambda i: (0, 0))],
        out_specs=pl.BlockSpec((tile_r, L), lambda i: (i, 0)),
        out_shape=jax.ShapeDtypeStruct((rows, L), jnp.float32),
        compiler_params=pltpu.CompilerParams(
            dimension_semantics=("parallel",),
            vmem_limit_bytes=_VMEM_LIMIT_BYTES),
    )(y2, s2, t2)

    # exit: strip lane padding, back to NCHW
    z = z.reshape(N, T_out, V, Op)[:, :, :, :O]
    return jnp.transpose(z, (0, 3, 1, 2))


# ----------------------------- parameter init -----------------------------

def init_unit_tcn_params(key, in_channels, out_channels, kernel_size=9):
    # conv_init: kaiming_normal_(mode='fan_out') -> std = sqrt(2 / (O*K*1)); bias = 0
    # bn_init(bn, 1): gamma = 1, beta = 0
    std = jnp.sqrt(2.0 / (out_channels * kernel_size))
    w = jax.random.normal(key, (out_channels, in_channels, kernel_size),
                          jnp.float32) * std
    return dict(
        w=w,
        b=jnp.zeros((out_channels,), jnp.float32),
        gamma=jnp.ones((out_channels,), jnp.float32),
        beta=jnp.zeros((out_channels,), jnp.float32),
    )


# ----------------------------- main -----------------------------

if __name__ == "__main__":
    key = jax.random.PRNGKey(0)
    kx, kp = jax.random.split(key)

    N, C_in, C_out, T, V = 2, 16, 32, 16, 16
    K, stride = 9, 1
    pad = (K - 1) // 2
    T_out = (T + 2 * pad - K) // stride + 1

    x = jax.random.normal(kx, (N, C_in, T, V), jnp.float32)
    params = init_unit_tcn_params(kp, C_in, C_out, kernel_size=K)

    y = unit_tcn_forward(x, params, kernel_size=K, stride=stride)
    y = jax.block_until_ready(y)
    assert y.shape == (N, C_out, T_out, V), y.shape

    # pure-JAX f32 reference (training-mode BN, biased variance); loose tolerance
    # because the Pallas path uses bf16 MXU inputs and a bf16 conv intermediate.
    w4 = params["w"][:, :, :, None]                              # (O, C, K, 1) OIHW
    ref = jax.lax.conv_general_dilated(
        x, w4, window_strides=(stride, 1), padding=((pad, pad), (0, 0)),
        dimension_numbers=("NCHW", "OIHW", "NCHW"))
    ref = ref + params["b"].reshape(1, -1, 1, 1)
    m = ref.mean(axis=(0, 2, 3), keepdims=True)
    v = jnp.mean((ref - m) ** 2, axis=(0, 2, 3), keepdims=True)
    ref = (params["gamma"].reshape(1, -1, 1, 1) * (ref - m) * jax.lax.rsqrt(v + 1e-5)
           + params["beta"].reshape(1, -1, 1, 1))
    err = float(jnp.max(jnp.abs(y - ref)))
    assert err < 2e-1, f"max abs err {err}"

    print("KERNEL_OK")
</pallas_src>

<mosaic_0001>
module attributes {stable_mosaic.version = 11 : i64} {
  func.func @_tconv_stats_kernel(%arg0: i32, %arg1: i32, %arg2: memref<1x24x16x128xbf16, #tpu.memory_space<vmem>>, %arg3: memref<9x128x128xbf16, #tpu.memory_space<vmem>>, %arg4: memref<1x128xf32, #tpu.memory_space<vmem>>, %arg5: memref<1x256x128xbf16, #tpu.memory_space<vmem>>, %arg6: memref<1x1x8x128xf32, #tpu.memory_space<vmem>>) attributes {dimension_semantics = [#tpu.dimension_semantics<parallel>, #tpu.dimension_semantics<parallel>], iteration_bounds = array<i64: 2, 1>, scalar_prefetch = 0 : i64, scratch_operands = 0 : i64, tpu.core_type = #tpu.core_type<tc>, window_params = [{transform_indices = @transform_0, window_bounds = array<i64: 1, 24, 16, 128>}, {pipeline_mode = #tpu.pipeline_mode<synchronous>, transform_indices = @transform_1, window_bounds = array<i64: 9, 128, 128>}, {pipeline_mode = #tpu.pipeline_mode<synchronous>, transform_indices = @transform_2, window_bounds = array<i64: 1, 128>}, {transform_indices = @transform_3, window_bounds = array<i64: 1, 256, 128>}, {transform_indices = @transform_4, window_bounds = array<i64: 1, 1, 8, 128>}]} {
    %c16_i32 = arith.constant 16 : i32
    %0 = arith.muli %arg1, %c16_i32 : i32
    %c0_i32 = arith.constant 0 : i32
    %1 = arith.addi %0, %c0_i32 : i32
    %c0 = arith.constant 0 : index
    %2 = arith.index_cast %1 : i32 to index
    %c0_0 = arith.constant 0 : index
    %c0_1 = arith.constant 0 : index
    %3 = vector.load %arg2[%c0, %2, %c0_0, %c0_1] : memref<1x24x16x128xbf16, #tpu.memory_space<vmem>>, vector<1x16x16x128xbf16>
    %4 = vector.shape_cast %3 : vector<1x16x16x128xbf16> to vector<16x16x128xbf16>
    %5 = vector.shape_cast %4 : vector<16x16x128xbf16> to vector<256x128xbf16>
    %c0_2 = arith.constant 0 : index
    %c0_3 = arith.constant 0 : index
    %c0_4 = arith.constant 0 : index
    %6 = vector.load %arg3[%c0_2, %c0_3, %c0_4] : memref<9x128x128xbf16, #tpu.memory_space<vmem>>, vector<1x128x128xbf16>
    %7 = vector.shape_cast %6 : vector<1x128x128xbf16> to vector<128x128xbf16>
    %cst = arith.constant dense<0.000000e+00> : vector<256x128xf32>
    %8 = tpu.matmul %5, %7, %cst {dimension_numbers = #tpu.dot_dimension_numbers<[1], [0], [0], [1], [0, 0, 1, 1], [], []>} : vector<256x128xbf16>, vector<128x128xbf16>, vector<256x128xf32> -> vector<256x128xf32>
    %c1_i32 = arith.constant 1 : i32
    %9 = arith.addi %0, %c1_i32 : i32
    %c0_5 = arith.constant 0 : index
    %10 = arith.index_cast %9 : i32 to index
    %c0_6 = arith.constant 0 : index
    %c0_7 = arith.constant 0 : index
    %11 = vector.load %arg2[%c0_5, %10, %c0_6, %c0_7] : memref<1x24x16x128xbf16, #tpu.memory_space<vmem>>, vector<1x16x16x128xbf16>
    %12 = vector.shape_cast %11 : vector<1x16x16x128xbf16> to vector<16x16x128xbf16>
    %13 = vector.shape_cast %12 : vector<16x16x128xbf16> to vector<256x128xbf16>
    %c1 = arith.constant 1 : index
    %c0_8 = arith.constant 0 : index
    %c0_9 = arith.constant 0 : index
    %14 = vector.load %arg3[%c1, %c0_8, %c0_9] : memref<9x128x128xbf16, #tpu.memory_space<vmem>>, vector<1x128x128xbf16>
    %15 = vector.shape_cast %14 : vector<1x128x128xbf16> to vector<128x128xbf16>
    %cst_10 = arith.constant dense<0.000000e+00> : vector<256x128xf32>
    %16 = tpu.matmul %13, %15, %cst_10 {dimension_numbers = #tpu.dot_dimension_numbers<[1], [0], [0], [1], [0, 0, 1, 1], [], []>} : vector<256x128xbf16>, vector<128x128xbf16>, vector<256x128xf32> -> vector<256x128xf32>
    %17 = arith.addf %8, %16 : vector<256x128xf32>
    %c2_i32 = arith.constant 2 : i32
    %18 = arith.addi %0, %c2_i32 : i32
    %c0_11 = arith.constant 0 : index
    %19 = arith.index_cast %18 : i32 to index
    %c0_12 = arith.constant 0 : index
    %c0_13 = arith.constant 0 : index
    %20 = vector.load %arg2[%c0_11, %19, %c0_12, %c0_13] : memref<1x24x16x128xbf16, #tpu.memory_space<vmem>>, vector<1x16x16x128xbf16>
    %21 = vector.shape_cast %20 : vector<1x16x16x128xbf16> to vector<16x16x128xbf16>
    %22 = vector.shape_cast %21 : vector<16x16x128xbf16> to vector<256x128xbf16>
    %c2 = arith.constant 2 : index
    %c0_14 = arith.constant 0 : index
    %c0_15 = arith.constant 0 : index
    %23 = vector.load %arg3[%c2, %c0_14, %c0_15] : memref<9x128x128xbf16, #tpu.memory_space<vmem>>, vector<1x128x128xbf16>
    %24 = vector.shape_cast %23 : vector<1x128x128xbf16> to vector<128x128xbf16>
    %cst_16 = arith.constant dense<0.000000e+00> : vector<256x128xf32>
    %25 = tpu.matmul %22, %24, %cst_16 {dimension_numbers = #tpu.dot_dimension_numbers<[1], [0], [0], [1], [0, 0, 1, 1], [], []>} : vector<256x128xbf16>, vector<128x128xbf16>, vector<256x128xf32> -> vector<256x128xf32>
    %26 = arith.addf %17, %25 : vector<256x128xf32>
    %c3_i32 = arith.constant 3 : i32
    %27 = arith.addi %0, %c3_i32 : i32
    %c0_17 = arith.constant 0 : index
    %28 = arith.index_cast %27 : i32 to index
    %c0_18 = arith.constant 0 : index
    %c0_19 = arith.constant 0 : index
    %29 = vector.load %arg2[%c0_17, %28, %c0_18, %c0_19] : memref<1x24x16x128xbf16, #tpu.memory_space<vmem>>, vector<1x16x16x128xbf16>
    %30 = vector.shape_cast %29 : vector<1x16x16x128xbf16> to vector<16x16x128xbf16>
    %31 = vector.shape_cast %30 : vector<16x16x128xbf16> to vector<256x128xbf16>
    %c3 = arith.constant 3 : index
    %c0_20 = arith.constant 0 : index
    %c0_21 = arith.constant 0 : index
    %32 = vector.load %arg3[%c3, %c0_20, %c0_21] : memref<9x128x128xbf16, #tpu.memory_space<vmem>>, vector<1x128x128xbf16>
    %33 = vector.shape_cast %32 : vector<1x128x128xbf16> to vector<128x128xbf16>
    %cst_22 = arith.constant dense<0.000000e+00> : vector<256x128xf32>
    %34 = tpu.matmul %31, %33, %cst_22 {dimension_numbers = #tpu.dot_dimension_numbers<[1], [0], [0], [1], [0, 0, 1, 1], [], []>} : vector<256x128xbf16>, vector<128x128xbf16>, vector<256x128xf32> -> vector<256x128xf32>
    %35 = arith.addf %26, %34 : vector<256x128xf32>
    %c4_i32 = arith.constant 4 : i32
    %36 = arith.addi %0, %c4_i32 : i32
    %c0_23 = arith.constant 0 : index
    %37 = arith.index_cast %36 : i32 to index
    %c0_24 = arith.constant 0 : index
    %c0_25 = arith.constant 0 : index
    %38 = vector.load %arg2[%c0_23, %37, %c0_24, %c0_25] : memref<1x24x16x128xbf16, #tpu.memory_space<vmem>>, vector<1x16x16x128xbf16>
    %39 = vector.shape_cast %38 : vector<1x16x16x128xbf16> to vector<16x16x128xbf16>
    %40 = vector.shape_cast %39 : vector<16x16x128xbf16> to vector<256x128xbf16>
    %c4 = arith.constant 4 : index
    %c0_26 = arith.constant 0 : index
    %c0_27 = arith.constant 0 : index
    %41 = vector.load %arg3[%c4, %c0_26, %c0_27] : memref<9x128x128xbf16, #tpu.memory_space<vmem>>, vector<1x128x128xbf16>
    %42 = vector.shape_cast %41 : vector<1x128x128xbf16> to vector<128x128xbf16>
    %cst_28 = arith.constant dense<0.000000e+00> : vector<256x128xf32>
    %43 = tpu.matmul %40, %42, %cst_28 {dimension_numbers = #tpu.dot_dimension_numbers<[1], [0], [0], [1], [0, 0, 1, 1], [], []>} : vector<256x128xbf16>, vector<128x128xbf16>, vector<256x128xf32> -> vector<256x128xf32>
    %44 = arith.addf %35, %43 : vector<256x128xf32>
    %c5_i32 = arith.constant 5 : i32
    %45 = arith.addi %0, %c5_i32 : i32
    %c0_29 = arith.constant 0 : index
    %46 = arith.index_cast %45 : i32 to index
    %c0_30 = arith.constant 0 : index
    %c0_31 = arith.constant 0 : index
    %47 = vector.load %arg2[%c0_29, %46, %c0_30, %c0_31] : memref<1x24x16x128xbf16, #tpu.memory_space<vmem>>, vector<1x16x16x128xbf16>
    %48 = vector.shape_cast %47 : vector<1x16x16x128xbf16> to vector<16x16x128xbf16>
    %49 = vector.shape_cast %48 : vector<16x16x128xbf16> to vector<256x128xbf16>
    %c5 = arith.constant 5 : index
    %c0_32 = arith.constant 0 : index
    %c0_33 = arith.constant 0 : index
    %50 = vector.load %arg3[%c5, %c0_32, %c0_33] : memref<9x128x128xbf16, #tpu.memory_space<vmem>>, vector<1x128x128xbf16>
    %51 = vector.shape_cast %50 : vector<1x128x128xbf16> to vector<128x128xbf16>
    %cst_34 = arith.constant dense<0.000000e+00> : vector<256x128xf32>
    %52 = tpu.matmul %49, %51, %cst_34 {dimension_numbers = #tpu.dot_dimension_numbers<[1], [0], [0], [1], [0, 0, 1, 1], [], []>} : vector<256x128xbf16>, vector<128x128xbf16>, vector<256x128xf32> -> vector<256x128xf32>
    %53 = arith.addf %44, %52 : vector<256x128xf32>
    %c6_i32 = arith.constant 6 : i32
    %54 = arith.addi %0, %c6_i32 : i32
    %c0_35 = arith.constant 0 : index
    %55 = arith.index_cast %54 : i32 to index
    %c0_36 = arith.constant 0 : index
    %c0_37 = arith.constant 0 : index
    %56 = vector.load %arg2[%c0_35, %55, %c0_36, %c0_37] : memref<1x24x16x128xbf16, #tpu.memory_space<vmem>>, vector<1x16x16x128xbf16>
    %57 = vector.shape_cast %56 : vector<1x16x16x128xbf16> to vector<16x16x128xbf16>
    %58 = vector.shape_cast %57 : vector<16x16x128xbf16> to vector<256x128xbf16>
    %c6 = arith.constant 6 : index
    %c0_38 = arith.constant 0 : index
    %c0_39 = arith.constant 0 : index
    %59 = vector.load %arg3[%c6, %c0_38, %c0_39] : memref<9x128x128xbf16, #tpu.memory_space<vmem>>, vector<1x128x128xbf16>
    %60 = vector.shape_cast %59 : vector<1x128x128xbf16> to vector<128x128xbf16>
    %cst_40 = arith.constant dense<0.000000e+00> : vector<256x128xf32>
    %61 = tpu.matmul %58, %60, %cst_40 {dimension_numbers = #tpu.dot_dimension_numbers<[1], [0], [0], [1], [0, 0, 1, 1], [], []>} : vector<256x128xbf16>, vector<128x128xbf16>, vector<256x128xf32> -> vector<256x128xf32>
    %62 = arith.addf %53, %61 : vector<256x128xf32>
    %c7_i32 = arith.constant 7 : i32
    %63 = arith.addi %0, %c7_i32 : i32
    %c0_41 = arith.constant 0 : index
    %64 = arith.index_cast %63 : i32 to index
    %c0_42 = arith.constant 0 : index
    %c0_43 = arith.constant 0 : index
    %65 = vector.load %arg2[%c0_41, %64, %c0_42, %c0_43] : memref<1x24x16x128xbf16, #tpu.memory_space<vmem>>, vector<1x16x16x128xbf16>
    %66 = vector.shape_cast %65 : vector<1x16x16x128xbf16> to vector<16x16x128xbf16>
    %67 = vector.shape_cast %66 : vector<16x16x128xbf16> to vector<256x128xbf16>
    %c7 = arith.constant 7 : index
    %c0_44 = arith.constant 0 : index
    %c0_45 = arith.constant 0 : index
    %68 = vector.load %arg3[%c7, %c0_44, %c0_45] : memref<9x128x128xbf16, #tpu.memory_space<vmem>>, vector<1x128x128xbf16>
    %69 = vector.shape_cast %68 : vector<1x128x128xbf16> to vector<128x128xbf16>
    %cst_46 = arith.constant dense<0.000000e+00> : vector<256x128xf32>
    %70 = tpu.matmul %67, %69, %cst_46 {dimension_numbers = #tpu.dot_dimension_numbers<[1], [0], [0], [1], [0, 0, 1, 1], [], []>} : vector<256x128xbf16>, vector<128x128xbf16>, vector<256x128xf32> -> vector<256x128xf32>
    %71 = arith.addf %62, %70 : vector<256x128xf32>
    %c8_i32 = arith.constant 8 : i32
    %72 = arith.addi %0, %c8_i32 : i32
    %c0_47 = arith.constant 0 : index
    %73 = arith.index_cast %72 : i32 to index
    %c0_48 = arith.constant 0 : index
    %c0_49 = arith.constant 0 : index
    %74 = vector.load %arg2[%c0_47, %73, %c0_48, %c0_49] : memref<1x24x16x128xbf16, #tpu.memory_space<vmem>>, vector<1x16x16x128xbf16>
    %75 = vector.shape_cast %74 : vector<1x16x16x128xbf16> to vector<16x16x128xbf16>
    %76 = vector.shape_cast %75 : vector<16x16x128xbf16> to vector<256x128xbf16>
    %c8 = arith.constant 8 : index
    %c0_50 = arith.constant 0 : index
    %c0_51 = arith.constant 0 : index
    %77 = vector.load %arg3[%c8, %c0_50, %c0_51] : memref<9x128x128xbf16, #tpu.memory_space<vmem>>, vector<1x128x128xbf16>
    %78 = vector.shape_cast %77 : vector<1x128x128xbf16> to vector<128x128xbf16>
    %cst_52 = arith.constant dense<0.000000e+00> : vector<256x128xf32>
    %79 = tpu.matmul %76, %78, %cst_52 {dimension_numbers = #tpu.dot_dimension_numbers<[1], [0], [0], [1], [0, 0, 1, 1], [], []>} : vector<256x128xbf16>, vector<128x128xbf16>, vector<256x128xf32> -> vector<256x128xf32>
    %80 = arith.addf %71, %79 : vector<256x128xf32>
    %c0_53 = arith.constant 0 : index
    %c0_54 = arith.constant 0 : index
    %81 = vector.load %arg4[%c0_53, %c0_54] : memref<1x128xf32, #tpu.memory_space<vmem>>, vector<1x128xf32>
    %82 = vector.broadcast %81 : vector<1x128xf32> to vector<256x128xf32>
    %83 = arith.addf %80, %82 : vector<256x128xf32>
    %84 = arith.truncf %83 : vector<256x128xf32> to vector<256x128xbf16>
    %c0_55 = arith.constant 0 : index
    %c0_56 = arith.constant 0 : index
    %c0_57 = arith.constant 0 : index
    %85 = vector.load %arg5[%c0_55, %c0_56, %c0_57] : memref<1x256x128xbf16, #tpu.memory_space<vmem>>, vector<1x256x128xbf16>
    %86 = vector.shape_cast %85 : vector<1x256x128xbf16> to vector<256x128xbf16>
    %87 = vector.shape_cast %84 : vector<256x128xbf16> to vector<1x256x128xbf16>
    tpu.vector_store %arg5[%c0_55, %c0_56, %c0_57], %87 {strides = array<i32>} : memref<1x256x128xbf16, #tpu.memory_space<vmem>>, vector<1x256x128xbf16>,
    %c16_i32_58 = arith.constant 16 : i32
    %88 = arith.subi %c16_i32_58, %0 : i32
    %c16_i32_59 = arith.constant 16 : i32
    %89 = arith.muli %88, %c16_i32_59 : i32
    %c256_i32 = arith.constant 256 : i32
    %90 = arith.minsi %c256_i32, %89 : i32
    %91 = tpu.iota {dimensions = array<i32: 0>} : vector<256x1xi32>
    %92 = vector.broadcast %90 : i32 to vector<256x1xi32>
    %93 = arith.cmpi slt, %91, %92 : vector<256x1xi32>
    %94 = arith.extui %93 : vector<256x1xi1> to vector<256x1xi32>
    %95 = arith.sitofp %94 : vector<256x1xi32> to vector<256x1xf32>
    %96 = vector.broadcast %95 : vector<256x1xf32> to vector<256x128xf32>
    %97 = arith.mulf %83, %96 : vector<256x128xf32>
    %cst_60 = arith.constant dense<0.000000e+00> : vector<128xf32>
    %98 = vector.multi_reduction <add>, %97, %cst_60 [0] : vector<256x128xf32> to vector<128xf32>
    %99 = vector.shape_cast %98 : vector<128xf32> to vector<1x128xf32>
    %100 = arith.mulf %97, %83 : vector<256x128xf32>
    %cst_61 = arith.constant dense<0.000000e+00> : vector<128xf32>
    %101 = vector.multi_reduction <add>, %100, %cst_61 [0] : vector<256x128xf32> to vector<128xf32>
    %102 = vector.shape_cast %101 : vector<128xf32> to vector<1x128xf32>
    %cst_62 = arith.constant 0.000000e+00 : f32
    %103 = vector.broadcast %cst_62 : f32 to vector<6x128xf32>
    %104 = tpu.concatenate %99, %102, %103 in 0 : vector<1x128xf32>, vector<1x128xf32>, vector<6x128xf32> -> vector<8x128xf32>
    %c0_63 = arith.constant 0 : index
    %c0_64 = arith.constant 0 : index
    %c0_65 = arith.constant 0 : index
    %c0_66 = arith.constant 0 : index
    %105 = vector.load %arg6[%c0_63, %c0_64, %c0_65, %c0_66] : memref<1x1x8x128xf32, #tpu.memory_space<vmem>>, vector<1x1x8x128xf32>
    %106 = vector.shape_cast %105 : vector<1x1x8x128xf32> to vector<8x128xf32>
    %107 = vector.shape_cast %104 : vector<8x128xf32> to vector<1x1x8x128xf32>
    tpu.vector_store %arg6[%c0_63, %c0_64, %c0_65, %c0_66], %107 {strides = array<i32>} : memref<1x1x8x128xf32, #tpu.memory_space<vmem>>, vector<1x1x8x128xf32>,
    return
  }
  func.func @transform_0(%arg0: i32, %arg1: i32) -> (i32, i32, i32, i32) {
    %c0_i32 = arith.constant 0 : i32
    %c0_i32_0 = arith.constant 0 : i32
    %c0_i32_1 = arith.constant 0 : i32
    %c0_i32_2 = arith.constant 0 : i32
    return %arg0, %c0_i32, %c0_i32_0, %c0_i32_1 : i32, i32, i32, i32
  }
  func.func @transform_1(%arg0: i32, %arg1: i32) -> (i32, i32, i32) {
    %c0_i32 = arith.constant 0 : i32
    %c0_i32_0 = arith.constant 0 : i32
    %c0_i32_1 = arith.constant 0 : i32
    %c0_i32_2 = arith.constant 0 : i32
    return %c0_i32, %c0_i32_0, %c0_i32_1 : i32, i32, i32
  }
  func.func @transform_2(%arg0: i32, %arg1: i32) -> (i32, i32) {
    %c0_i32 = arith.constant 0 : i32
    %c0_i32_0 = arith.constant 0 : i32
    %c0_i32_1 = arith.constant 0 : i32
    return %c0_i32, %c0_i32_0 : i32, i32
  }
  func.func @transform_3(%arg0: i32, %arg1: i32) -> (i32, i32, i32) {
    %c0_i32 = arith.constant 0 : i32
    %c0_i32_0 = arith.constant 0 : i32
    return %arg0, %arg1, %c0_i32 : i32, i32, i32
  }
  func.func @transform_4(%arg0: i32, %arg1: i32) -> (i32, i32, i32, i32) {
    %c0_i32 = arith.constant 0 : i32
    %c0_i32_0 = arith.constant 0 : i32
    %c0_i32_1 = arith.constant 0 : i32
    return %arg0, %arg1, %c0_i32, %c0_i32_0 : i32, i32, i32, i32
  }
}

</mosaic_0001>

<llo_original>
// kernel: tpu_custom_call.1
$region0: #{tpu_custom_call.1}
  #allocation0 [shape = 'u32[]', space=smem, size = 0x4, offset = 0x4, fixed_abs, tag = 'smem constant byte address 0x4 - core index']
  #allocation1 [shape = 'u32[72,128]{1,0:T(1,128)}', space=vmem, size = 0x9000, scoped, tag = 'internal scratch']
  %s0 = inlined_call_operand.hbm [shape: bf16[2,24,16,128], index: 0, kind: input, shape index: {}]
  %s1 = inlined_call_operand.hbm [shape: bf16[9,128,128], index: 1, kind: input, shape index: {}]
  %s2 = inlined_call_operand.vmem [shape: f32[1,128], index: 2, kind: input, shape index: {}]
  %s3 = inlined_call_operand.hbm [shape: bf16[2,256,128], index: 3, kind: output, shape index: {0}]
  %s4 = inlined_call_operand.hbm [shape: f32[2,1,8,128], index: 4, kind: output, shape index: {1}]
  %5 = xla_tuple %s3, %s4
  %s6 = sld [smem:[#allocation0]]
  $region61: #{tpu_custom_call.1} parent=0
    _
  %s8 = ssub.s32 1, %s6
  %s9 = scalar_select 0, %s8, %s6
  $region1: #{tpu_custom_call.1} parent=0
    #allocation2 [shape = 'u8[196608]{0}', space=vmem, size = 0x30000, scoped, tag = 'input window, operand 0']
    #allocation3 [shape = 's32[2]{0}', space=sflag, size = 0x8, scoped, tag = 'scoped memory for tpu_custom_call.1']
    #allocation4 [shape = 's32[2]{0}', space=sflag, size = 0x8, scoped, tag = 'scoped memory for tpu_custom_call.1']
    #allocation5 [shape = 'u8[294912]{0}', space=vmem, size = 0x48000, scoped, tag = 'input window, operand 1, single buffered']
    #allocation6 [shape = 's32[1]{0}', space=sflag, size = 0x4, scoped, tag = 'scoped memory for tpu_custom_call.1']
    #allocation7 [shape = 'u8[131072]{0}', space=vmem, size = 0x20000, scoped, tag = 'output window, operand 0']
    #allocation8 [shape = 'u8[8192]{0}', space=vmem, size = 0x2000, scoped, tag = 'output window, operand 1']
    #allocation9 [shape = 's32[2]{0}', space=sflag, size = 0x8, scoped, tag = 'scoped memory for tpu_custom_call.1']
    %10 = vsyncpa [#allocation3], 0
    %s11 = scalar_lea.sflag [#allocation3], 1
    %12 = vsyncpa %s11, 0
    %13 = vsyncpa [#allocation6], 0
    %14 = vsyncpa [#allocation4], 0
    %s15 = scalar_lea.sflag [#allocation4], 1
    %16 = vsyncpa %s15, 0
    %17 = vsyncpa [#allocation9], 0
    %s18 = scalar_lea.sflag [#allocation9], 1
    %19 = vsyncpa %s18, 0
    loop: start=0, step=1, limit=4
    $region2: #{tpu_custom_call.1} parent=1 // loop_pre_header
      _
    $region3: #{tpu_custom_call.1} parent=1 // loop_header
      %s21 = sphi 0, %s25
      %p22 = scmp.ge.s32.totalorder %s21, 4
      %s28 = sphi 0, %s40
      %s29 = sphi 0, %s36
      %s30 = sphi 0, %s28
      %s31 = sphi 0, %s29
      %s32 = sphi 0, %s30
      %s33 = sphi 0, %s31
      %s43 = sphi 0, %s45
      %s46 = sphi 0, %s43
      %s47 = sphi 0, %s46
      %s63 = sphi 0, %s47
      %s67 = sphi 0, %s67
      %s69 = sphi 0, %s67
      %s70 = sphi 0, %s69
      %s84 = sphi 0, %s70
      %s88 = sphi 0, %s88
      %s90 = sphi 0, %s88
      %s91 = sphi 0, %s90
      %s105 = sphi 0, %s91
      %s113 = sphi 0, %s115
      %s116 = sphi 0, %s113
      %s117 = sphi 0, %s116
      %s133 = sphi 0, %s117
      %s141 = sphi 0, %s143
      %s144 = sphi 0, %s141
      %s145 = sphi 0, %s144
      %s161 = sphi 0, %s145
    $region4: #{tpu_custom_call.1} parent=1 // loop_header_branch
      %24 = sbr.rel (%p22) target = $region8
    $region5: #{tpu_custom_call.1} parent=1 // loop_body
      %s26 = ssub.s32 %s21, 1
      %s27 = ssub.s32 %s21, 2
      %s34 = sadd.s32 1, %s29
      %p35 = scmp.ge.s32.totalorder %s34, 1
      %s36 = scalar_select %p35, 0, %s34
      %s37 = sadd.s32 1, %s28
      %s38 = scalar_select %p35, %s37, %s28
      %p39 = scmp.ge.s32.totalorder %s38, 2
      %s40 = scalar_select %p39, 0, %s38
      %s41 = ssub.s32 %s28, %s40
      %p42 = scmp.eq.s32.totalorder %s41, 0
      %s44 = sadd.s32 %s43, 1
      %s45 = scalar_select %p42, %s43, %s44
      %p48 = pneg %p42
      %p49 = scmp.eq.s32.totalorder %s21, 1
      %p50 = por %p48, %p49
      %p51 = scmp.ne.s32.totalorder %s43, %s46
      %p52 = scmp.eq.s32.totalorder %s21, 0
      %p53 = por %p51, %p52
      %p54 = scmp.ne.s32.totalorder %s43, %s46
      %p55 = scmp.eq.s32.totalorder %s26, 1
      %p56 = por %p54, %p55
      %p57 = scmp.ne.s32.totalorder %s46, %s47
      %p58 = scmp.eq.s32.totalorder %s26, 0
      %p59 = por %p57, %p58
      %p60 = scmp.ne.s32.totalorder %s46, %s47
      %p61 = scmp.eq.s32.totalorder %s27, 1
      %p62 = por %p60, %p61
      %p64 = scmp.ne.s32.totalorder %s47, %s63
      %p65 = scmp.eq.s32.totalorder %s27, 0
      %p66 = por %p64, %p65
      %s68 = sadd.s32 %s67, 1
      %p71 = scmp.eq.s32.totalorder %s21, 1
      %p72 = scmp.ne.s32.totalorder %s67, %s69
      %p73 = scmp.eq.s32.totalorder %s21, 0
      %p74 = por %p72, %p73
      %p75 = scmp.ne.s32.totalorder %s67, %s69
      %p76 = scmp.eq.s32.totalorder %s26, 1
      %p77 = por %p75, %p76
      %p78 = scmp.ne.s32.totalorder %s69, %s70
      %p79 = scmp.eq.s32.totalorder %s26, 0
      %p80 = por %p78, %p79
      %p81 = scmp.ne.s32.totalorder %s69, %s70
      %p82 = scmp.eq.s32.totalorder %s27, 1
      %p83 = por %p81, %p82
      %p85 = scmp.ne.s32.totalorder %s70, %s84
      %p86 = scmp.eq.s32.totalorder %s27, 0
      %p87 = por %p85, %p86
      %s89 = sadd.s32 %s88, 1
      %p92 = scmp.eq.s32.totalorder %s21, 1
      %p93 = scmp.ne.s32.totalorder %s88, %s90
      %p94 = scmp.eq.s32.totalorder %s21, 0
      %p95 = por %p93, %p94
      %p96 = scmp.ne.s32.totalorder %s88, %s90
      %p97 = scmp.eq.s32.totalorder %s26, 1
      %p98 = por %p96, %p97
      %p99 = scmp.ne.s32.totalorder %s90, %s91
      %p100 = scmp.eq.s32.totalorder %s26, 0
      %p101 = por %p99, %p100
      %p102 = scmp.ne.s32.totalorder %s90, %s91
      %p103 = scmp.eq.s32.totalorder %s27, 1
      %p104 = por %p102, %p103
      %p106 = scmp.ne.s32.totalorder %s91, %s105
      %p107 = scmp.eq.s32.totalorder %s27, 0
      %p108 = por %p106, %p107
      %s109 = ssub.s32 %s28, %s40
      %s110 = ssub.s32 %s29, %s36
      %s111 = sor.u32 %s109, %s110
      %p112 = scmp.eq.s32.totalorder %s111, 0
      %s114 = sadd.s32 %s113, 1
      %s115 = scalar_select %p112, %s113, %s114
      %p118 = pneg %p112
      %p119 = scmp.eq.s32.totalorder %s21, 1
      %p120 = por %p118, %p119
      %p121 = scmp.ne.s32.totalorder %s113, %s116
      %p122 = scmp.eq.s32.totalorder %s21, 0
      %p123 = por %p121, %p122
      %p124 = scmp.ne.s32.totalorder %s113, %s116
      %p125 = scmp.eq.s32.totalorder %s26, 1
      %p126 = por %p124, %p125
      %p127 = scmp.ne.s32.totalorder %s116, %s117
      %p128 = scmp.eq.s32.totalorder %s26, 0
      %p129 = por %p127, %p128
      %p130 = scmp.ne.s32.totalorder %s116, %s117
      %p131 = scmp.eq.s32.totalorder %s27, 1
      %p132 = por %p130, %p131
      %p134 = scmp.ne.s32.totalorder %s117, %s133
      %p135 = scmp.eq.s32.totalorder %s27, 0
      %p136 = por %p134, %p135
      %s137 = ssub.s32 %s28, %s40
      %s138 = ssub.s32 %s29, %s36
      %s139 = sor.u32 %s137, %s138
      %p140 = scmp.eq.s32.totalorder %s139, 0
      %s142 = sadd.s32 %s141, 1
      %s143 = scalar_select %p140, %s141, %s142
      %p146 = pneg %p140
      %p147 = scmp.eq.s32.totalorder %s21, 1
      %p148 = por %p146, %p147
      %p149 = scmp.ne.s32.totalorder %s141, %s144
      %p150 = scmp.eq.s32.totalorder %s21, 0
      %p151 = por %p149, %p150
      %p152 = scmp.ne.s32.totalorder %s141, %s144
      %p153 = scmp.eq.s32.totalorder %s26, 1
      %p154 = por %p152, %p153
      %p155 = scmp.ne.s32.totalorder %s144, %s145
      %p156 = scmp.eq.s32.totalorder %s26, 0
      %p157 = por %p155, %p156
      %p158 = scmp.ne.s32.totalorder %s144, %s145
      %p159 = scmp.eq.s32.totalorder %s27, 1
      %p160 = por %p158, %p159
      %p162 = scmp.ne.s32.totalorder %s145, %s161
      %p163 = scmp.eq.s32.totalorder %s27, 0
      %p164 = por %p162, %p163
      %p165 = scmp.le.s32.totalorder 1, %s21
      %p166 = scmp.lt.s32.totalorder %s21, 3
      %p167 = pnand %p165, %p166
      %p168 = pneg %p167
      // Predicated region
      $region9: #{tpu_custom_call.1} parent=5 // pred_check
        _
      $region10: #{tpu_custom_call.1} parent=5 // pred_check_branch
        %170 = sbr.rel (%p167) target = $region12
      $region11: #{tpu_custom_call.1} parent=5 // pred_region
        %s171 = ssub.s32 %s21, 1
        // Predicated region
        $region13: #{tpu_custom_call.1} parent=11 // pred_check
          %p172 = pneg %p80
        $region14: #{tpu_custom_call.1} parent=11 // pred_check_branch
          %174 = sbr.rel (%p172) target = $region16
        $region15: #{tpu_custom_call.1} parent=11 // pred_region
          %176 = vsyncadd [#allocation6], 0
          %s177 = sshll.u32 %s1, 4
          %s178 = int_to_ptr.hbm [resolvable:$true] %s177
          %s179 = sshll.u32 [#allocation5], 4
          %s180 = int_to_ptr.vmem [resolvable:$true] %s179
          %185 = dma.hbm_to_vmem [thread:$0]  %s178, 9216, %s180, [#allocation6], 64, 64, 4
        $region16: #{tpu_custom_call.1} parent=11 // pred_fallthru
          _
        // Predicated region
        $region17: #{tpu_custom_call.1} parent=11 // pred_check
          %p186 = pneg %p101
        $region18: #{tpu_custom_call.1} parent=11 // pred_check_branch
          %188 = sbr.rel (%p186) target = $region20
        $region19: #{tpu_custom_call.1} parent=11 // pred_region
          _
        $region20: #{tpu_custom_call.1} parent=11 // pred_fallthru
          _
      $region12: #{tpu_custom_call.1} parent=5 // pred_fallthru
        _
      %p189 = scmp.lt.s32.totalorder %s21, 2
      // Predicated region
      $region21: #{tpu_custom_call.1} parent=5 // pred_check
        %p190 = pneg %p189
      $region22: #{tpu_custom_call.1} parent=5 // pred_check_branch
        %192 = sbr.rel (%p190) target = $region24
      $region23: #{tpu_custom_call.1} parent=5 // pred_region
        // Predicated region
        $region25: #{tpu_custom_call.1} parent=23 // pred_check
          %p193 = pneg %p53
        $region26: #{tpu_custom_call.1} parent=23 // pred_check_branch
          %195 = sbr.rel (%p193) target = $region28
        $region27: #{tpu_custom_call.1} parent=23 // pred_region
          %s196 = sand.u32 %s43, 1
          %s197 = scalar_lea.sflag [#allocation3], %s196
          %s198 = sand.u32 %s43, 1
          %s199 = smul.addr %s198, 192
          %s200 = scalar_lea.vmem [#allocation2], %s199
          %202 = vsyncadd %s197, 0
          %s203 = smul.addr %s28, 48
          %s204 = smul.addr %s203, 4
          %s205 = scalar_lea.hbm %s0, %s204
          %s206 = sshll.u32 %s205, 4
          %s207 = int_to_ptr.hbm [resolvable:$true] %s206
          %s208 = sshll.u32 %s200, 4
          %s209 = int_to_ptr.vmem [resolvable:$true] %s208
          %214 = dma.hbm_to_vmem [thread:$0]  %s207, 3072, %s209, %s197, 64, 64, 4
        $region28: #{tpu_custom_call.1} parent=23 // pred_fallthru
          _
      $region24: #{tpu_custom_call.1} parent=5 // pred_fallthru
        _
      %p215 = scmp.le.s32.totalorder 1, %s21
      %p216 = scmp.lt.s32.totalorder %s21, 3
      %p217 = pnand %p215, %p216
      %p218 = pneg %p217
      // Predicated region
      $region29: #{tpu_custom_call.1} parent=5 // pred_check
        _
      $region30: #{tpu_custom_call.1} parent=5 // pred_check_branch
        %220 = sbr.rel (%p217) target = $region32
      $region31: #{tpu_custom_call.1} parent=5 // pred_region
        %s221 = ssub.s32 %s21, 1
        %s222 = sand.u32 %s46, 1
        %s223 = scalar_lea.sflag [#allocation3], %s222
        %s224 = sand.u32 %s46, 1
        %s225 = smul.addr %s224, 192
        %s226 = scalar_lea.vmem [#allocation2], %s225
        // Predicated region
        $region33: #{tpu_custom_call.1} parent=31 // pred_check
          %p227 = pneg %p59
        $region34: #{tpu_custom_call.1} parent=31 // pred_check_branch
          %229 = sbr.rel (%p227) target = $region36
        $region35: #{tpu_custom_call.1} parent=31 // pred_region
          %231 = dma.done %s223, 3072
        $region36: #{tpu_custom_call.1} parent=31 // pred_fallthru
          _
        // Predicated region
        $region37: #{tpu_custom_call.1} parent=31 // pred_check
          %p232 = pneg %p80
        $region38: #{tpu_custom_call.1} parent=31 // pred_check_branch
          %234 = sbr.rel (%p232) target = $region40
        $region39: #{tpu_custom_call.1} parent=31 // pred_region
          %236 = dma.done [#allocation6], 9216
        $region40: #{tpu_custom_call.1} parent=31 // pred_fallthru
          _
        %s237 = sand.u32 %s46, 1
        %s238 = scalar_lea.sflag [#allocation3], %s237
        %s239 = sand.u32 %s46, 1
        %s240 = smul.addr %s239, 192
        %s241 = scalar_lea.vmem [#allocation2], %s240
        %p242 = pneg %p59
        %p243 = pneg %p56
        %p244 = pneg %p80
        %p245 = pneg %p77
        %p246 = pneg %p101
        %p247 = pneg %p98
        %p248 = pneg %p129
        %p249 = pneg %p126
        %s250 = sand.u32 %s116, 1
        %s251 = scalar_lea.sflag [#allocation4], %s250
        %s252 = sand.u32 %s116, 1
        %s253 = smul.addr %s252, 128
        %s254 = scalar_lea.vmem [#allocation7], %s253
        %p255 = pneg %p157
        %p256 = pneg %p154
        %s257 = sand.u32 %s144, 1
        %s258 = scalar_lea.sflag [#allocation9], %s257
        %s259 = sand.u32 %s144, 1
        %s260 = smul.addr %s259, 8
        %s261 = scalar_lea.vmem [#allocation8], %s260
        %s262 = smul.u32 32, %s31
        %s263 = smul.u32 %s31, 16
        %s264 = smul.u32 %s263, 2
        %s265 = smul.addr %s264, 4
        %s266 = scalar_lea.vmem %s226, %s265 [#allocation2]
        %v267 = vld [vmem:[%s266] sm:$0xf]
        %v268 = vld [vmem:[%s266 + $0x4] sm:$0xf]
        %v269 = vld [vmem:[%s266 + $0x8] sm:$0xf]
        %v270 = vld [vmem:[%s266 + $0xc] sm:$0xf]
        %v271 = vld [vmem:[%s266 + $0x10] sm:$0xf]
        %v272 = vld [vmem:[%s266 + $0x14] sm:$0xf]
        %v273 = vld [vmem:[%s266 + $0x18] sm:$0xf]
        %v274 = vld [vmem:[%s266 + $0x1c] sm:$0xf]
        %v275 = vld [vmem:[%s266 + $0x20] sm:$0xf]
        %v276 = vld [vmem:[%s266 + $0x24] sm:$0xf]
        %v277 = vld [vmem:[%s266 + $0x28] sm:$0xf]
        %v278 = vld [vmem:[%s266 + $0x2c] sm:$0xf]
        %v279 = vld [vmem:[%s266 + $0x30] sm:$0xf]
        %v280 = vld [vmem:[%s266 + $0x34] sm:$0xf]
        %v281 = vld [vmem:[%s266 + $0x38] sm:$0xf]
        %v282 = vld [vmem:[%s266 + $0x3c] sm:$0xf]
        %v283 = vld [vmem:[%s266 + $0x40] sm:$0xf]
        %v284 = vld [vmem:[%s266 + $0x44] sm:$0xf]
        %v285 = vld [vmem:[%s266 + $0x48] sm:$0xf]
        %v286 = vld [vmem:[%s266 + $0x4c] sm:$0xf]
        %v287 = vld [vmem:[%s266 + $0x50] sm:$0xf]
        %v288 = vld [vmem:[%s266 + $0x54] sm:$0xf]
        %v289 = vld [vmem:[%s266 + $0x58] sm:$0xf]
        %v290 = vld [vmem:[%s266 + $0x5c] sm:$0xf]
        %v291 = vld [vmem:[%s266 + $0x60] sm:$0xf]
        %v292 = vld [vmem:[%s266 + $0x64] sm:$0xf]
        %v293 = vld [vmem:[%s266 + $0x68] sm:$0xf]
        %v294 = vld [vmem:[%s266 + $0x6c] sm:$0xf]
        %v295 = vld [vmem:[%s266 + $0x70] sm:$0xf]
        %v296 = vld [vmem:[%s266 + $0x74] sm:$0xf]
        %v297 = vld [vmem:[%s266 + $0x78] sm:$0xf]
        %v298 = vld [vmem:[%s266 + $0x7c] sm:$0xf]
        %v299 = vld [vmem:[#allocation5] sm:$0xf]
        %v300 = vld [vmem:[#allocation5 + $0x4] sm:$0xf]
        %v301 = vld [vmem:[#allocation5 + $0x8] sm:$0xf]
        %v302 = vld [vmem:[#allocation5 + $0xc] sm:$0xf]
        %v303 = vld [vmem:[#allocation5 + $0x10] sm:$0xf]
        %v304 = vld [vmem:[#allocation5 + $0x14] sm:$0xf]
        %v305 = vld [vmem:[#allocation5 + $0x18] sm:$0xf]
        %v306 = vld [vmem:[#allocation5 + $0x1c] sm:$0xf]
        %v307 = vld [vmem:[#allocation5 + $0x20] sm:$0xf]
        %v308 = vld [vmem:[#allocation5 + $0x24] sm:$0xf]
        %v309 = vld [vmem:[#allocation5 + $0x28] sm:$0xf]
        %v310 = vld [vmem:[#allocation5 + $0x2c] sm:$0xf]
        %v311 = vld [vmem:[#allocation5 + $0x30] sm:$0xf]
        %v312 = vld [vmem:[#allocation5 + $0x34] sm:$0xf]
        %v313 = vld [vmem:[#allocation5 + $0x38] sm:$0xf]
        %v314 = vld [vmem:[#allocation5 + $0x3c] sm:$0xf]
        %s315 = sadd.s32 %s263, 1
        %s316 = smul.u32 %s315, 2
        %s317 = smul.addr %s316, 4
        %s318 = scalar_lea.vmem %s226, %s317 [#allocation2]
        %v319 = vld [vmem:[%s318] sm:$0xf]
        %v320 = vld [vmem:[%s318 + $0x4] sm:$0xf]
        %v321 = vld [vmem:[%s318 + $0x8] sm:$0xf]
        %v322 = vld [vmem:[%s318 + $0xc] sm:$0xf]
        %v323 = vld [vmem:[%s318 + $0x10] sm:$0xf]
        %v324 = vld [vmem:[%s318 + $0x14] sm:$0xf]
        %v325 = vld [vmem:[%s318 + $0x18] sm:$0xf]
        %v326 = vld [vmem:[%s318 + $0x1c] sm:$0xf]
        %v327 = vld [vmem:[%s318 + $0x20] sm:$0xf]
        %v328 = vld [vmem:[%s318 + $0x24] sm:$0xf]
        %v329 = vld [vmem:[%s318 + $0x28] sm:$0xf]
        %v330 = vld [vmem:[%s318 + $0x2c] sm:$0xf]
        %v331 = vld [vmem:[%s318 + $0x30] sm:$0xf]
        %v332 = vld [vmem:[%s318 + $0x34] sm:$0xf]
        %v333 = vld [vmem:[%s318 + $0x38] sm:$0xf]
        %v334 = vld [vmem:[%s318 + $0x3c] sm:$0xf]
        %v335 = vld [vmem:[%s318 + $0x40] sm:$0xf]
        %v336 = vld [vmem:[%s318 + $0x44] sm:$0xf]
        %v337 = vld [vmem:[%s318 + $0x48] sm:$0xf]
        %v338 = vld [vmem:[%s318 + $0x4c] sm:$0xf]
        %v339 = vld [vmem:[%s318 + $0x50] sm:$0xf]
        %v340 = vld [vmem:[%s318 + $0x54] sm:$0xf]
        %v341 = vld [vmem:[%s318 + $0x58] sm:$0xf]
        %v342 = vld [vmem:[%s318 + $0x5c] sm:$0xf]
        %v343 = vld [vmem:[%s318 + $0x60] sm:$0xf]
        %v344 = vld [vmem:[%s318 + $0x64] sm:$0xf]
        %v345 = vld [vmem:[%s318 + $0x68] sm:$0xf]
        %v346 = vld [vmem:[%s318 + $0x6c] sm:$0xf]
        %v347 = vld [vmem:[%s318 + $0x70] sm:$0xf]
        %v348 = vld [vmem:[%s318 + $0x74] sm:$0xf]
        %v349 = vld [vmem:[%s318 + $0x78] sm:$0xf]
        %v350 = vld [vmem:[%s318 + $0x7c] sm:$0xf]
        %s351 = scalar_lea.vmem [#allocation5], 64
        %v352 = vld [vmem:[%s351] sm:$0xf]
        %v353 = vld [vmem:[%s351 + $0x4] sm:$0xf]
        %v354 = vld [vmem:[%s351 + $0x8] sm:$0xf]
        %v355 = vld [vmem:[%s351 + $0xc] sm:$0xf]
        %v356 = vld [vmem:[%s351 + $0x10] sm:$0xf]
        %v357 = vld [vmem:[%s351 + $0x14] sm:$0xf]
        %v358 = vld [vmem:[%s351 + $0x18] sm:$0xf]
        %v359 = vld [vmem:[%s351 + $0x1c] sm:$0xf]
        %v360 = vld [vmem:[%s351 + $0x20] sm:$0xf]
        %v361 = vld [vmem:[%s351 + $0x24] sm:$0xf]
        %v362 = vld [vmem:[%s351 + $0x28] sm:$0xf]
        %v363 = vld [vmem:[%s351 + $0x2c] sm:$0xf]
        %v364 = vld [vmem:[%s351 + $0x30] sm:$0xf]
        %v365 = vld [vmem:[%s351 + $0x34] sm:$0xf]
        %v366 = vld [vmem:[%s351 + $0x38] sm:$0xf]
        %v367 = vld [vmem:[%s351 + $0x3c] sm:$0xf]
        %v400 = vunpack.c.l.b16 %v319
        %v401 = vunpack.c.l.b16 %v320
        %v402 = vunpack.c.l.b16 %v321
        %v403 = vunpack.c.l.b16 %v322
        %v404 = vunpack.c.l.b16 %v323
        %v405 = vunpack.c.l.b16 %v324
        %v406 = vunpack.c.l.b16 %v325
        %v407 = vunpack.c.l.b16 %v326
        %v408 = vunpack.c.l.b16 %v327
        %v409 = vunpack.c.l.b16 %v328
        %v410 = vunpack.c.l.b16 %v329
        %v411 = vunpack.c.l.b16 %v330
        %v412 = vunpack.c.l.b16 %v331
        %v413 = vunpack.c.l.b16 %v332
        %v414 = vunpack.c.l.b16 %v333
        %v415 = vunpack.c.l.b16 %v334
        %v416 = vunpack.c.l.b16 %v335
        %v417 = vunpack.c.l.b16 %v336
        %v418 = vunpack.c.l.b16 %v337
        %v419 = vunpack.c.l.b16 %v338
        %v420 = vunpack.c.l.b16 %v339
        %v421 = vunpack.c.l.b16 %v340
        %v422 = vunpack.c.l.b16 %v341
        %v423 = vunpack.c.l.b16 %v342
        %v424 = vunpack.c.l.b16 %v343
        %v425 = vunpack.c.l.b16 %v344
        %v426 = vunpack.c.l.b16 %v345
        %v427 = vunpack.c.l.b16 %v346
        %v428 = vunpack.c.l.b16 %v347
        %v429 = vunpack.c.l.b16 %v348
        %v430 = vunpack.c.l.b16 %v349
        %v431 = vunpack.c.l.b16 %v350
        %v432 = vpack.c.b16 %v401, %v400
        %v433 = vpack.c.b16 %v403, %v402
        %v434 = vpack.c.b16 %v405, %v404
        %v435 = vpack.c.b16 %v407, %v406
        %v436 = vpack.c.b16 %v409, %v408
        %v437 = vpack.c.b16 %v411, %v410
        %v438 = vpack.c.b16 %v413, %v412
        %v439 = vpack.c.b16 %v415, %v414
        %v440 = vpack.c.b16 %v417, %v416
        %v441 = vpack.c.b16 %v419, %v418
        %v442 = vpack.c.b16 %v421, %v420
        %v443 = vpack.c.b16 %v423, %v422
        %v444 = vpack.c.b16 %v425, %v424
        %v445 = vpack.c.b16 %v427, %v426
        %v446 = vpack.c.b16 %v429, %v428
        %v447 = vpack.c.b16 %v431, %v430
        %v480 = vunpack.c.l.b16 %v352
        %v481 = vunpack.c.l.b16 %v353
        %v482 = vunpack.c.l.b16 %v354
        %v483 = vunpack.c.l.b16 %v355
        %v484 = vunpack.c.l.b16 %v356
        %v485 = vunpack.c.l.b16 %v357
        %v486 = vunpack.c.l.b16 %v358
        %v487 = vunpack.c.l.b16 %v359
        %v488 = vunpack.c.l.b16 %v360
        %v489 = vunpack.c.l.b16 %v361
        %v490 = vunpack.c.l.b16 %v362
        %v491 = vunpack.c.l.b16 %v363
        %v492 = vunpack.c.l.b16 %v364
        %v493 = vunpack.c.l.b16 %v365
        %v494 = vunpack.c.l.b16 %v366
        %v495 = vunpack.c.l.b16 %v367
        %v496 = vpack.c.b16 %v481, %v480
        %v497 = vpack.c.b16 %v483, %v482
        %v498 = vpack.c.b16 %v485, %v484
        %v499 = vpack.c.b16 %v487, %v486
        %v500 = vpack.c.b16 %v489, %v488
        %v501 = vpack.c.b16 %v491, %v490
        %v502 = vpack.c.b16 %v493, %v492
        %v503 = vpack.c.b16 %v495, %v494
        %512 = vmatpush.bf16.msra.mxu0 %v503
        %513 = vmatpush.bf16.msra.mxu0 %v502
        %514 = vmatpush.bf16.msra.mxu0 %v501
        %515 = vmatpush.bf16.msra.mxu0 %v500
        %516 = vmatpush.bf16.msra.mxu0 %v499
        %517 = vmatpush.bf16.msra.mxu0 %v498
        %518 = vmatpush.bf16.msra.mxu0 %v497
        %519 = vmatpush.bf16.msra.mxu0 %v496
        %520 = vmatmul.bf16.gmra.mxu0 %v432
        %v521 = vpop.f32.mrf.mxu0
        %v522 = vadd.f32 0.0, %v521
        %v523 = vpop.f32.mrf.mxu0
        %v524 = vadd.f32 0.0, %v523
        %525 = vmatmul.bf16.gmra.mxu0 %v433
        %v526 = vpop.f32.mrf.mxu0
        %v527 = vadd.f32 0.0, %v526
        %v528 = vpop.f32.mrf.mxu0
        %v529 = vadd.f32 0.0, %v528
        %530 = vmatmul.bf16.gmra.mxu0 %v434
        %v531 = vpop.f32.mrf.mxu0
        %v532 = vadd.f32 0.0, %v531
        %v533 = vpop.f32.mrf.mxu0
        %v534 = vadd.f32 0.0, %v533
        %535 = vmatmul.bf16.gmra.mxu0 %v435
        %v536 = vpop.f32.mrf.mxu0
        %v537 = vadd.f32 0.0, %v536
        %v538 = vpop.f32.mrf.mxu0
        %v539 = vadd.f32 0.0, %v538
        %540 = vmatmul.bf16.gmra.mxu0 %v436
        %v541 = vpop.f32.mrf.mxu0
        %v542 = vadd.f32 0.0, %v541
        %v543 = vpop.f32.mrf.mxu0
        %v544 = vadd.f32 0.0, %v543
        %545 = vmatmul.bf16.gmra.mxu0 %v437
        %v546 = vpop.f32.mrf.mxu0
        %v547 = vadd.f32 0.0, %v546
        %v548 = vpop.f32.mrf.mxu0
        %v549 = vadd.f32 0.0, %v548
        %550 = vmatmul.bf16.gmra.mxu0 %v438
        %v551 = vpop.f32.mrf.mxu0
        %v552 = vadd.f32 0.0, %v551
        %v553 = vpop.f32.mrf.mxu0
        %v554 = vadd.f32 0.0, %v553
        %555 = vmatmul.bf16.gmra.mxu0 %v439
        %v556 = vpop.f32.mrf.mxu0
        %v557 = vadd.f32 0.0, %v556
        %v558 = vpop.f32.mrf.mxu0
        %v559 = vadd.f32 0.0, %v558
        %560 = vmatmul.bf16.gmra.mxu0 %v440
        %v561 = vpop.f32.mrf.mxu0
        %v562 = vadd.f32 0.0, %v561
        %v563 = vpop.f32.mrf.mxu0
        %v564 = vadd.f32 0.0, %v563
        %565 = vmatmul.bf16.gmra.mxu0 %v441
        %v566 = vpop.f32.mrf.mxu0
        %v567 = vadd.f32 0.0, %v566
        %v568 = vpop.f32.mrf.mxu0
        %v569 = vadd.f32 0.0, %v568
        %570 = vmatmul.bf16.gmra.mxu0 %v442
        %v571 = vpop.f32.mrf.mxu0
        %v572 = vadd.f32 0.0, %v571
        %v573 = vpop.f32.mrf.mxu0
        %v574 = vadd.f32 0.0, %v573
        %575 = vmatmul.bf16.gmra.mxu0 %v443
        %v576 = vpop.f32.mrf.mxu0
        %v577 = vadd.f32 0.0, %v576
        %v578 = vpop.f32.mrf.mxu0
        %v579 = vadd.f32 0.0, %v578
        %580 = vmatmul.bf16.gmra.mxu0 %v444
        %v581 = vpop.f32.mrf.mxu0
        %v582 = vadd.f32 0.0, %v581
        %v583 = vpop.f32.mrf.mxu0
        %v584 = vadd.f32 0.0, %v583
        %585 = vmatmul.bf16.gmra.mxu0 %v445
        %v586 = vpop.f32.mrf.mxu0
        %v587 = vadd.f32 0.0, %v586
        %v588 = vpop.f32.mrf.mxu0
        %v589 = vadd.f32 0.0, %v588
        %590 = vmatmul.bf16.gmra.mxu0 %v446
        %v591 = vpop.f32.mrf.mxu0
        %v592 = vadd.f32 0.0, %v591
        %v593 = vpop.f32.mrf.mxu0
        %v594 = vadd.f32 0.0, %v593
        %595 = vmatmul.bf16.gmra.mxu0 %v447
        %v596 = vpop.f32.mrf.mxu0
        %v597 = vadd.f32 0.0, %v596
        %v598 = vpop.f32.mrf.mxu0
        %v599 = vadd.f32 0.0, %v598
        %600 = vdwg.mxu0
        %v633 = vunpack.c.l.b16 %v267
        %v634 = vunpack.c.l.b16 %v268
        %v635 = vunpack.c.l.b16 %v269
        %v636 = vunpack.c.l.b16 %v270
        %v637 = vunpack.c.l.b16 %v271
        %v638 = vunpack.c.l.b16 %v272
        %v639 = vunpack.c.l.b16 %v273
        %v640 = vunpack.c.l.b16 %v274
        %v641 = vunpack.c.l.b16 %v275
        %v642 = vunpack.c.l.b16 %v276
        %v643 = vunpack.c.l.b16 %v277
        %v644 = vunpack.c.l.b16 %v278
        %v645 = vunpack.c.l.b16 %v279
        %v646 = vunpack.c.l.b16 %v280
        %v647 = vunpack.c.l.b16 %v281
        %v648 = vunpack.c.l.b16 %v282
        %v649 = vunpack.c.l.b16 %v283
        %v650 = vunpack.c.l.b16 %v284
        %v651 = vunpack.c.l.b16 %v285
        %v652 = vunpack.c.l.b16 %v286
        %v653 = vunpack.c.l.b16 %v287
        %v654 = vunpack.c.l.b16 %v288
        %v655 = vunpack.c.l.b16 %v289
        %v656 = vunpack.c.l.b16 %v290
        %v657 = vunpack.c.l.b16 %v291
        %v658 = vunpack.c.l.b16 %v292
        %v659 = vunpack.c.l.b16 %v293
        %v660 = vunpack.c.l.b16 %v294
        %v661 = vunpack.c.l.b16 %v295
        %v662 = vunpack.c.l.b16 %v296
        %v663 = vunpack.c.l.b16 %v297
        %v664 = vunpack.c.l.b16 %v298
        %v665 = vpack.c.b16 %v634, %v633
        %v666 = vpack.c.b16 %v636, %v635
        %v667 = vpack.c.b16 %v638, %v637
        %v668 = vpack.c.b16 %v640, %v639
        %v669 = vpack.c.b16 %v642, %v641
        %v670 = vpack.c.b16 %v644, %v643
        %v671 = vpack.c.b16 %v646, %v645
        %v672 = vpack.c.b16 %v648, %v647
        %v673 = vpack.c.b16 %v650, %v649
        %v674 = vpack.c.b16 %v652, %v651
        %v675 = vpack.c.b16 %v654, %v653
        %v676 = vpack.c.b16 %v656, %v655
        %v677 = vpack.c.b16 %v658, %v657
        %v678 = vpack.c.b16 %v660, %v659
        %v679 = vpack.c.b16 %v662, %v661
        %v680 = vpack.c.b16 %v664, %v663
        %v713 = vunpack.c.l.b16 %v299
        %v714 = vunpack.c.l.b16 %v300
        %v715 = vunpack.c.l.b16 %v301
        %v716 = vunpack.c.l.b16 %v302
        %v717 = vunpack.c.l.b16 %v303
        %v718 = vunpack.c.l.b16 %v304
        %v719 = vunpack.c.l.b16 %v305
        %v720 = vunpack.c.l.b16 %v306
        %v721 = vunpack.c.l.b16 %v307
        %v722 = vunpack.c.l.b16 %v308
        %v723 = vunpack.c.l.b16 %v309
        %v724 = vunpack.c.l.b16 %v310
        %v725 = vunpack.c.l.b16 %v311
        %v726 = vunpack.c.l.b16 %v312
        %v727 = vunpack.c.l.b16 %v313
        %v728 = vunpack.c.l.b16 %v314
        %v729 = vpack.c.b16 %v714, %v713
        %v730 = vpack.c.b16 %v716, %v715
        %v731 = vpack.c.b16 %v718, %v717
        %v732 = vpack.c.b16 %v720, %v719
        %v733 = vpack.c.b16 %v722, %v721
        %v734 = vpack.c.b16 %v724, %v723
        %v735 = vpack.c.b16 %v726, %v725
        %v736 = vpack.c.b16 %v728, %v727
        %745 = vmatpush.bf16.msra.mxu0 %v736
        %746 = vmatpush.bf16.msra.mxu0 %v735
        %747 = vmatpush.bf16.msra.mxu0 %v734
        %748 = vmatpush.bf16.msra.mxu0 %v733
        %749 = vmatpush.bf16.msra.mxu0 %v732
        %750 = vmatpush.bf16.msra.mxu0 %v731
        %751 = vmatpush.bf16.msra.mxu0 %v730
        %752 = vmatpush.bf16.msra.mxu0 %v729
        %753 = vmatmul.bf16.gmra.mxu0 %v665
        %v754 = vpop.f32.mrf.mxu0
        %v755 = vadd.f32 %v522, %v754
        %v756 = vpop.f32.mrf.mxu0
        %v757 = vadd.f32 %v524, %v756
        %758 = vmatmul.bf16.gmra.mxu0 %v666
        %v759 = vpop.f32.mrf.mxu0
        %v760 = vadd.f32 %v527, %v759
        %v761 = vpop.f32.mrf.mxu0
        %v762 = vadd.f32 %v529, %v761
        %763 = vmatmul.bf16.gmra.mxu0 %v667
        %v764 = vpop.f32.mrf.mxu0
        %v765 = vadd.f32 %v532, %v764
        %v766 = vpop.f32.mrf.mxu0
        %v767 = vadd.f32 %v534, %v766
        %768 = vmatmul.bf16.gmra.mxu0 %v668
        %v769 = vpop.f32.mrf.mxu0
        %v770 = vadd.f32 %v537, %v769
        %v771 = vpop.f32.mrf.mxu0
        %v772 = vadd.f32 %v539, %v771
        %773 = vmatmul.bf16.gmra.mxu0 %v669
        %v774 = vpop.f32.mrf.mxu0
        %v775 = vadd.f32 %v542, %v774
        %v776 = vpop.f32.mrf.mxu0
        %v777 = vadd.f32 %v544, %v776
        %778 = vmatmul.bf16.gmra.mxu0 %v670
        %v779 = vpop.f32.mrf.mxu0
        %v780 = vadd.f32 %v547, %v779
        %v781 = vpop.f32.mrf.mxu0
        %v782 = vadd.f32 %v549, %v781
        %783 = vmatmul.bf16.gmra.mxu0 %v671
        %v784 = vpop.f32.mrf.mxu0
        %v785 = vadd.f32 %v552, %v784
        %v786 = vpop.f32.mrf.mxu0
        %v787 = vadd.f32 %v554, %v786
        %788 = vmatmul.bf16.gmra.mxu0 %v672
        %v789 = vpop.f32.mrf.mxu0
        %v790 = vadd.f32 %v557, %v789
        %v791 = vpop.f32.mrf.mxu0
        %v792 = vadd.f32 %v559, %v791
        %793 = vmatmul.bf16.gmra.mxu0 %v673
        %v794 = vpop.f32.mrf.mxu0
        %v795 = vadd.f32 %v562, %v794
        %v796 = vpop.f32.mrf.mxu0
        %v797 = vadd.f32 %v564, %v796
        %798 = vmatmul.bf16.gmra.mxu0 %v674
        %v799 = vpop.f32.mrf.mxu0
        %v800 = vadd.f32 %v567, %v799
        %v801 = vpop.f32.mrf.mxu0
        %v802 = vadd.f32 %v569, %v801
        %803 = vmatmul.bf16.gmra.mxu0 %v675
        %v804 = vpop.f32.mrf.mxu0
        %v805 = vadd.f32 %v572, %v804
        %v806 = vpop.f32.mrf.mxu0
        %v807 = vadd.f32 %v574, %v806
        %808 = vmatmul.bf16.gmra.mxu0 %v676
        %v809 = vpop.f32.mrf.mxu0
        %v810 = vadd.f32 %v577, %v809
        %v811 = vpop.f32.mrf.mxu0
        %v812 = vadd.f32 %v579, %v811
        %813 = vmatmul.bf16.gmra.mxu0 %v677
        %v814 = vpop.f32.mrf.mxu0
        %v815 = vadd.f32 %v582, %v814
        %v816 = vpop.f32.mrf.mxu0
        %v817 = vadd.f32 %v584, %v816
        %818 = vmatmul.bf16.gmra.mxu0 %v678
        %v819 = vpop.f32.mrf.mxu0
        %v820 = vadd.f32 %v587, %v819
        %v821 = vpop.f32.mrf.mxu0
        %v822 = vadd.f32 %v589, %v821
        %823 = vmatmul.bf16.gmra.mxu0 %v679
        %v824 = vpop.f32.mrf.mxu0
        %v825 = vadd.f32 %v592, %v824
        %v826 = vpop.f32.mrf.mxu0
        %v827 = vadd.f32 %v594, %v826
        %828 = vmatmul.bf16.gmra.mxu0 %v680
        %v829 = vpop.f32.mrf.mxu0
        %v830 = vadd.f32 %v597, %v829
        %v831 = vpop.f32.mrf.mxu0
        %v832 = vadd.f32 %v599, %v831
        %833 = vdwg.mxu0
        %s834 = sadd.s32 %s263, 2
        %s835 = smul.u32 %s834, 2
        %s836 = smul.addr %s835, 4
        %s837 = scalar_lea.vmem %s226, %s836 [#allocation2]
        %v838 = vld [vmem:[%s837] sm:$0xf]
        %v839 = vld [vmem:[%s837 + $0x4] sm:$0xf]
        %v840 = vld [vmem:[%s837 + $0x8] sm:$0xf]
        %v841 = vld [vmem:[%s837 + $0xc] sm:$0xf]
        %v842 = vld [vmem:[%s837 + $0x10] sm:$0xf]
        %v843 = vld [vmem:[%s837 + $0x14] sm:$0xf]
        %v844 = vld [vmem:[%s837 + $0x18] sm:$0xf]
        %v845 = vld [vmem:[%s837 + $0x1c] sm:$0xf]
        %v846 = vld [vmem:[%s837 + $0x20] sm:$0xf]
        %v847 = vld [vmem:[%s837 + $0x24] sm:$0xf]
        %v848 = vld [vmem:[%s837 + $0x28] sm:$0xf]
        %v849 = vld [vmem:[%s837 + $0x2c] sm:$0xf]
        %v850 = vld [vmem:[%s837 + $0x30] sm:$0xf]
        %v851 = vld [vmem:[%s837 + $0x34] sm:$0xf]
        %v852 = vld [vmem:[%s837 + $0x38] sm:$0xf]
        %v853 = vld [vmem:[%s837 + $0x3c] sm:$0xf]
        %v854 = vld [vmem:[%s837 + $0x40] sm:$0xf]
        %v855 = vld [vmem:[%s837 + $0x44] sm:$0xf]
        %v856 = vld [vmem:[%s837 + $0x48] sm:$0xf]
        %v857 = vld [vmem:[%s837 + $0x4c] sm:$0xf]
        %v858 = vld [vmem:[%s837 + $0x50] sm:$0xf]
        %v859 = vld [vmem:[%s837 + $0x54] sm:$0xf]
        %v860 = vld [vmem:[%s837 + $0x58] sm:$0xf]
        %v861 = vld [vmem:[%s837 + $0x5c] sm:$0xf]
        %v862 = vld [vmem:[%s837 + $0x60] sm:$0xf]
        %v863 = vld [vmem:[%s837 + $0x64] sm:$0xf]
        %v864 = vld [vmem:[%s837 + $0x68] sm:$0xf]
        %v865 = vld [vmem:[%s837 + $0x6c] sm:$0xf]
        %v866 = vld [vmem:[%s837 + $0x70] sm:$0xf]
        %v867 = vld [vmem:[%s837 + $0x74] sm:$0xf]
        %v868 = vld [vmem:[%s837 + $0x78] sm:$0xf]
        %v869 = vld [vmem:[%s837 + $0x7c] sm:$0xf]
        %s870 = scalar_lea.vmem [#allocation5], 128
        %v871 = vld [vmem:[%s870] sm:$0xf]
        %v872 = vld [vmem:[%s870 + $0x4] sm:$0xf]
        %v873 = vld [vmem:[%s870 + $0x8] sm:$0xf]
        %v874 = vld [vmem:[%s870 + $0xc] sm:$0xf]
        %v875 = vld [vmem:[%s870 + $0x10] sm:$0xf]
        %v876 = vld [vmem:[%s870 + $0x14] sm:$0xf]
        %v877 = vld [vmem:[%s870 + $0x18] sm:$0xf]
        %v878 = vld [vmem:[%s870 + $0x1c] sm:$0xf]
        %v879 = vld [vmem:[%s870 + $0x20] sm:$0xf]
        %v880 = vld [vmem:[%s870 + $0x24] sm:$0xf]
        %v881 = vld [vmem:[%s870 + $0x28] sm:$0xf]
        %v882 = vld [vmem:[%s870 + $0x2c] sm:$0xf]
        %v883 = vld [vmem:[%s870 + $0x30] sm:$0xf]
        %v884 = vld [vmem:[%s870 + $0x34] sm:$0xf]
        %v885 = vld [vmem:[%s870 + $0x38] sm:$0xf]
        %v886 = vld [vmem:[%s870 + $0x3c] sm:$0xf]
        %v919 = vunpack.c.l.b16 %v838
        %v920 = vunpack.c.l.b16 %v839
        %v921 = vunpack.c.l.b16 %v840
        %v922 = vunpack.c.l.b16 %v841
        %v923 = vunpack.c.l.b16 %v842
        %v924 = vunpack.c.l.b16 %v843
        %v925 = vunpack.c.l.b16 %v844
        %v926 = vunpack.c.l.b16 %v845
        %v927 = vunpack.c.l.b16 %v846
        %v928 = vunpack.c.l.b16 %v847
        %v929 = vunpack.c.l.b16 %v848
        %v930 = vunpack.c.l.b16 %v849
        %v931 = vunpack.c.l.b16 %v850
        %v932 = vunpack.c.l.b16 %v851
        %v933 = vunpack.c.l.b16 %v852
        %v934 = vunpack.c.l.b16 %v853
        %v935 = vunpack.c.l.b16 %v854
        %v936 = vunpack.c.l.b16 %v855
        %v937 = vunpack.c.l.b16 %v856
        %v938 = vunpack.c.l.b16 %v857
        %v939 = vunpack.c.l.b16 %v858
        %v940 = vunpack.c.l.b16 %v859
        %v941 = vunpack.c.l.b16 %v860
        %v942 = vunpack.c.l.b16 %v861
        %v943 = vunpack.c.l.b16 %v862
        %v944 = vunpack.c.l.b16 %v863
        %v945 = vunpack.c.l.b16 %v864
        %v946 = vunpack.c.l.b16 %v865
        %v947 = vunpack.c.l.b16 %v866
        %v948 = vunpack.c.l.b16 %v867
        %v949 = vunpack.c.l.b16 %v868
        %v950 = vunpack.c.l.b16 %v869
        %v951 = vpack.c.b16 %v920, %v919
        %v952 = vpack.c.b16 %v922, %v921
        %v953 = vpack.c.b16 %v924, %v923
        %v954 = vpack.c.b16 %v926, %v925
        %v955 = vpack.c.b16 %v928, %v927
        %v956 = vpack.c.b16 %v930, %v929
        %v957 = vpack.c.b16 %v932, %v931
        %v958 = vpack.c.b16 %v934, %v933
        %v959 = vpack.c.b16 %v936, %v935
        %v960 = vpack.c.b16 %v938, %v937
        %v961 = vpack.c.b16 %v940, %v939
        %v962 = vpack.c.b16 %v942, %v941
        %v963 = vpack.c.b16 %v944, %v943
        %v964 = vpack.c.b16 %v946, %v945
        %v965 = vpack.c.b16 %v948, %v947
        %v966 = vpack.c.b16 %v950, %v949
        %v999 = vunpack.c.l.b16 %v871
        %v1000 = vunpack.c.l.b16 %v872
        %v1001 = vunpack.c.l.b16 %v873
        %v1002 = vunpack.c.l.b16 %v874
        %v1003 = vunpack.c.l.b16 %v875
        %v1004 = vunpack.c.l.b16 %v876
        %v1005 = vunpack.c.l.b16 %v877
        %v1006 = vunpack.c.l.b16 %v878
        %v1007 = vunpack.c.l.b16 %v879
        %v1008 = vunpack.c.l.b16 %v880
        %v1009 = vunpack.c.l.b16 %v881
        %v1010 = vunpack.c.l.b16 %v882
        %v1011 = vunpack.c.l.b16 %v883
        %v1012 = vunpack.c.l.b16 %v884
        %v1013 = vunpack.c.l.b16 %v885
        %v1014 = vunpack.c.l.b16 %v886
        %v1015 = vpack.c.b16 %v1000, %v999
        %v1016 = vpack.c.b16 %v1002, %v1001
        %v1017 = vpack.c.b16 %v1004, %v1003
        %v1018 = vpack.c.b16 %v1006, %v1005
        %v1019 = vpack.c.b16 %v1008, %v1007
        %v1020 = vpack.c.b16 %v1010, %v1009
        %v1021 = vpack.c.b16 %v1012, %v1011
        %v1022 = vpack.c.b16 %v1014, %v1013
        %1031 = vmatpush.bf16.msra.mxu0 %v1022
        %1032 = vmatpush.bf16.msra.mxu0 %v1021
        %1033 = vmatpush.bf16.msra.mxu0 %v1020
        %1034 = vmatpush.bf16.msra.mxu0 %v1019
        %1035 = vmatpush.bf16.msra.mxu0 %v1018
        %1036 = vmatpush.bf16.msra.mxu0 %v1017
        %1037 = vmatpush.bf16.msra.mxu0 %v1016
        %1038 = vmatpush.bf16.msra.mxu0 %v1015
        %1039 = vmatmul.bf16.gmra.mxu0 %v951
        %v1040 = vpop.f32.mrf.mxu0
        %v1041 = vadd.f32 0.0, %v1040
        %v1042 = vpop.f32.mrf.mxu0
        %v1043 = vadd.f32 0.0, %v1042
        %1044 = vmatmul.bf16.gmra.mxu0 %v952
        %v1045 = vpop.f32.mrf.mxu0
        %v1046 = vadd.f32 0.0, %v1045
        %v1047 = vpop.f32.mrf.mxu0
        %v1048 = vadd.f32 0.0, %v1047
        %1049 = vmatmul.bf16.gmra.mxu0 %v953
        %v1050 = vpop.f32.mrf.mxu0
        %v1051 = vadd.f32 0.0, %v1050
        %v1052 = vpop.f32.mrf.mxu0
        %v1053 = vadd.f32 0.0, %v1052
        %1054 = vmatmul.bf16.gmra.mxu0 %v954
        %v1055 = vpop.f32.mrf.mxu0
        %v1056 = vadd.f32 0.0, %v1055
        %v1057 = vpop.f32.mrf.mxu0
        %v1058 = vadd.f32 0.0, %v1057
        %1059 = vmatmul.bf16.gmra.mxu0 %v955
        %v1060 = vpop.f32.mrf.mxu0
        %v1061 = vadd.f32 0.0, %v1060
        %v1062 = vpop.f32.mrf.mxu0
        %v1063 = vadd.f32 0.0, %v1062
        %1064 = vmatmul.bf16.gmra.mxu0 %v956
        %v1065 = vpop.f32.mrf.mxu0
        %v1066 = vadd.f32 0.0, %v1065
        %v1067 = vpop.f32.mrf.mxu0
        %v1068 = vadd.f32 0.0, %v1067
        %1069 = vmatmul.bf16.gmra.mxu0 %v957
        %v1070 = vpop.f32.mrf.mxu0
        %v1071 = vadd.f32 0.0, %v1070
        %v1072 = vpop.f32.mrf.mxu0
        %v1073 = vadd.f32 0.0, %v1072
        %1074 = vmatmul.bf16.gmra.mxu0 %v958
        %v1075 = vpop.f32.mrf.mxu0
        %v1076 = vadd.f32 0.0, %v1075
        %v1077 = vpop.f32.mrf.mxu0
        %v1078 = vadd.f32 0.0, %v1077
        %1079 = vmatmul.bf16.gmra.mxu0 %v959
        %v1080 = vpop.f32.mrf.mxu0
        %v1081 = vadd.f32 0.0, %v1080
        %v1082 = vpop.f32.mrf.mxu0
        %v1083 = vadd.f32 0.0, %v1082
        %1084 = vmatmul.bf16.gmra.mxu0 %v960
        %v1085 = vpop.f32.mrf.mxu0
        %v1086 = vadd.f32 0.0, %v1085
        %v1087 = vpop.f32.mrf.mxu0
        %v1088 = vadd.f32 0.0, %v1087
        %1089 = vmatmul.bf16.gmra.mxu0 %v961
        %v1090 = vpop.f32.mrf.mxu0
        %v1091 = vadd.f32 0.0, %v1090
        %v1092 = vpop.f32.mrf.mxu0
        %v1093 = vadd.f32 0.0, %v1092
        %1094 = vmatmul.bf16.gmra.mxu0 %v962
        %v1095 = vpop.f32.mrf.mxu0
        %v1096 = vadd.f32 0.0, %v1095
        %v1097 = vpop.f32.mrf.mxu0
        %v1098 = vadd.f32 0.0, %v1097
        %1099 = vmatmul.bf16.gmra.mxu0 %v963
        %v1100 = vpop.f32.mrf.mxu0
        %v1101 = vadd.f32 0.0, %v1100
        %v1102 = vpop.f32.mrf.mxu0
        %v1103 = vadd.f32 0.0, %v1102
        %1104 = vmatmul.bf16.gmra.mxu0 %v964
        %v1105 = vpop.f32.mrf.mxu0
        %v1106 = vadd.f32 0.0, %v1105
        %v1107 = vpop.f32.mrf.mxu0
        %v1108 = vadd.f32 0.0, %v1107
        %1109 = vmatmul.bf16.gmra.mxu0 %v965
        %v1110 = vpop.f32.mrf.mxu0
        %v1111 = vadd.f32 0.0, %v1110
        %v1112 = vpop.f32.mrf.mxu0
        %v1113 = vadd.f32 0.0, %v1112
        %1114 = vmatmul.bf16.gmra.mxu0 %v966
        %v1115 = vpop.f32.mrf.mxu0
        %v1116 = vadd.f32 0.0, %v1115
        %v1117 = vpop.f32.mrf.mxu0
        %v1118 = vadd.f32 0.0, %v1117
        %1119 = vdwg.mxu0
        %v1120 = vadd.f32 %v755, %v1041
        %v1121 = vadd.f32 %v757, %v1043
        %v1122 = vadd.f32 %v760, %v1046
        %v1123 = vadd.f32 %v762, %v1048
        %v1124 = vadd.f32 %v765, %v1051
        %v1125 = vadd.f32 %v767, %v1053
        %v1126 = vadd.f32 %v770, %v1056
        %v1127 = vadd.f32 %v772, %v1058
        %v1128 = vadd.f32 %v775, %v1061
        %v1129 = vadd.f32 %v777, %v1063
        %v1130 = vadd.f32 %v780, %v1066
        %v1131 = vadd.f32 %v782, %v1068
        %v1132 = vadd.f32 %v785, %v1071
        %v1133 = vadd.f32 %v787, %v1073
        %v1134 = vadd.f32 %v790, %v1076
        %v1135 = vadd.f32 %v792, %v1078
        %v1136 = vadd.f32 %v795, %v1081
        %v1137 = vadd.f32 %v797, %v1083
        %v1138 = vadd.f32 %v800, %v1086
        %v1139 = vadd.f32 %v802, %v1088
        %v1140 = vadd.f32 %v805, %v1091
        %v1141 = vadd.f32 %v807, %v1093
        %v1142 = vadd.f32 %v810, %v1096
        %v1143 = vadd.f32 %v812, %v1098
        %v1144 = vadd.f32 %v815, %v1101
        %v1145 = vadd.f32 %v817, %v1103
        %v1146 = vadd.f32 %v820, %v1106
        %v1147 = vadd.f32 %v822, %v1108
        %v1148 = vadd.f32 %v825, %v1111
        %v1149 = vadd.f32 %v827, %v1113
        %v1150 = vadd.f32 %v830, %v1116
        %v1151 = vadd.f32 %v832, %v1118
        %s1152 = sadd.s32 %s263, 3
        %s1153 = smul.u32 %s1152, 2
        %s1154 = smul.addr %s1153, 4
        %s1155 = scalar_lea.vmem %s226, %s1154 [#allocation2]
        %v1156 = vld [vmem:[%s1155] sm:$0xf]
        %v1157 = vld [vmem:[%s1155 + $0x4] sm:$0xf]
        %v1158 = vld [vmem:[%s1155 + $0x8] sm:$0xf]
        %v1159 = vld [vmem:[%s1155 + $0xc] sm:$0xf]
        %v1160 = vld [vmem:[%s1155 + $0x10] sm:$0xf]
        %v1161 = vld [vmem:[%s1155 + $0x14] sm:$0xf]
        %v1162 = vld [vmem:[%s1155 + $0x18] sm:$0xf]
        %v1163 = vld [vmem:[%s1155 + $0x1c] sm:$0xf]
        %v1164 = vld [vmem:[%s1155 + $0x20] sm:$0xf]
        %v1165 = vld [vmem:[%s1155 + $0x24] sm:$0xf]
        %v1166 = vld [vmem:[%s1155 + $0x28] sm:$0xf]
        %v1167 = vld [vmem:[%s1155 + $0x2c] sm:$0xf]
        %v1168 = vld [vmem:[%s1155 + $0x30] sm:$0xf]
        %v1169 = vld [vmem:[%s1155 + $0x34] sm:$0xf]
        %v1170 = vld [vmem:[%s1155 + $0x38] sm:$0xf]
        %v1171 = vld [vmem:[%s1155 + $0x3c] sm:$0xf]
        %v1172 = vld [vmem:[%s1155 + $0x40] sm:$0xf]
        %v1173 = vld [vmem:[%s1155 + $0x44] sm:$0xf]
        %v1174 = vld [vmem:[%s1155 + $0x48] sm:$0xf]
        %v1175 = vld [vmem:[%s1155 + $0x4c] sm:$0xf]
        %v1176 = vld [vmem:[%s1155 + $0x50] sm:$0xf]
        %v1177 = vld [vmem:[%s1155 + $0x54] sm:$0xf]
        %v1178 = vld [vmem:[%s1155 + $0x58] sm:$0xf]
        %v1179 = vld [vmem:[%s1155 + $0x5c] sm:$0xf]
        %v1180 = vld [vmem:[%s1155 + $0x60] sm:$0xf]
        %v1181 = vld [vmem:[%s1155 + $0x64] sm:$0xf]
        %v1182 = vld [vmem:[%s1155 + $0x68] sm:$0xf]
        %v1183 = vld [vmem:[%s1155 + $0x6c] sm:$0xf]
        %v1184 = vld [vmem:[%s1155 + $0x70] sm:$0xf]
        %v1185 = vld [vmem:[%s1155 + $0x74] sm:$0xf]
        %v1186 = vld [vmem:[%s1155 + $0x78] sm:$0xf]
        %v1187 = vld [vmem:[%s1155 + $0x7c] sm:$0xf]
        %s1188 = scalar_lea.vmem [#allocation5], 192
        %v1189 = vld [vmem:[%s1188] sm:$0xf]
        %v1190 = vld [vmem:[%s1188 + $0x4] sm:$0xf]
        %v1191 = vld [vmem:[%s1188 + $0x8] sm:$0xf]
        %v1192 = vld [vmem:[%s1188 + $0xc] sm:$0xf]
        %v1193 = vld [vmem:[%s1188 + $0x10] sm:$0xf]
        %v1194 = vld [vmem:[%s1188 + $0x14] sm:$0xf]
        %v1195 = vld [vmem:[%s1188 + $0x18] sm:$0xf]
        %v1196 = vld [vmem:[%s1188 + $0x1c] sm:$0xf]
        %v1197 = vld [vmem:[%s1188 + $0x20] sm:$0xf]
        %v1198 = vld [vmem:[%s1188 + $0x24] sm:$0xf]
        %v1199 = vld [vmem:[%s1188 + $0x28] sm:$0xf]
        %v1200 = vld [vmem:[%s1188 + $0x2c] sm:$0xf]
        %v1201 = vld [vmem:[%s1188 + $0x30] sm:$0xf]
        %v1202 = vld [vmem:[%s1188 + $0x34] sm:$0xf]
        %v1203 = vld [vmem:[%s1188 + $0x38] sm:$0xf]
        %v1204 = vld [vmem:[%s1188 + $0x3c] sm:$0xf]
        %v1237 = vunpack.c.l.b16 %v1156
        %v1238 = vunpack.c.l.b16 %v1157
        %v1239 = vunpack.c.l.b16 %v1158
        %v1240 = vunpack.c.l.b16 %v1159
        %v1241 = vunpack.c.l.b16 %v1160
        %v1242 = vunpack.c.l.b16 %v1161
        %v1243 = vunpack.c.l.b16 %v1162
        %v1244 = vunpack.c.l.b16 %v1163
        %v1245 = vunpack.c.l.b16 %v1164
        %v1246 = vunpack.c.l.b16 %v1165
        %v1247 = vunpack.c.l.b16 %v1166
        %v1248 = vunpack.c.l.b16 %v1167
        %v1249 = vunpack.c.l.b16 %v1168
        %v1250 = vunpack.c.l.b16 %v1169
        %v1251 = vunpack.c.l.b16 %v1170
        %v1252 = vunpack.c.l.b16 %v1171
        %v1253 = vunpack.c.l.b16 %v1172
        %v1254 = vunpack.c.l.b16 %v1173
        %v1255 = vunpack.c.l.b16 %v1174
        %v1256 = vunpack.c.l.b16 %v1175
        %v1257 = vunpack.c.l.b16 %v1176
        %v1258 = vunpack.c.l.b16 %v1177
        %v1259 = vunpack.c.l.b16 %v1178
        %v1260 = vunpack.c.l.b16 %v1179
        %v1261 = vunpack.c.l.b16 %v1180
        %v1262 = vunpack.c.l.b16 %v1181
        %v1263 = vunpack.c.l.b16 %v1182
        %v1264 = vunpack.c.l.b16 %v1183
        %v1265 = vunpack.c.l.b16 %v1184
        %v1266 = vunpack.c.l.b16 %v1185
        %v1267 = vunpack.c.l.b16 %v1186
        %v1268 = vunpack.c.l.b16 %v1187
        %v1269 = vpack.c.b16 %v1238, %v1237
        %v1270 = vpack.c.b16 %v1240, %v1239
        %v1271 = vpack.c.b16 %v1242, %v1241
        %v1272 = vpack.c.b16 %v1244, %v1243
        %v1273 = vpack.c.b16 %v1246, %v1245
        %v1274 = vpack.c.b16 %v1248, %v1247
        %v1275 = vpack.c.b16 %v1250, %v1249
        %v1276 = vpack.c.b16 %v1252, %v1251
        %v1277 = vpack.c.b16 %v1254, %v1253
        %v1278 = vpack.c.b16 %v1256, %v1255
        %v1279 = vpack.c.b16 %v1258, %v1257
        %v1280 = vpack.c.b16 %v1260, %v1259
        %v1281 = vpack.c.b16 %v1262, %v1261
        %v1282 = vpack.c.b16 %v1264, %v1263
        %v1283 = vpack.c.b16 %v1266, %v1265
        %v1284 = vpack.c.b16 %v1268, %v1267
        %v1317 = vunpack.c.l.b16 %v1189
        %v1318 = vunpack.c.l.b16 %v1190
        %v1319 = vunpack.c.l.b16 %v1191
        %v1320 = vunpack.c.l.b16 %v1192
        %v1321 = vunpack.c.l.b16 %v1193
        %v1322 = vunpack.c.l.b16 %v1194
        %v1323 = vunpack.c.l.b16 %v1195
        %v1324 = vunpack.c.l.b16 %v1196
        %v1325 = vunpack.c.l.b16 %v1197
        %v1326 = vunpack.c.l.b16 %v1198
        %v1327 = vunpack.c.l.b16 %v1199
        %v1328 = vunpack.c.l.b16 %v1200
        %v1329 = vunpack.c.l.b16 %v1201
        %v1330 = vunpack.c.l.b16 %v1202
        %v1331 = vunpack.c.l.b16 %v1203
        %v1332 = vunpack.c.l.b16 %v1204
        %v1333 = vpack.c.b16 %v1318, %v1317
        %v1334 = vpack.c.b16 %v1320, %v1319
        %v1335 = vpack.c.b16 %v1322, %v1321
        %v1336 = vpack.c.b16 %v1324, %v1323
        %v1337 = vpack.c.b16 %v1326, %v1325
        %v1338 = vpack.c.b16 %v1328, %v1327
        %v1339 = vpack.c.b16 %v1330, %v1329
        %v1340 = vpack.c.b16 %v1332, %v1331
        %1349 = vmatpush.bf16.msra.mxu0 %v1340
        %1350 = vmatpush.bf16.msra.mxu0 %v1339
        %1351 = vmatpush.bf16.msra.mxu0 %v1338
        %1352 = vmatpush.bf16.msra.mxu0 %v1337
        %1353 = vmatpush.bf16.msra.mxu0 %v1336
        %1354 = vmatpush.bf16.msra.mxu0 %v1335
        %1355 = vmatpush.bf16.msra.mxu0 %v1334
        %1356 = vmatpush.bf16.msra.mxu0 %v1333
        %1357 = vmatmul.bf16.gmra.mxu0 %v1269
        %v1358 = vpop.f32.mrf.mxu0
        %v1359 = vadd.f32 0.0, %v1358
        %v1360 = vpop.f32.mrf.mxu0
        %v1361 = vadd.f32 0.0, %v1360
        %1362 = vmatmul.bf16.gmra.mxu0 %v1270
        %v1363 = vpop.f32.mrf.mxu0
        %v1364 = vadd.f32 0.0, %v1363
        %v1365 = vpop.f32.mrf.mxu0
        %v1366 = vadd.f32 0.0, %v1365
        %1367 = vmatmul.bf16.gmra.mxu0 %v1271
        %v1368 = vpop.f32.mrf.mxu0
        %v1369 = vadd.f32 0.0, %v1368
        %v1370 = vpop.f32.mrf.mxu0
        %v1371 = vadd.f32 0.0, %v1370
        %1372 = vmatmul.bf16.gmra.mxu0 %v1272
        %v1373 = vpop.f32.mrf.mxu0
        %v1374 = vadd.f32 0.0, %v1373
        %v1375 = vpop.f32.mrf.mxu0
        %v1376 = vadd.f32 0.0, %v1375
        %1377 = vmatmul.bf16.gmra.mxu0 %v1273
        %v1378 = vpop.f32.mrf.mxu0
        %v1379 = vadd.f32 0.0, %v1378
        %v1380 = vpop.f32.mrf.mxu0
        %v1381 = vadd.f32 0.0, %v1380
        %1382 = vmatmul.bf16.gmra.mxu0 %v1274
        %v1383 = vpop.f32.mrf.mxu0
        %v1384 = vadd.f32 0.0, %v1383
        %v1385 = vpop.f32.mrf.mxu0
        %v1386 = vadd.f32 0.0, %v1385
        %1387 = vmatmul.bf16.gmra.mxu0 %v1275
        %v1388 = vpop.f32.mrf.mxu0
        %v1389 = vadd.f32 0.0, %v1388
        %v1390 = vpop.f32.mrf.mxu0
        %v1391 = vadd.f32 0.0, %v1390
        %1392 = vmatmul.bf16.gmra.mxu0 %v1276
        %v1393 = vpop.f32.mrf.mxu0
        %v1394 = vadd.f32 0.0, %v1393
        %v1395 = vpop.f32.mrf.mxu0
        %v1396 = vadd.f32 0.0, %v1395
        %1397 = vmatmul.bf16.gmra.mxu0 %v1277
        %v1398 = vpop.f32.mrf.mxu0
        %v1399 = vadd.f32 0.0, %v1398
        %v1400 = vpop.f32.mrf.mxu0
        %v1401 = vadd.f32 0.0, %v1400
        %1402 = vmatmul.bf16.gmra.mxu0 %v1278
        %v1403 = vpop.f32.mrf.mxu0
        %v1404 = vadd.f32 0.0, %v1403
        %v1405 = vpop.f32.mrf.mxu0
        %v1406 = vadd.f32 0.0, %v1405
        %1407 = vmatmul.bf16.gmra.mxu0 %v1279
        %v1408 = vpop.f32.mrf.mxu0
        %v1409 = vadd.f32 0.0, %v1408
        %v1410 = vpop.f32.mrf.mxu0
        %v1411 = vadd.f32 0.0, %v1410
        %1412 = vmatmul.bf16.gmra.mxu0 %v1280
        %v1413 = vpop.f32.mrf.mxu0
        %v1414 = vadd.f32 0.0, %v1413
        %v1415 = vpop.f32.mrf.mxu0
        %v1416 = vadd.f32 0.0, %v1415
        %1417 = vmatmul.bf16.gmra.mxu0 %v1281
        %v1418 = vpop.f32.mrf.mxu0
        %v1419 = vadd.f32 0.0, %v1418
        %v1420 = vpop.f32.mrf.mxu0
        %v1421 = vadd.f32 0.0, %v1420
        %1422 = vmatmul.bf16.gmra.mxu0 %v1282
        %v1423 = vpop.f32.mrf.mxu0
        %v1424 = vadd.f32 0.0, %v1423
        %v1425 = vpop.f32.mrf.mxu0
        %v1426 = vadd.f32 0.0, %v1425
        %1427 = vmatmul.bf16.gmra.mxu0 %v1283
        %v1428 = vpop.f32.mrf.mxu0
        %v1429 = vadd.f32 0.0, %v1428
        %v1430 = vpop.f32.mrf.mxu0
        %v1431 = vadd.f32 0.0, %v1430
        %1432 = vmatmul.bf16.gmra.mxu0 %v1284
        %v1433 = vpop.f32.mrf.mxu0
        %v1434 = vadd.f32 0.0, %v1433
        %v1435 = vpop.f32.mrf.mxu0
        %v1436 = vadd.f32 0.0, %v1435
        %1437 = vdwg.mxu0
        %v1438 = vadd.f32 %v1120, %v1359
        %v1439 = vadd.f32 %v1121, %v1361
        %v1440 = vadd.f32 %v1122, %v1364
        %v1441 = vadd.f32 %v1123, %v1366
        %v1442 = vadd.f32 %v1124, %v1369
        %v1443 = vadd.f32 %v1125, %v1371
        %v1444 = vadd.f32 %v1126, %v1374
        %v1445 = vadd.f32 %v1127, %v1376
        %v1446 = vadd.f32 %v1128, %v1379
        %v1447 = vadd.f32 %v1129, %v1381
        %v1448 = vadd.f32 %v1130, %v1384
        %v1449 = vadd.f32 %v1131, %v1386
        %v1450 = vadd.f32 %v1132, %v1389
        %v1451 = vadd.f32 %v1133, %v1391
        %v1452 = vadd.f32 %v1134, %v1394
        %v1453 = vadd.f32 %v1135, %v1396
        %v1454 = vadd.f32 %v1136, %v1399
        %v1455 = vadd.f32 %v1137, %v1401
        %v1456 = vadd.f32 %v1138, %v1404
        %v1457 = vadd.f32 %v1139, %v1406
        %v1458 = vadd.f32 %v1140, %v1409
        %v1459 = vadd.f32 %v1141, %v1411
        %v1460 = vadd.f32 %v1142, %v1414
        %v1461 = vadd.f32 %v1143, %v1416
        %v1462 = vadd.f32 %v1144, %v1419
        %v1463 = vadd.f32 %v1145, %v1421
        %v1464 = vadd.f32 %v1146, %v1424
        %v1465 = vadd.f32 %v1147, %v1426
        %v1466 = vadd.f32 %v1148, %v1429
        %v1467 = vadd.f32 %v1149, %v1431
        %v1468 = vadd.f32 %v1150, %v1434
        %v1469 = vadd.f32 %v1151, %v1436
        %s1470 = sadd.s32 %s263, 4
        %s1471 = smul.u32 %s1470, 2
        %s1472 = smul.addr %s1471, 4
        %s1473 = scalar_lea.vmem %s226, %s1472 [#allocation2]
        %v1474 = vld [vmem:[%s1473] sm:$0xf]
        %v1475 = vld [vmem:[%s1473 + $0x4] sm:$0xf]
        %v1476 = vld [vmem:[%s1473 + $0x8] sm:$0xf]
        %v1477 = vld [vmem:[%s1473 + $0xc] sm:$0xf]
        %v1478 = vld [vmem:[%s1473 + $0x10] sm:$0xf]
        %v1479 = vld [vmem:[%s1473 + $0x14] sm:$0xf]
        %v1480 = vld [vmem:[%s1473 + $0x18] sm:$0xf]
        %v1481 = vld [vmem:[%s1473 + $0x1c] sm:$0xf]
        %v1482 = vld [vmem:[%s1473 + $0x20] sm:$0xf]
        %v1483 = vld [vmem:[%s1473 + $0x24] sm:$0xf]
        %v1484 = vld [vmem:[%s1473 + $0x28] sm:$0xf]
        %v1485 = vld [vmem:[%s1473 + $0x2c] sm:$0xf]
        %v1486 = vld [vmem:[%s1473 + $0x30] sm:$0xf]
        %v1487 = vld [vmem:[%s1473 + $0x34] sm:$0xf]
        %v1488 = vld [vmem:[%s1473 + $0x38] sm:$0xf]
        %v1489 = vld [vmem:[%s1473 + $0x3c] sm:$0xf]
        %v1490 = vld [vmem:[%s1473 + $0x40] sm:$0xf]
        %v1491 = vld [vmem:[%s1473 + $0x44] sm:$0xf]
        %v1492 = vld [vmem:[%s1473 + $0x48] sm:$0xf]
        %v1493 = vld [vmem:[%s1473 + $0x4c] sm:$0xf]
        %v1494 = vld [vmem:[%s1473 + $0x50] sm:$0xf]
        %v1495 = vld [vmem:[%s1473 + $0x54] sm:$0xf]
        %v1496 = vld [vmem:[%s1473 + $0x58] sm:$0xf]
        %v1497 = vld [vmem:[%s1473 + $0x5c] sm:$0xf]
        %v1498 = vld [vmem:[%s1473 + $0x60] sm:$0xf]
        %v1499 = vld [vmem:[%s1473 + $0x64] sm:$0xf]
        %v1500 = vld [vmem:[%s1473 + $0x68] sm:$0xf]
        %v1501 = vld [vmem:[%s1473 + $0x6c] sm:$0xf]
        %v1502 = vld [vmem:[%s1473 + $0x70] sm:$0xf]
        %v1503 = vld [vmem:[%s1473 + $0x74] sm:$0xf]
        %v1504 = vld [vmem:[%s1473 + $0x78] sm:$0xf]
        %v1505 = vld [vmem:[%s1473 + $0x7c] sm:$0xf]
        %s1506 = scalar_lea.vmem [#allocation5], 256
        %v1507 = vld [vmem:[%s1506] sm:$0xf]
        %v1508 = vld [vmem:[%s1506 + $0x4] sm:$0xf]
        %v1509 = vld [vmem:[%s1506 + $0x8] sm:$0xf]
        %v1510 = vld [vmem:[%s1506 + $0xc] sm:$0xf]
        %v1511 = vld [vmem:[%s1506 + $0x10] sm:$0xf]
        %v1512 = vld [vmem:[%s1506 + $0x14] sm:$0xf]
        %v1513 = vld [vmem:[%s1506 + $0x18] sm:$0xf]
        %v1514 = vld [vmem:[%s1506 + $0x1c] sm:$0xf]
        %v1515 = vld [vmem:[%s1506 + $0x20] sm:$0xf]
        %v1516 = vld [vmem:[%s1506 + $0x24] sm:$0xf]
        %v1517 = vld [vmem:[%s1506 + $0x28] sm:$0xf]
        %v1518 = vld [vmem:[%s1506 + $0x2c] sm:$0xf]
        %v1519 = vld [vmem:[%s1506 + $0x30] sm:$0xf]
        %v1520 = vld [vmem:[%s1506 + $0x34] sm:$0xf]
        %v1521 = vld [vmem:[%s1506 + $0x38] sm:$0xf]
        %v1522 = vld [vmem:[%s1506 + $0x3c] sm:$0xf]
        %v1555 = vunpack.c.l.b16 %v1474
        %v1556 = vunpack.c.l.b16 %v1475
        %v1557 = vunpack.c.l.b16 %v1476
        %v1558 = vunpack.c.l.b16 %v1477
        %v1559 = vunpack.c.l.b16 %v1478
        %v1560 = vunpack.c.l.b16 %v1479
        %v1561 = vunpack.c.l.b16 %v1480
        %v1562 = vunpack.c.l.b16 %v1481
        %v1563 = vunpack.c.l.b16 %v1482
        %v1564 = vunpack.c.l.b16 %v1483
        %v1565 = vunpack.c.l.b16 %v1484
        %v1566 = vunpack.c.l.b16 %v1485
        %v1567 = vunpack.c.l.b16 %v1486
        %v1568 = vunpack.c.l.b16 %v1487
        %v1569 = vunpack.c.l.b16 %v1488
        %v1570 = vunpack.c.l.b16 %v1489
        %v1571 = vunpack.c.l.b16 %v1490
        %v1572 = vunpack.c.l.b16 %v1491
        %v1573 = vunpack.c.l.b16 %v1492
        %v1574 = vunpack.c.l.b16 %v1493
        %v1575 = vunpack.c.l.b16 %v1494
        %v1576 = vunpack.c.l.b16 %v1495
        %v1577 = vunpack.c.l.b16 %v1496
        %v1578 = vunpack.c.l.b16 %v1497
        %v1579 = vunpack.c.l.b16 %v1498
        %v1580 = vunpack.c.l.b16 %v1499
        %v1581 = vunpack.c.l.b16 %v1500
        %v1582 = vunpack.c.l.b16 %v1501
        %v1583 = vunpack.c.l.b16 %v1502
        %v1584 = vunpack.c.l.b16 %v1503
        %v1585 = vunpack.c.l.b16 %v1504
        %v1586 = vunpack.c.l.b16 %v1505
        %v1587 = vpack.c.b16 %v1556, %v1555
        %v1588 = vpack.c.b16 %v1558, %v1557
        %v1589 = vpack.c.b16 %v1560, %v1559
        %v1590 = vpack.c.b16 %v1562, %v1561
        %v1591 = vpack.c.b16 %v1564, %v1563
        %v1592 = vpack.c.b16 %v1566, %v1565
        %v1593 = vpack.c.b16 %v1568, %v1567
        %v1594 = vpack.c.b16 %v1570, %v1569
        %v1595 = vpack.c.b16 %v1572, %v1571
        %v1596 = vpack.c.b16 %v1574, %v1573
        %v1597 = vpack.c.b16 %v1576, %v1575
        %v1598 = vpack.c.b16 %v1578, %v1577
        %v1599 = vpack.c.b16 %v1580, %v1579
        %v1600 = vpack.c.b16 %v1582, %v1581
        %v1601 = vpack.c.b16 %v1584, %v1583
        %v1602 = vpack.c.b16 %v1586, %v1585
        %v1635 = vunpack.c.l.b16 %v1507
        %v1636 = vunpack.c.l.b16 %v1508
        %v1637 = vunpack.c.l.b16 %v1509
        %v1638 = vunpack.c.l.b16 %v1510
        %v1639 = vunpack.c.l.b16 %v1511
        %v1640 = vunpack.c.l.b16 %v1512
        %v1641 = vunpack.c.l.b16 %v1513
        %v1642 = vunpack.c.l.b16 %v1514
        %v1643 = vunpack.c.l.b16 %v1515
        %v1644 = vunpack.c.l.b16 %v1516
        %v1645 = vunpack.c.l.b16 %v1517
        %v1646 = vunpack.c.l.b16 %v1518
        %v1647 = vunpack.c.l.b16 %v1519
        %v1648 = vunpack.c.l.b16 %v1520
        %v1649 = vunpack.c.l.b16 %v1521
        %v1650 = vunpack.c.l.b16 %v1522
        %v1651 = vpack.c.b16 %v1636, %v1635
        %v1652 = vpack.c.b16 %v1638, %v1637
        %v1653 = vpack.c.b16 %v1640, %v1639
        %v1654 = vpack.c.b16 %v1642, %v1641
        %v1655 = vpack.c.b16 %v1644, %v1643
        %v1656 = vpack.c.b16 %v1646, %v1645
        %v1657 = vpack.c.b16 %v1648, %v1647
        %v1658 = vpack.c.b16 %v1650, %v1649
        %1667 = vmatpush.bf16.msra.mxu0 %v1658
        %1668 = vmatpush.bf16.msra.mxu0 %v1657
        %1669 = vmatpush.bf16.msra.mxu0 %v1656
        %1670 = vmatpush.bf16.msra.mxu0 %v1655
        %1671 = vmatpush.bf16.msra.mxu0 %v1654
        %1672 = vmatpush.bf16.msra.mxu0 %v1653
        %1673 = vmatpush.bf16.msra.mxu0 %v1652
        %1674 = vmatpush.bf16.msra.mxu0 %v1651
        %1675 = vmatmul.bf16.gmra.mxu0 %v1587
        %v1676 = vpop.f32.mrf.mxu0
        %v1677 = vadd.f32 0.0, %v1676
        %v1678 = vpop.f32.mrf.mxu0
        %v1679 = vadd.f32 0.0, %v1678
        %1680 = vmatmul.bf16.gmra.mxu0 %v1588
        %v1681 = vpop.f32.mrf.mxu0
        %v1682 = vadd.f32 0.0, %v1681
        %v1683 = vpop.f32.mrf.mxu0
        %v1684 = vadd.f32 0.0, %v1683
        %1685 = vmatmul.bf16.gmra.mxu0 %v1589
        %v1686 = vpop.f32.mrf.mxu0
        %v1687 = vadd.f32 0.0, %v1686
        %v1688 = vpop.f32.mrf.mxu0
        %v1689 = vadd.f32 0.0, %v1688
        %1690 = vmatmul.bf16.gmra.mxu0 %v1590
        %v1691 = vpop.f32.mrf.mxu0
        %v1692 = vadd.f32 0.0, %v1691
        %v1693 = vpop.f32.mrf.mxu0
        %v1694 = vadd.f32 0.0, %v1693
        %1695 = vmatmul.bf16.gmra.mxu0 %v1591
        %v1696 = vpop.f32.mrf.mxu0
        %v1697 = vadd.f32 0.0, %v1696
        %v1698 = vpop.f32.mrf.mxu0
        %v1699 = vadd.f32 0.0, %v1698
        %1700 = vmatmul.bf16.gmra.mxu0 %v1592
        %v1701 = vpop.f32.mrf.mxu0
        %v1702 = vadd.f32 0.0, %v1701
        %v1703 = vpop.f32.mrf.mxu0
        %v1704 = vadd.f32 0.0, %v1703
        %1705 = vmatmul.bf16.gmra.mxu0 %v1593
        %v1706 = vpop.f32.mrf.mxu0
        %v1707 = vadd.f32 0.0, %v1706
        %v1708 = vpop.f32.mrf.mxu0
        %v1709 = vadd.f32 0.0, %v1708
        %1710 = vmatmul.bf16.gmra.mxu0 %v1594
        %v1711 = vpop.f32.mrf.mxu0
        %v1712 = vadd.f32 0.0, %v1711
        %v1713 = vpop.f32.mrf.mxu0
        %v1714 = vadd.f32 0.0, %v1713
        %1715 = vmatmul.bf16.gmra.mxu0 %v1595
        %v1716 = vpop.f32.mrf.mxu0
        %v1717 = vadd.f32 0.0, %v1716
        %v1718 = vpop.f32.mrf.mxu0
        %v1719 = vadd.f32 0.0, %v1718
        %1720 = vmatmul.bf16.gmra.mxu0 %v1596
        %v1721 = vpop.f32.mrf.mxu0
        %v1722 = vadd.f32 0.0, %v1721
        %v1723 = vpop.f32.mrf.mxu0
        %v1724 = vadd.f32 0.0, %v1723
        %1725 = vmatmul.bf16.gmra.mxu0 %v1597
        %v1726 = vpop.f32.mrf.mxu0
        %v1727 = vadd.f32 0.0, %v1726
        %v1728 = vpop.f32.mrf.mxu0
        %v1729 = vadd.f32 0.0, %v1728
        %1730 = vmatmul.bf16.gmra.mxu0 %v1598
        %v1731 = vpop.f32.mrf.mxu0
        %v1732 = vadd.f32 0.0, %v1731
        %v1733 = vpop.f32.mrf.mxu0
        %v1734 = vadd.f32 0.0, %v1733
        %1735 = vmatmul.bf16.gmra.mxu0 %v1599
        %v1736 = vpop.f32.mrf.mxu0
        %v1737 = vadd.f32 0.0, %v1736
        %v1738 = vpop.f32.mrf.mxu0
        %v1739 = vadd.f32 0.0, %v1738
        %1740 = vmatmul.bf16.gmra.mxu0 %v1600
        %v1741 = vpop.f32.mrf.mxu0
        %v1742 = vadd.f32 0.0, %v1741
        %v1743 = vpop.f32.mrf.mxu0
        %v1744 = vadd.f32 0.0, %v1743
        %1745 = vmatmul.bf16.gmra.mxu0 %v1601
        %v1746 = vpop.f32.mrf.mxu0
        %v1747 = vadd.f32 0.0, %v1746
        %v1748 = vpop.f32.mrf.mxu0
        %v1749 = vadd.f32 0.0, %v1748
        %1750 = vmatmul.bf16.gmra.mxu0 %v1602
        %v1751 = vpop.f32.mrf.mxu0
        %v1752 = vadd.f32 0.0, %v1751
        %v1753 = vpop.f32.mrf.mxu0
        %v1754 = vadd.f32 0.0, %v1753
        %1755 = vdwg.mxu0
        %v1756 = vadd.f32 %v1438, %v1677
        %v1757 = vadd.f32 %v1439, %v1679
        %v1758 = vadd.f32 %v1440, %v1682
        %v1759 = vadd.f32 %v1441, %v1684
        %v1760 = vadd.f32 %v1442, %v1687
        %v1761 = vadd.f32 %v1443, %v1689
        %v1762 = vadd.f32 %v1444, %v1692
        %v1763 = vadd.f32 %v1445, %v1694
        %v1764 = vadd.f32 %v1446, %v1697
        %v1765 = vadd.f32 %v1447, %v1699
        %v1766 = vadd.f32 %v1448, %v1702
        %v1767 = vadd.f32 %v1449, %v1704
        %v1768 = vadd.f32 %v1450, %v1707
        %v1769 = vadd.f32 %v1451, %v1709
        %v1770 = vadd.f32 %v1452, %v1712
        %v1771 = vadd.f32 %v1453, %v1714
        %v1772 = vadd.f32 %v1454, %v1717
        %v1773 = vadd.f32 %v1455, %v1719
        %v1774 = vadd.f32 %v1456, %v1722
        %v1775 = vadd.f32 %v1457, %v1724
        %v1776 = vadd.f32 %v1458, %v1727
        %v1777 = vadd.f32 %v1459, %v1729
        %v1778 = vadd.f32 %v1460, %v1732
        %v1779 = vadd.f32 %v1461, %v1734
        %v1780 = vadd.f32 %v1462, %v1737
        %v1781 = vadd.f32 %v1463, %v1739
        %v1782 = vadd.f32 %v1464, %v1742
        %v1783 = vadd.f32 %v1465, %v1744
        %v1784 = vadd.f32 %v1466, %v1747
        %v1785 = vadd.f32 %v1467, %v1749
        %v1786 = vadd.f32 %v1468, %v1752
        %v1787 = vadd.f32 %v1469, %v1754
        %s1788 = sadd.s32 %s263, 5
        %s1789 = smul.u32 %s1788, 2
        %s1790 = smul.addr %s1789, 4
        %s1791 = scalar_lea.vmem %s226, %s1790 [#allocation2]
        %v1792 = vld [vmem:[%s1791] sm:$0xf]
        %v1793 = vld [vmem:[%s1791 + $0x4] sm:$0xf]
        %v1794 = vld [vmem:[%s1791 + $0x8] sm:$0xf]
        %v1795 = vld [vmem:[%s1791 + $0xc] sm:$0xf]
        %v1796 = vld [vmem:[%s1791 + $0x10] sm:$0xf]
        %v1797 = vld [vmem:[%s1791 + $0x14] sm:$0xf]
        %v1798 = vld [vmem:[%s1791 + $0x18] sm:$0xf]
        %v1799 = vld [vmem:[%s1791 + $0x1c] sm:$0xf]
        %v1800 = vld [vmem:[%s1791 + $0x20] sm:$0xf]
        %v1801 = vld [vmem:[%s1791 + $0x24] sm:$0xf]
        %v1802 = vld [vmem:[%s1791 + $0x28] sm:$0xf]
        %v1803 = vld [vmem:[%s1791 + $0x2c] sm:$0xf]
        %v1804 = vld [vmem:[%s1791 + $0x30] sm:$0xf]
        %v1805 = vld [vmem:[%s1791 + $0x34] sm:$0xf]
        %v1806 = vld [vmem:[%s1791 + $0x38] sm:$0xf]
        %v1807 = vld [vmem:[%s1791 + $0x3c] sm:$0xf]
        %v1808 = vld [vmem:[%s1791 + $0x40] sm:$0xf]
        %v1809 = vld [vmem:[%s1791 + $0x44] sm:$0xf]
        %v1810 = vld [vmem:[%s1791 + $0x48] sm:$0xf]
        %v1811 = vld [vmem:[%s1791 + $0x4c] sm:$0xf]
        %v1812 = vld [vmem:[%s1791 + $0x50] sm:$0xf]
        %v1813 = vld [vmem:[%s1791 + $0x54] sm:$0xf]
        %v1814 = vld [vmem:[%s1791 + $0x58] sm:$0xf]
        %v1815 = vld [vmem:[%s1791 + $0x5c] sm:$0xf]
        %v1816 = vld [vmem:[%s1791 + $0x60] sm:$0xf]
        %v1817 = vld [vmem:[%s1791 + $0x64] sm:$0xf]
        %v1818 = vld [vmem:[%s1791 + $0x68] sm:$0xf]
        %v1819 = vld [vmem:[%s1791 + $0x6c] sm:$0xf]
        %v1820 = vld [vmem:[%s1791 + $0x70] sm:$0xf]
        %v1821 = vld [vmem:[%s1791 + $0x74] sm:$0xf]
        %v1822 = vld [vmem:[%s1791 + $0x78] sm:$0xf]
        %v1823 = vld [vmem:[%s1791 + $0x7c] sm:$0xf]
        %s1824 = scalar_lea.vmem [#allocation5], 320
        %v1825 = vld [vmem:[%s1824] sm:$0xf]
        %v1826 = vld [vmem:[%s1824 + $0x4] sm:$0xf]
        %v1827 = vld [vmem:[%s1824 + $0x8] sm:$0xf]
        %v1828 = vld [vmem:[%s1824 + $0xc] sm:$0xf]
        %v1829 = vld [vmem:[%s1824 + $0x10] sm:$0xf]
        %v1830 = vld [vmem:[%s1824 + $0x14] sm:$0xf]
        %v1831 = vld [vmem:[%s1824 + $0x18] sm:$0xf]
        %v1832 = vld [vmem:[%s1824 + $0x1c] sm:$0xf]
        %v1833 = vld [vmem:[%s1824 + $0x20] sm:$0xf]
        %v1834 = vld [vmem:[%s1824 + $0x24] sm:$0xf]
        %v1835 = vld [vmem:[%s1824 + $0x28] sm:$0xf]
        %v1836 = vld [vmem:[%s1824 + $0x2c] sm:$0xf]
        %v1837 = vld [vmem:[%s1824 + $0x30] sm:$0xf]
        %v1838 = vld [vmem:[%s1824 + $0x34] sm:$0xf]
        %v1839 = vld [vmem:[%s1824 + $0x38] sm:$0xf]
        %v1840 = vld [vmem:[%s1824 + $0x3c] sm:$0xf]
        %v1873 = vunpack.c.l.b16 %v1792
        %v1874 = vunpack.c.l.b16 %v1793
        %v1875 = vunpack.c.l.b16 %v1794
        %v1876 = vunpack.c.l.b16 %v1795
        %v1877 = vunpack.c.l.b16 %v1796
        %v1878 = vunpack.c.l.b16 %v1797
        %v1879 = vunpack.c.l.b16 %v1798
        %v1880 = vunpack.c.l.b16 %v1799
        %v1881 = vunpack.c.l.b16 %v1800
        %v1882 = vunpack.c.l.b16 %v1801
        %v1883 = vunpack.c.l.b16 %v1802
        %v1884 = vunpack.c.l.b16 %v1803
        %v1885 = vunpack.c.l.b16 %v1804
        %v1886 = vunpack.c.l.b16 %v1805
        %v1887 = vunpack.c.l.b16 %v1806
        %v1888 = vunpack.c.l.b16 %v1807
        %v1889 = vunpack.c.l.b16 %v1808
        %v1890 = vunpack.c.l.b16 %v1809
        %v1891 = vunpack.c.l.b16 %v1810
        %v1892 = vunpack.c.l.b16 %v1811
        %v1893 = vunpack.c.l.b16 %v1812
        %v1894 = vunpack.c.l.b16 %v1813
        %v1895 = vunpack.c.l.b16 %v1814
        %v1896 = vunpack.c.l.b16 %v1815
        %v1897 = vunpack.c.l.b16 %v1816
        %v1898 = vunpack.c.l.b16 %v1817
        %v1899 = vunpack.c.l.b16 %v1818
        %v1900 = vunpack.c.l.b16 %v1819
        %v1901 = vunpack.c.l.b16 %v1820
        %v1902 = vunpack.c.l.b16 %v1821
        %v1903 = vunpack.c.l.b16 %v1822
        %v1904 = vunpack.c.l.b16 %v1823
        %v1905 = vpack.c.b16 %v1874, %v1873
        %v1906 = vpack.c.b16 %v1876, %v1875
        %v1907 = vpack.c.b16 %v1878, %v1877
        %v1908 = vpack.c.b16 %v1880, %v1879
        %v1909 = vpack.c.b16 %v1882, %v1881
        %v1910 = vpack.c.b16 %v1884, %v1883
        %v1911 = vpack.c.b16 %v1886, %v1885
        %v1912 = vpack.c.b16 %v1888, %v1887
        %v1913 = vpack.c.b16 %v1890, %v1889
        %v1914 = vpack.c.b16 %v1892, %v1891
        %v1915 = vpack.c.b16 %v1894, %v1893
        %v1916 = vpack.c.b16 %v1896, %v1895
        %v1917 = vpack.c.b16 %v1898, %v1897
        %v1918 = vpack.c.b16 %v1900, %v1899
        %v1919 = vpack.c.b16 %v1902, %v1901
        %v1920 = vpack.c.b16 %v1904, %v1903
        %v1953 = vunpack.c.l.b16 %v1825
        %v1954 = vunpack.c.l.b16 %v1826
        %v1955 = vunpack.c.l.b16 %v1827
        %v1956 = vunpack.c.l.b16 %v1828
        %v1957 = vunpack.c.l.b16 %v1829
        %v1958 = vunpack.c.l.b16 %v1830
        %v1959 = vunpack.c.l.b16 %v1831
        %v1960 = vunpack.c.l.b16 %v1832
        %v1961 = vunpack.c.l.b16 %v1833
        %v1962 = vunpack.c.l.b16 %v1834
        %v1963 = vunpack.c.l.b16 %v1835
        %v1964 = vunpack.c.l.b16 %v1836
        %v1965 = vunpack.c.l.b16 %v1837
        %v1966 = vunpack.c.l.b16 %v1838
        %v1967 = vunpack.c.l.b16 %v1839
        %v1968 = vunpack.c.l.b16 %v1840
        %v1969 = vpack.c.b16 %v1954, %v1953
        %v1970 = vpack.c.b16 %v1956, %v1955
        %v1971 = vpack.c.b16 %v1958, %v1957
        %v1972 = vpack.c.b16 %v1960, %v1959
        %v1973 = vpack.c.b16 %v1962, %v1961
        %v1974 = vpack.c.b16 %v1964, %v1963
        %v1975 = vpack.c.b16 %v1966, %v1965
        %v1976 = vpack.c.b16 %v1968, %v1967
        %1985 = vmatpush.bf16.msra.mxu0 %v1976
        %1986 = vmatpush.bf16.msra.mxu0 %v1975
        %1987 = vmatpush.bf16.msra.mxu0 %v1974
        %1988 = vmatpush.bf16.msra.mxu0 %v1973
        %1989 = vmatpush.bf16.msra.mxu0 %v1972
        %1990 = vmatpush.bf16.msra.mxu0 %v1971
        %1991 = vmatpush.bf16.msra.mxu0 %v1970
        %1992 = vmatpush.bf16.msra.mxu0 %v1969
        %1993 = vmatmul.bf16.gmra.mxu0 %v1905
        %v1994 = vpop.f32.mrf.mxu0
        %v1995 = vadd.f32 0.0, %v1994
        %v1996 = vpop.f32.mrf.mxu0
        %v1997 = vadd.f32 0.0, %v1996
        %1998 = vmatmul.bf16.gmra.mxu0 %v1906
        %v1999 = vpop.f32.mrf.mxu0
        %v2000 = vadd.f32 0.0, %v1999
        %v2001 = vpop.f32.mrf.mxu0
        %v2002 = vadd.f32 0.0, %v2001
        %2003 = vmatmul.bf16.gmra.mxu0 %v1907
        %v2004 = vpop.f32.mrf.mxu0
        %v2005 = vadd.f32 0.0, %v2004
        %v2006 = vpop.f32.mrf.mxu0
        %v2007 = vadd.f32 0.0, %v2006
        %2008 = vmatmul.bf16.gmra.mxu0 %v1908
        %v2009 = vpop.f32.mrf.mxu0
        %v2010 = vadd.f32 0.0, %v2009
        %v2011 = vpop.f32.mrf.mxu0
        %v2012 = vadd.f32 0.0, %v2011
        %2013 = vmatmul.bf16.gmra.mxu0 %v1909
        %v2014 = vpop.f32.mrf.mxu0
        %v2015 = vadd.f32 0.0, %v2014
        %v2016 = vpop.f32.mrf.mxu0
        %v2017 = vadd.f32 0.0, %v2016
        %2018 = vmatmul.bf16.gmra.mxu0 %v1910
        %v2019 = vpop.f32.mrf.mxu0
        %v2020 = vadd.f32 0.0, %v2019
        %v2021 = vpop.f32.mrf.mxu0
        %v2022 = vadd.f32 0.0, %v2021
        %2023 = vmatmul.bf16.gmra.mxu0 %v1911
        %v2024 = vpop.f32.mrf.mxu0
        %v2025 = vadd.f32 0.0, %v2024
        %v2026 = vpop.f32.mrf.mxu0
        %v2027 = vadd.f32 0.0, %v2026
        %2028 = vmatmul.bf16.gmra.mxu0 %v1912
        %v2029 = vpop.f32.mrf.mxu0
        %v2030 = vadd.f32 0.0, %v2029
        %v2031 = vpop.f32.mrf.mxu0
        %v2032 = vadd.f32 0.0, %v2031
        %2033 = vmatmul.bf16.gmra.mxu0 %v1913
        %v2034 = vpop.f32.mrf.mxu0
        %v2035 = vadd.f32 0.0, %v2034
        %v2036 = vpop.f32.mrf.mxu0
        %v2037 = vadd.f32 0.0, %v2036
        %2038 = vmatmul.bf16.gmra.mxu0 %v1914
        %v2039 = vpop.f32.mrf.mxu0
        %v2040 = vadd.f32 0.0, %v2039
        %v2041 = vpop.f32.mrf.mxu0
        %v2042 = vadd.f32 0.0, %v2041
        %2043 = vmatmul.bf16.gmra.mxu0 %v1915
        %v2044 = vpop.f32.mrf.mxu0
        %v2045 = vadd.f32 0.0, %v2044
        %v2046 = vpop.f32.mrf.mxu0
        %v2047 = vadd.f32 0.0, %v2046
        %2048 = vmatmul.bf16.gmra.mxu0 %v1916
        %v2049 = vpop.f32.mrf.mxu0
        %v2050 = vadd.f32 0.0, %v2049
        %v2051 = vpop.f32.mrf.mxu0
        %v2052 = vadd.f32 0.0, %v2051
        %2053 = vmatmul.bf16.gmra.mxu0 %v1917
        %v2054 = vpop.f32.mrf.mxu0
        %v2055 = vadd.f32 0.0, %v2054
        %v2056 = vpop.f32.mrf.mxu0
        %v2057 = vadd.f32 0.0, %v2056
        %2058 = vmatmul.bf16.gmra.mxu0 %v1918
        %v2059 = vpop.f32.mrf.mxu0
        %v2060 = vadd.f32 0.0, %v2059
        %v2061 = vpop.f32.mrf.mxu0
        %v2062 = vadd.f32 0.0, %v2061
        %2063 = vmatmul.bf16.gmra.mxu0 %v1919
        %v2064 = vpop.f32.mrf.mxu0
        %v2065 = vadd.f32 0.0, %v2064
        %v2066 = vpop.f32.mrf.mxu0
        %v2067 = vadd.f32 0.0, %v2066
        %2068 = vmatmul.bf16.gmra.mxu0 %v1920
        %v2069 = vpop.f32.mrf.mxu0
        %v2070 = vadd.f32 0.0, %v2069
        %v2071 = vpop.f32.mrf.mxu0
        %v2072 = vadd.f32 0.0, %v2071
        %2073 = vdwg.mxu0
        %v2074 = vadd.f32 %v1756, %v1995
        %v2075 = vadd.f32 %v1757, %v1997
        %v2076 = vadd.f32 %v1758, %v2000
        %v2077 = vadd.f32 %v1759, %v2002
        %v2078 = vadd.f32 %v1760, %v2005
        %v2079 = vadd.f32 %v1761, %v2007
        %v2080 = vadd.f32 %v1762, %v2010
        %v2081 = vadd.f32 %v1763, %v2012
        %v2082 = vadd.f32 %v1764, %v2015
        %v2083 = vadd.f32 %v1765, %v2017
        %v2084 = vadd.f32 %v1766, %v2020
        %v2085 = vadd.f32 %v1767, %v2022
        %v2086 = vadd.f32 %v1768, %v2025
        %v2087 = vadd.f32 %v1769, %v2027
        %v2088 = vadd.f32 %v1770, %v2030
        %v2089 = vadd.f32 %v1771, %v2032
        %v2090 = vadd.f32 %v1772, %v2035
        %v2091 = vadd.f32 %v1773, %v2037
        %v2092 = vadd.f32 %v1774, %v2040
        %v2093 = vadd.f32 %v1775, %v2042
        %v2094 = vadd.f32 %v1776, %v2045
        %v2095 = vadd.f32 %v1777, %v2047
        %v2096 = vadd.f32 %v1778, %v2050
        %v2097 = vadd.f32 %v1779, %v2052
        %v2098 = vadd.f32 %v1780, %v2055
        %v2099 = vadd.f32 %v1781, %v2057
        %v2100 = vadd.f32 %v1782, %v2060
        %v2101 = vadd.f32 %v1783, %v2062
        %v2102 = vadd.f32 %v1784, %v2065
        %v2103 = vadd.f32 %v1785, %v2067
        %v2104 = vadd.f32 %v1786, %v2070
        %v2105 = vadd.f32 %v1787, %v2072
        %s2106 = sadd.s32 %s263, 6
        %s2107 = smul.u32 %s2106, 2
        %s2108 = smul.addr %s2107, 4
        %s2109 = scalar_lea.vmem %s226, %s2108 [#allocation2]
        %v2110 = vld [vmem:[%s2109] sm:$0xf]
        %v2111 = vld [vmem:[%s2109 + $0x4] sm:$0xf]
        %v2112 = vld [vmem:[%s2109 + $0x8] sm:$0xf]
        %v2113 = vld [vmem:[%s2109 + $0xc] sm:$0xf]
        %v2114 = vld [vmem:[%s2109 + $0x10] sm:$0xf]
        %v2115 = vld [vmem:[%s2109 + $0x14] sm:$0xf]
        %v2116 = vld [vmem:[%s2109 + $0x18] sm:$0xf]
        %v2117 = vld [vmem:[%s2109 + $0x1c] sm:$0xf]
        %v2118 = vld [vmem:[%s2109 + $0x20] sm:$0xf]
        %v2119 = vld [vmem:[%s2109 + $0x24] sm:$0xf]
        %v2120 = vld [vmem:[%s2109 + $0x28] sm:$0xf]
        %v2121 = vld [vmem:[%s2109 + $0x2c] sm:$0xf]
        %v2122 = vld [vmem:[%s2109 + $0x30] sm:$0xf]
        %v2123 = vld [vmem:[%s2109 + $0x34] sm:$0xf]
        %v2124 = vld [vmem:[%s2109 + $0x38] sm:$0xf]
        %v2125 = vld [vmem:[%s2109 + $0x3c] sm:$0xf]
        %v2126 = vld [vmem:[%s2109 + $0x40] sm:$0xf]
        %v2127 = vld [vmem:[%s2109 + $0x44] sm:$0xf]
        %v2128 = vld [vmem:[%s2109 + $0x48] sm:$0xf]
        %v2129 = vld [vmem:[%s2109 + $0x4c] sm:$0xf]
        %v2130 = vld [vmem:[%s2109 + $0x50] sm:$0xf]
        %v2131 = vld [vmem:[%s2109 + $0x54] sm:$0xf]
        %v2132 = vld [vmem:[%s2109 + $0x58] sm:$0xf]
        %v2133 = vld [vmem:[%s2109 + $0x5c] sm:$0xf]
        %v2134 = vld [vmem:[%s2109 + $0x60] sm:$0xf]
        %v2135 = vld [vmem:[%s2109 + $0x64] sm:$0xf]
        %v2136 = vld [vmem:[%s2109 + $0x68] sm:$0xf]
        %v2137 = vld [vmem:[%s2109 + $0x6c] sm:$0xf]
        %v2138 = vld [vmem:[%s2109 + $0x70] sm:$0xf]
        %v2139 = vld [vmem:[%s2109 + $0x74] sm:$0xf]
        %v2140 = vld [vmem:[%s2109 + $0x78] sm:$0xf]
        %v2141 = vld [vmem:[%s2109 + $0x7c] sm:$0xf]
        %s2142 = scalar_lea.vmem [#allocation5], 384
        %v2143 = vld [vmem:[%s2142] sm:$0xf]
        %v2144 = vld [vmem:[%s2142 + $0x4] sm:$0xf]
        %v2145 = vld [vmem:[%s2142 + $0x8] sm:$0xf]
        %v2146 = vld [vmem:[%s2142 + $0xc] sm:$0xf]
        %v2147 = vld [vmem:[%s2142 + $0x10] sm:$0xf]
        %v2148 = vld [vmem:[%s2142 + $0x14] sm:$0xf]
        %v2149 = vld [vmem:[%s2142 + $0x18] sm:$0xf]
        %v2150 = vld [vmem:[%s2142 + $0x1c] sm:$0xf]
        %v2151 = vld [vmem:[%s2142 + $0x20] sm:$0xf]
        %v2152 = vld [vmem:[%s2142 + $0x24] sm:$0xf]
        %v2153 = vld [vmem:[%s2142 + $0x28] sm:$0xf]
        %v2154 = vld [vmem:[%s2142 + $0x2c] sm:$0xf]
        %v2155 = vld [vmem:[%s2142 + $0x30] sm:$0xf]
        %v2156 = vld [vmem:[%s2142 + $0x34] sm:$0xf]
        %v2157 = vld [vmem:[%s2142 + $0x38] sm:$0xf]
        %v2158 = vld [vmem:[%s2142 + $0x3c] sm:$0xf]
        %v2191 = vunpack.c.l.b16 %v2110
        %v2192 = vunpack.c.l.b16 %v2111
        %v2193 = vunpack.c.l.b16 %v2112
        %v2194 = vunpack.c.l.b16 %v2113
        %v2195 = vunpack.c.l.b16 %v2114
        %v2196 = vunpack.c.l.b16 %v2115
        %v2197 = vunpack.c.l.b16 %v2116
        %v2198 = vunpack.c.l.b16 %v2117
        %v2199 = vunpack.c.l.b16 %v2118
        %v2200 = vunpack.c.l.b16 %v2119
        %v2201 = vunpack.c.l.b16 %v2120
        %v2202 = vunpack.c.l.b16 %v2121
        %v2203 = vunpack.c.l.b16 %v2122
        %v2204 = vunpack.c.l.b16 %v2123
        %v2205 = vunpack.c.l.b16 %v2124
        %v2206 = vunpack.c.l.b16 %v2125
        %v2207 = vunpack.c.l.b16 %v2126
        %v2208 = vunpack.c.l.b16 %v2127
        %v2209 = vunpack.c.l.b16 %v2128
        %v2210 = vunpack.c.l.b16 %v2129
        %v2211 = vunpack.c.l.b16 %v2130
        %v2212 = vunpack.c.l.b16 %v2131
        %v2213 = vunpack.c.l.b16 %v2132
        %v2214 = vunpack.c.l.b16 %v2133
        %v2215 = vunpack.c.l.b16 %v2134
        %v2216 = vunpack.c.l.b16 %v2135
        %v2217 = vunpack.c.l.b16 %v2136
        %v2218 = vunpack.c.l.b16 %v2137
        %v2219 = vunpack.c.l.b16 %v2138
        %v2220 = vunpack.c.l.b16 %v2139
        %v2221 = vunpack.c.l.b16 %v2140
        %v2222 = vunpack.c.l.b16 %v2141
        %v2223 = vpack.c.b16 %v2192, %v2191
        %v2224 = vpack.c.b16 %v2194, %v2193
        %v2225 = vpack.c.b16 %v2196, %v2195
        %v2226 = vpack.c.b16 %v2198, %v2197
        %v2227 = vpack.c.b16 %v2200, %v2199
        %v2228 = vpack.c.b16 %v2202, %v2201
        %v2229 = vpack.c.b16 %v2204, %v2203
        %v2230 = vpack.c.b16 %v2206, %v2205
        %v2231 = vpack.c.b16 %v2208, %v2207
        %v2232 = vpack.c.b16 %v2210, %v2209
        %v2233 = vpack.c.b16 %v2212, %v2211
        %v2234 = vpack.c.b16 %v2214, %v2213
        %v2235 = vpack.c.b16 %v2216, %v2215
        %v2236 = vpack.c.b16 %v2218, %v2217
        %v2237 = vpack.c.b16 %v2220, %v2219
        %v2238 = vpack.c.b16 %v2222, %v2221
        %v2271 = vunpack.c.l.b16 %v2143
        %v2272 = vunpack.c.l.b16 %v2144
        %v2273 = vunpack.c.l.b16 %v2145
        %v2274 = vunpack.c.l.b16 %v2146
        %v2275 = vunpack.c.l.b16 %v2147
        %v2276 = vunpack.c.l.b16 %v2148
        %v2277 = vunpack.c.l.b16 %v2149
        %v2278 = vunpack.c.l.b16 %v2150
        %v2279 = vunpack.c.l.b16 %v2151
        %v2280 = vunpack.c.l.b16 %v2152
        %v2281 = vunpack.c.l.b16 %v2153
        %v2282 = vunpack.c.l.b16 %v2154
        %v2283 = vunpack.c.l.b16 %v2155
        %v2284 = vunpack.c.l.b16 %v2156
        %v2285 = vunpack.c.l.b16 %v2157
        %v2286 = vunpack.c.l.b16 %v2158
        %v2287 = vpack.c.b16 %v2272, %v2271
        %v2288 = vpack.c.b16 %v2274, %v2273
        %v2289 = vpack.c.b16 %v2276, %v2275
        %v2290 = vpack.c.b16 %v2278, %v2277
        %v2291 = vpack.c.b16 %v2280, %v2279
        %v2292 = vpack.c.b16 %v2282, %v2281
        %v2293 = vpack.c.b16 %v2284, %v2283
        %v2294 = vpack.c.b16 %v2286, %v2285
        %2303 = vmatpush.bf16.msra.mxu0 %v2294
        %2304 = vmatpush.bf16.msra.mxu0 %v2293
        %2305 = vmatpush.bf16.msra.mxu0 %v2292
        %2306 = vmatpush.bf16.msra.mxu0 %v2291
        %2307 = vmatpush.bf16.msra.mxu0 %v2290
        %2308 = vmatpush.bf16.msra.mxu0 %v2289
        %2309 = vmatpush.bf16.msra.mxu0 %v2288
        %2310 = vmatpush.bf16.msra.mxu0 %v2287
        %2311 = vmatmul.bf16.gmra.mxu0 %v2223
        %v2312 = vpop.f32.mrf.mxu0
        %v2313 = vadd.f32 0.0, %v2312
        %v2314 = vpop.f32.mrf.mxu0
        %v2315 = vadd.f32 0.0, %v2314
        %2316 = vmatmul.bf16.gmra.mxu0 %v2224
        %v2317 = vpop.f32.mrf.mxu0
        %v2318 = vadd.f32 0.0, %v2317
        %v2319 = vpop.f32.mrf.mxu0
        %v2320 = vadd.f32 0.0, %v2319
        %2321 = vmatmul.bf16.gmra.mxu0 %v2225
        %v2322 = vpop.f32.mrf.mxu0
        %v2323 = vadd.f32 0.0, %v2322
        %v2324 = vpop.f32.mrf.mxu0
        %v2325 = vadd.f32 0.0, %v2324
        %2326 = vmatmul.bf16.gmra.mxu0 %v2226
        %v2327 = vpop.f32.mrf.mxu0
        %v2328 = vadd.f32 0.0, %v2327
        %v2329 = vpop.f32.mrf.mxu0
        %v2330 = vadd.f32 0.0, %v2329
        %2331 = vmatmul.bf16.gmra.mxu0 %v2227
        %v2332 = vpop.f32.mrf.mxu0
        %v2333 = vadd.f32 0.0, %v2332
        %v2334 = vpop.f32.mrf.mxu0
        %v2335 = vadd.f32 0.0, %v2334
        %2336 = vmatmul.bf16.gmra.mxu0 %v2228
        %v2337 = vpop.f32.mrf.mxu0
        %v2338 = vadd.f32 0.0, %v2337
        %v2339 = vpop.f32.mrf.mxu0
        %v2340 = vadd.f32 0.0, %v2339
        %2341 = vmatmul.bf16.gmra.mxu0 %v2229
        %v2342 = vpop.f32.mrf.mxu0
        %v2343 = vadd.f32 0.0, %v2342
        %v2344 = vpop.f32.mrf.mxu0
        %v2345 = vadd.f32 0.0, %v2344
        %2346 = vmatmul.bf16.gmra.mxu0 %v2230
        %v2347 = vpop.f32.mrf.mxu0
        %v2348 = vadd.f32 0.0, %v2347
        %v2349 = vpop.f32.mrf.mxu0
        %v2350 = vadd.f32 0.0, %v2349
        %2351 = vmatmul.bf16.gmra.mxu0 %v2231
        %v2352 = vpop.f32.mrf.mxu0
        %v2353 = vadd.f32 0.0, %v2352
        %v2354 = vpop.f32.mrf.mxu0
        %v2355 = vadd.f32 0.0, %v2354
        %2356 = vmatmul.bf16.gmra.mxu0 %v2232
        %v2357 = vpop.f32.mrf.mxu0
        %v2358 = vadd.f32 0.0, %v2357
        %v2359 = vpop.f32.mrf.mxu0
        %v2360 = vadd.f32 0.0, %v2359
        %2361 = vmatmul.bf16.gmra.mxu0 %v2233
        %v2362 = vpop.f32.mrf.mxu0
        %v2363 = vadd.f32 0.0, %v2362
        %v2364 = vpop.f32.mrf.mxu0
        %v2365 = vadd.f32 0.0, %v2364
        %2366 = vmatmul.bf16.gmra.mxu0 %v2234
        %v2367 = vpop.f32.mrf.mxu0
        %v2368 = vadd.f32 0.0, %v2367
        %v2369 = vpop.f32.mrf.mxu0
        %v2370 = vadd.f32 0.0, %v2369
        %2371 = vmatmul.bf16.gmra.mxu0 %v2235
        %v2372 = vpop.f32.mrf.mxu0
        %v2373 = vadd.f32 0.0, %v2372
        %v2374 = vpop.f32.mrf.mxu0
        %v2375 = vadd.f32 0.0, %v2374
        %2376 = vmatmul.bf16.gmra.mxu0 %v2236
        %v2377 = vpop.f32.mrf.mxu0
        %v2378 = vadd.f32 0.0, %v2377
        %v2379 = vpop.f32.mrf.mxu0
        %v2380 = vadd.f32 0.0, %v2379
        %2381 = vmatmul.bf16.gmra.mxu0 %v2237
        %v2382 = vpop.f32.mrf.mxu0
        %v2383 = vadd.f32 0.0, %v2382
        %v2384 = vpop.f32.mrf.mxu0
        %v2385 = vadd.f32 0.0, %v2384
        %2386 = vmatmul.bf16.gmra.mxu0 %v2238
        %v2387 = vpop.f32.mrf.mxu0
        %v2388 = vadd.f32 0.0, %v2387
        %v2389 = vpop.f32.mrf.mxu0
        %v2390 = vadd.f32 0.0, %v2389
        %2391 = vdwg.mxu0
        %v2392 = vadd.f32 %v2074, %v2313
        %v2393 = vadd.f32 %v2075, %v2315
        %v2394 = vadd.f32 %v2076, %v2318
        %v2395 = vadd.f32 %v2077, %v2320
        %v2396 = vadd.f32 %v2078, %v2323
        %v2397 = vadd.f32 %v2079, %v2325
        %v2398 = vadd.f32 %v2080, %v2328
        %v2399 = vadd.f32 %v2081, %v2330
        %v2400 = vadd.f32 %v2082, %v2333
        %v2401 = vadd.f32 %v2083, %v2335
        %v2402 = vadd.f32 %v2084, %v2338
        %v2403 = vadd.f32 %v2085, %v2340
        %v2404 = vadd.f32 %v2086, %v2343
        %v2405 = vadd.f32 %v2087, %v2345
        %v2406 = vadd.f32 %v2088, %v2348
        %v2407 = vadd.f32 %v2089, %v2350
        %v2408 = vadd.f32 %v2090, %v2353
        %v2409 = vadd.f32 %v2091, %v2355
        %v2410 = vadd.f32 %v2092, %v2358
        %v2411 = vadd.f32 %v2093, %v2360
        %v2412 = vadd.f32 %v2094, %v2363
        %v2413 = vadd.f32 %v2095, %v2365
        %v2414 = vadd.f32 %v2096, %v2368
        %v2415 = vadd.f32 %v2097, %v2370
        %v2416 = vadd.f32 %v2098, %v2373
        %v2417 = vadd.f32 %v2099, %v2375
        %v2418 = vadd.f32 %v2100, %v2378
        %v2419 = vadd.f32 %v2101, %v2380
        %v2420 = vadd.f32 %v2102, %v2383
        %v2421 = vadd.f32 %v2103, %v2385
        %v2422 = vadd.f32 %v2104, %v2388
        %v2423 = vadd.f32 %v2105, %v2390
        %s2424 = sadd.s32 %s263, 7
        %s2425 = smul.u32 %s2424, 2
        %s2426 = smul.addr %s2425, 4
        %s2427 = scalar_lea.vmem %s226, %s2426 [#allocation2]
        %v2428 = vld [vmem:[%s2427] sm:$0xf]
        %v2429 = vld [vmem:[%s2427 + $0x4] sm:$0xf]
        %v2430 = vld [vmem:[%s2427 + $0x8] sm:$0xf]
        %v2431 = vld [vmem:[%s2427 + $0xc] sm:$0xf]
        %v2432 = vld [vmem:[%s2427 + $0x10] sm:$0xf]
        %v2433 = vld [vmem:[%s2427 + $0x14] sm:$0xf]
        %v2434 = vld [vmem:[%s2427 + $0x18] sm:$0xf]
        %v2435 = vld [vmem:[%s2427 + $0x1c] sm:$0xf]
        %v2436 = vld [vmem:[%s2427 + $0x20] sm:$0xf]
        %v2437 = vld [vmem:[%s2427 + $0x24] sm:$0xf]
        %v2438 = vld [vmem:[%s2427 + $0x28] sm:$0xf]
        %v2439 = vld [vmem:[%s2427 + $0x2c] sm:$0xf]
        %v2440 = vld [vmem:[%s2427 + $0x30] sm:$0xf]
        %v2441 = vld [vmem:[%s2427 + $0x34] sm:$0xf]
        %v2442 = vld [vmem:[%s2427 + $0x38] sm:$0xf]
        %v2443 = vld [vmem:[%s2427 + $0x3c] sm:$0xf]
        %v2444 = vld [vmem:[%s2427 + $0x40] sm:$0xf]
        %v2445 = vld [vmem:[%s2427 + $0x44] sm:$0xf]
        %v2446 = vld [vmem:[%s2427 + $0x48] sm:$0xf]
        %v2447 = vld [vmem:[%s2427 + $0x4c] sm:$0xf]
        %v2448 = vld [vmem:[%s2427 + $0x50] sm:$0xf]
        %v2449 = vld [vmem:[%s2427 + $0x54] sm:$0xf]
        %v2450 = vld [vmem:[%s2427 + $0x58] sm:$0xf]
        %v2451 = vld [vmem:[%s2427 + $0x5c] sm:$0xf]
        %v2452 = vld [vmem:[%s2427 + $0x60] sm:$0xf]
        %v2453 = vld [vmem:[%s2427 + $0x64] sm:$0xf]
        %v2454 = vld [vmem:[%s2427 + $0x68] sm:$0xf]
        %v2455 = vld [vmem:[%s2427 + $0x6c] sm:$0xf]
        %v2456 = vld [vmem:[%s2427 + $0x70] sm:$0xf]
        %v2457 = vld [vmem:[%s2427 + $0x74] sm:$0xf]
        %v2458 = vld [vmem:[%s2427 + $0x78] sm:$0xf]
        %v2459 = vld [vmem:[%s2427 + $0x7c] sm:$0xf]
        %s2460 = scalar_lea.vmem [#allocation5], 448
        %v2461 = vld [vmem:[%s2460] sm:$0xf]
        %v2462 = vld [vmem:[%s2460 + $0x4] sm:$0xf]
        %v2463 = vld [vmem:[%s2460 + $0x8] sm:$0xf]
        %v2464 = vld [vmem:[%s2460 + $0xc] sm:$0xf]
        %v2465 = vld [vmem:[%s2460 + $0x10] sm:$0xf]
        %v2466 = vld [vmem:[%s2460 + $0x14] sm:$0xf]
        %v2467 = vld [vmem:[%s2460 + $0x18] sm:$0xf]
        %v2468 = vld [vmem:[%s2460 + $0x1c] sm:$0xf]
        %v2469 = vld [vmem:[%s2460 + $0x20] sm:$0xf]
        %v2470 = vld [vmem:[%s2460 + $0x24] sm:$0xf]
        %v2471 = vld [vmem:[%s2460 + $0x28] sm:$0xf]
        %v2472 = vld [vmem:[%s2460 + $0x2c] sm:$0xf]
        %v2473 = vld [vmem:[%s2460 + $0x30] sm:$0xf]
        %v2474 = vld [vmem:[%s2460 + $0x34] sm:$0xf]
        %v2475 = vld [vmem:[%s2460 + $0x38] sm:$0xf]
        %v2476 = vld [vmem:[%s2460 + $0x3c] sm:$0xf]
        %v2509 = vunpack.c.l.b16 %v2428
        %v2510 = vunpack.c.l.b16 %v2429
        %v2511 = vunpack.c.l.b16 %v2430
        %v2512 = vunpack.c.l.b16 %v2431
        %v2513 = vunpack.c.l.b16 %v2432
        %v2514 = vunpack.c.l.b16 %v2433
        %v2515 = vunpack.c.l.b16 %v2434
        %v2516 = vunpack.c.l.b16 %v2435
        %v2517 = vunpack.c.l.b16 %v2436
        %v2518 = vunpack.c.l.b16 %v2437
        %v2519 = vunpack.c.l.b16 %v2438
        %v2520 = vunpack.c.l.b16 %v2439
        %v2521 = vunpack.c.l.b16 %v2440
        %v2522 = vunpack.c.l.b16 %v2441
        %v2523 = vunpack.c.l.b16 %v2442
        %v2524 = vunpack.c.l.b16 %v2443
        %v2525 = vunpack.c.l.b16 %v2444
        %v2526 = vunpack.c.l.b16 %v2445
        %v2527 = vunpack.c.l.b16 %v2446
        %v2528 = vunpack.c.l.b16 %v2447
        %v2529 = vunpack.c.l.b16 %v2448
        %v2530 = vunpack.c.l.b16 %v2449
        %v2531 = vunpack.c.l.b16 %v2450
        %v2532 = vunpack.c.l.b16 %v2451
        %v2533 = vunpack.c.l.b16 %v2452
        %v2534 = vunpack.c.l.b16 %v2453
        %v2535 = vunpack.c.l.b16 %v2454
        %v2536 = vunpack.c.l.b16 %v2455
        %v2537 = vunpack.c.l.b16 %v2456
        %v2538 = vunpack.c.l.b16 %v2457
        %v2539 = vunpack.c.l.b16 %v2458
        %v2540 = vunpack.c.l.b16 %v2459
        %v2541 = vpack.c.b16 %v2510, %v2509
        %v2542 = vpack.c.b16 %v2512, %v2511
        %v2543 = vpack.c.b16 %v2514, %v2513
        %v2544 = vpack.c.b16 %v2516, %v2515
        %v2545 = vpack.c.b16 %v2518, %v2517
        %v2546 = vpack.c.b16 %v2520, %v2519
        %v2547 = vpack.c.b16 %v2522, %v2521
        %v2548 = vpack.c.b16 %v2524, %v2523
        %v2549 = vpack.c.b16 %v2526, %v2525
        %v2550 = vpack.c.b16 %v2528, %v2527
        %v2551 = vpack.c.b16 %v2530, %v2529
        %v2552 = vpack.c.b16 %v2532, %v2531
        %v2553 = vpack.c.b16 %v2534, %v2533
        %v2554 = vpack.c.b16 %v2536, %v2535
        %v2555 = vpack.c.b16 %v2538, %v2537
        %v2556 = vpack.c.b16 %v2540, %v2539
        %v2589 = vunpack.c.l.b16 %v2461
        %v2590 = vunpack.c.l.b16 %v2462
        %v2591 = vunpack.c.l.b16 %v2463
        %v2592 = vunpack.c.l.b16 %v2464
        %v2593 = vunpack.c.l.b16 %v2465
        %v2594 = vunpack.c.l.b16 %v2466
        %v2595 = vunpack.c.l.b16 %v2467
        %v2596 = vunpack.c.l.b16 %v2468
        %v2597 = vunpack.c.l.b16 %v2469
        %v2598 = vunpack.c.l.b16 %v2470
        %v2599 = vunpack.c.l.b16 %v2471
        %v2600 = vunpack.c.l.b16 %v2472
        %v2601 = vunpack.c.l.b16 %v2473
        %v2602 = vunpack.c.l.b16 %v2474
        %v2603 = vunpack.c.l.b16 %v2475
        %v2604 = vunpack.c.l.b16 %v2476
        %v2605 = vpack.c.b16 %v2590, %v2589
        %v2606 = vpack.c.b16 %v2592, %v2591
        %v2607 = vpack.c.b16 %v2594, %v2593
        %v2608 = vpack.c.b16 %v2596, %v2595
        %v2609 = vpack.c.b16 %v2598, %v2597
        %v2610 = vpack.c.b16 %v2600, %v2599
        %v2611 = vpack.c.b16 %v2602, %v2601
        %v2612 = vpack.c.b16 %v2604, %v2603
        %2621 = vmatpush.bf16.msra.mxu0 %v2612
        %2622 = vmatpush.bf16.msra.mxu0 %v2611
        %2623 = vmatpush.bf16.msra.mxu0 %v2610
        %2624 = vmatpush.bf16.msra.mxu0 %v2609
        %2625 = vmatpush.bf16.msra.mxu0 %v2608
        %2626 = vmatpush.bf16.msra.mxu0 %v2607
        %2627 = vmatpush.bf16.msra.mxu0 %v2606
        %2628 = vmatpush.bf16.msra.mxu0 %v2605
        %2629 = vmatmul.bf16.gmra.mxu0 %v2541
        %v2630 = vpop.f32.mrf.mxu0
        %v2631 = vadd.f32 0.0, %v2630
        %v2632 = vpop.f32.mrf.mxu0
        %v2633 = vadd.f32 0.0, %v2632
        %2634 = vmatmul.bf16.gmra.mxu0 %v2542
        %v2635 = vpop.f32.mrf.mxu0
        %v2636 = vadd.f32 0.0, %v2635
        %v2637 = vpop.f32.mrf.mxu0
        %v2638 = vadd.f32 0.0, %v2637
        %2639 = vmatmul.bf16.gmra.mxu0 %v2543
        %v2640 = vpop.f32.mrf.mxu0
        %v2641 = vadd.f32 0.0, %v2640
        %v2642 = vpop.f32.mrf.mxu0
        %v2643 = vadd.f32 0.0, %v2642
        %2644 = vmatmul.bf16.gmra.mxu0 %v2544
        %v2645 = vpop.f32.mrf.mxu0
        %v2646 = vadd.f32 0.0, %v2645
        %v2647 = vpop.f32.mrf.mxu0
        %v2648 = vadd.f32 0.0, %v2647
        %2649 = vmatmul.bf16.gmra.mxu0 %v2545
        %v2650 = vpop.f32.mrf.mxu0
        %v2651 = vadd.f32 0.0, %v2650
        %v2652 = vpop.f32.mrf.mxu0
        %v2653 = vadd.f32 0.0, %v2652
        %2654 = vmatmul.bf16.gmra.mxu0 %v2546
        %v2655 = vpop.f32.mrf.mxu0
        %v2656 = vadd.f32 0.0, %v2655
        %v2657 = vpop.f32.mrf.mxu0
        %v2658 = vadd.f32 0.0, %v2657
        %2659 = vmatmul.bf16.gmra.mxu0 %v2547
        %v2660 = vpop.f32.mrf.mxu0
        %v2661 = vadd.f32 0.0, %v2660
        %v2662 = vpop.f32.mrf.mxu0
        %v2663 = vadd.f32 0.0, %v2662
        %2664 = vmatmul.bf16.gmra.mxu0 %v2548
        %v2665 = vpop.f32.mrf.mxu0
        %v2666 = vadd.f32 0.0, %v2665
        %v2667 = vpop.f32.mrf.mxu0
        %v2668 = vadd.f32 0.0, %v2667
        %2669 = vmatmul.bf16.gmra.mxu0 %v2549
        %v2670 = vpop.f32.mrf.mxu0
        %v2671 = vadd.f32 0.0, %v2670
        %v2672 = vpop.f32.mrf.mxu0
        %v2673 = vadd.f32 0.0, %v2672
        %2674 = vmatmul.bf16.gmra.mxu0 %v2550
        %v2675 = vpop.f32.mrf.mxu0
        %v2676 = vadd.f32 0.0, %v2675
        %v2677 = vpop.f32.mrf.mxu0
        %v2678 = vadd.f32 0.0, %v2677
        %2679 = vmatmul.bf16.gmra.mxu0 %v2551
        %v2680 = vpop.f32.mrf.mxu0
        %v2681 = vadd.f32 0.0, %v2680
        %v2682 = vpop.f32.mrf.mxu0
        %v2683 = vadd.f32 0.0, %v2682
        %2684 = vmatmul.bf16.gmra.mxu0 %v2552
        %v2685 = vpop.f32.mrf.mxu0
        %v2686 = vadd.f32 0.0, %v2685
        %v2687 = vpop.f32.mrf.mxu0
        %v2688 = vadd.f32 0.0, %v2687
        %2689 = vmatmul.bf16.gmra.mxu0 %v2553
        %v2690 = vpop.f32.mrf.mxu0
        %v2691 = vadd.f32 0.0, %v2690
        %v2692 = vpop.f32.mrf.mxu0
        %v2693 = vadd.f32 0.0, %v2692
        %2694 = vmatmul.bf16.gmra.mxu0 %v2554
        %v2695 = vpop.f32.mrf.mxu0
        %v2696 = vadd.f32 0.0, %v2695
        %v2697 = vpop.f32.mrf.mxu0
        %v2698 = vadd.f32 0.0, %v2697
        %2699 = vmatmul.bf16.gmra.mxu0 %v2555
        %v2700 = vpop.f32.mrf.mxu0
        %v2701 = vadd.f32 0.0, %v2700
        %v2702 = vpop.f32.mrf.mxu0
        %v2703 = vadd.f32 0.0, %v2702
        %2704 = vmatmul.bf16.gmra.mxu0 %v2556
        %v2705 = vpop.f32.mrf.mxu0
        %v2706 = vadd.f32 0.0, %v2705
        %v2707 = vpop.f32.mrf.mxu0
        %v2708 = vadd.f32 0.0, %v2707
        %2709 = vdwg.mxu0
        %v2710 = vadd.f32 %v2392, %v2631
        %v2711 = vadd.f32 %v2393, %v2633
        %v2712 = vadd.f32 %v2394, %v2636
        %v2713 = vadd.f32 %v2395, %v2638
        %v2714 = vadd.f32 %v2396, %v2641
        %v2715 = vadd.f32 %v2397, %v2643
        %v2716 = vadd.f32 %v2398, %v2646
        %v2717 = vadd.f32 %v2399, %v2648
        %v2718 = vadd.f32 %v2400, %v2651
        %v2719 = vadd.f32 %v2401, %v2653
        %v2720 = vadd.f32 %v2402, %v2656
        %v2721 = vadd.f32 %v2403, %v2658
        %v2722 = vadd.f32 %v2404, %v2661
        %v2723 = vadd.f32 %v2405, %v2663
        %v2724 = vadd.f32 %v2406, %v2666
        %v2725 = vadd.f32 %v2407, %v2668
        %v2726 = vadd.f32 %v2408, %v2671
        %v2727 = vadd.f32 %v2409, %v2673
        %v2728 = vadd.f32 %v2410, %v2676
        %v2729 = vadd.f32 %v2411, %v2678
        %v2730 = vadd.f32 %v2412, %v2681
        %v2731 = vadd.f32 %v2413, %v2683
        %v2732 = vadd.f32 %v2414, %v2686
        %v2733 = vadd.f32 %v2415, %v2688
        %v2734 = vadd.f32 %v2416, %v2691
        %v2735 = vadd.f32 %v2417, %v2693
        %v2736 = vadd.f32 %v2418, %v2696
        %v2737 = vadd.f32 %v2419, %v2698
        %v2738 = vadd.f32 %v2420, %v2701
        %v2739 = vadd.f32 %v2421, %v2703
        %v2740 = vadd.f32 %v2422, %v2706
        %v2741 = vadd.f32 %v2423, %v2708
        %s2742 = sadd.s32 %s263, 8
        %s2743 = smul.u32 %s2742, 2
        %s2744 = smul.addr %s2743, 4
        %s2745 = scalar_lea.vmem %s226, %s2744 [#allocation2]
        %v2746 = vld [vmem:[%s2745] sm:$0xf]
        %v2747 = vld [vmem:[%s2745 + $0x4] sm:$0xf]
        %v2748 = vld [vmem:[%s2745 + $0x8] sm:$0xf]
        %v2749 = vld [vmem:[%s2745 + $0xc] sm:$0xf]
        %v2750 = vld [vmem:[%s2745 + $0x10] sm:$0xf]
        %v2751 = vld [vmem:[%s2745 + $0x14] sm:$0xf]
        %v2752 = vld [vmem:[%s2745 + $0x18] sm:$0xf]
        %v2753 = vld [vmem:[%s2745 + $0x1c] sm:$0xf]
        %v2754 = vld [vmem:[%s2745 + $0x20] sm:$0xf]
        %v2755 = vld [vmem:[%s2745 + $0x24] sm:$0xf]
        %v2756 = vld [vmem:[%s2745 + $0x28] sm:$0xf]
        %v2757 = vld [vmem:[%s2745 + $0x2c] sm:$0xf]
        %v2758 = vld [vmem:[%s2745 + $0x30] sm:$0xf]
        %v2759 = vld [vmem:[%s2745 + $0x34] sm:$0xf]
        %v2760 = vld [vmem:[%s2745 + $0x38] sm:$0xf]
        %v2761 = vld [vmem:[%s2745 + $0x3c] sm:$0xf]
        %v2762 = vld [vmem:[%s2745 + $0x40] sm:$0xf]
        %v2763 = vld [vmem:[%s2745 + $0x44] sm:$0xf]
        %v2764 = vld [vmem:[%s2745 + $0x48] sm:$0xf]
        %v2765 = vld [vmem:[%s2745 + $0x4c] sm:$0xf]
        %v2766 = vld [vmem:[%s2745 + $0x50] sm:$0xf]
        %v2767 = vld [vmem:[%s2745 + $0x54] sm:$0xf]
        %v2768 = vld [vmem:[%s2745 + $0x58] sm:$0xf]
        %v2769 = vld [vmem:[%s2745 + $0x5c] sm:$0xf]
        %v2770 = vld [vmem:[%s2745 + $0x60] sm:$0xf]
        %v2771 = vld [vmem:[%s2745 + $0x64] sm:$0xf]
        %v2772 = vld [vmem:[%s2745 + $0x68] sm:$0xf]
        %v2773 = vld [vmem:[%s2745 + $0x6c] sm:$0xf]
        %v2774 = vld [vmem:[%s2745 + $0x70] sm:$0xf]
        %v2775 = vld [vmem:[%s2745 + $0x74] sm:$0xf]
        %v2776 = vld [vmem:[%s2745 + $0x78] sm:$0xf]
        %v2777 = vld [vmem:[%s2745 + $0x7c] sm:$0xf]
        %s2778 = scalar_lea.vmem [#allocation5], 512
        %v2779 = vld [vmem:[%s2778] sm:$0xf]
        %v2780 = vld [vmem:[%s2778 + $0x4] sm:$0xf]
        %v2781 = vld [vmem:[%s2778 + $0x8] sm:$0xf]
        %v2782 = vld [vmem:[%s2778 + $0xc] sm:$0xf]
        %v2783 = vld [vmem:[%s2778 + $0x10] sm:$0xf]
        %v2784 = vld [vmem:[%s2778 + $0x14] sm:$0xf]
        %v2785 = vld [vmem:[%s2778 + $0x18] sm:$0xf]
        %v2786 = vld [vmem:[%s2778 + $0x1c] sm:$0xf]
        %v2787 = vld [vmem:[%s2778 + $0x20] sm:$0xf]
        %v2788 = vld [vmem:[%s2778 + $0x24] sm:$0xf]
        %v2789 = vld [vmem:[%s2778 + $0x28] sm:$0xf]
        %v2790 = vld [vmem:[%s2778 + $0x2c] sm:$0xf]
        %v2791 = vld [vmem:[%s2778 + $0x30] sm:$0xf]
        %v2792 = vld [vmem:[%s2778 + $0x34] sm:$0xf]
        %v2793 = vld [vmem:[%s2778 + $0x38] sm:$0xf]
        %v2794 = vld [vmem:[%s2778 + $0x3c] sm:$0xf]
        %v2827 = vunpack.c.l.b16 %v2746
        %v2828 = vunpack.c.l.b16 %v2747
        %v2829 = vunpack.c.l.b16 %v2748
        %v2830 = vunpack.c.l.b16 %v2749
        %v2831 = vunpack.c.l.b16 %v2750
        %v2832 = vunpack.c.l.b16 %v2751
        %v2833 = vunpack.c.l.b16 %v2752
        %v2834 = vunpack.c.l.b16 %v2753
        %v2835 = vunpack.c.l.b16 %v2754
        %v2836 = vunpack.c.l.b16 %v2755
        %v2837 = vunpack.c.l.b16 %v2756
        %v2838 = vunpack.c.l.b16 %v2757
        %v2839 = vunpack.c.l.b16 %v2758
        %v2840 = vunpack.c.l.b16 %v2759
        %v2841 = vunpack.c.l.b16 %v2760
        %v2842 = vunpack.c.l.b16 %v2761
        %v2843 = vunpack.c.l.b16 %v2762
        %v2844 = vunpack.c.l.b16 %v2763
        %v2845 = vunpack.c.l.b16 %v2764
        %v2846 = vunpack.c.l.b16 %v2765
        %v2847 = vunpack.c.l.b16 %v2766
        %v2848 = vunpack.c.l.b16 %v2767
        %v2849 = vunpack.c.l.b16 %v2768
        %v2850 = vunpack.c.l.b16 %v2769
        %v2851 = vunpack.c.l.b16 %v2770
        %v2852 = vunpack.c.l.b16 %v2771
        %v2853 = vunpack.c.l.b16 %v2772
        %v2854 = vunpack.c.l.b16 %v2773
        %v2855 = vunpack.c.l.b16 %v2774
        %v2856 = vunpack.c.l.b16 %v2775
        %v2857 = vunpack.c.l.b16 %v2776
        %v2858 = vunpack.c.l.b16 %v2777
        %v2859 = vpack.c.b16 %v2828, %v2827
        %v2860 = vpack.c.b16 %v2830, %v2829
        %v2861 = vpack.c.b16 %v2832, %v2831
        %v2862 = vpack.c.b16 %v2834, %v2833
        %v2863 = vpack.c.b16 %v2836, %v2835
        %v2864 = vpack.c.b16 %v2838, %v2837
        %v2865 = vpack.c.b16 %v2840, %v2839
        %v2866 = vpack.c.b16 %v2842, %v2841
        %v2867 = vpack.c.b16 %v2844, %v2843
        %v2868 = vpack.c.b16 %v2846, %v2845
        %v2869 = vpack.c.b16 %v2848, %v2847
        %v2870 = vpack.c.b16 %v2850, %v2849
        %v2871 = vpack.c.b16 %v2852, %v2851
        %v2872 = vpack.c.b16 %v2854, %v2853
        %v2873 = vpack.c.b16 %v2856, %v2855
        %v2874 = vpack.c.b16 %v2858, %v2857
        %v2907 = vunpack.c.l.b16 %v2779
        %v2908 = vunpack.c.l.b16 %v2780
        %v2909 = vunpack.c.l.b16 %v2781
        %v2910 = vunpack.c.l.b16 %v2782
        %v2911 = vunpack.c.l.b16 %v2783
        %v2912 = vunpack.c.l.b16 %v2784
        %v2913 = vunpack.c.l.b16 %v2785
        %v2914 = vunpack.c.l.b16 %v2786
        %v2915 = vunpack.c.l.b16 %v2787
        %v2916 = vunpack.c.l.b16 %v2788
        %v2917 = vunpack.c.l.b16 %v2789
        %v2918 = vunpack.c.l.b16 %v2790
        %v2919 = vunpack.c.l.b16 %v2791
        %v2920 = vunpack.c.l.b16 %v2792
        %v2921 = vunpack.c.l.b16 %v2793
        %v2922 = vunpack.c.l.b16 %v2794
        %v2923 = vpack.c.b16 %v2908, %v2907
        %v2924 = vpack.c.b16 %v2910, %v2909
        %v2925 = vpack.c.b16 %v2912, %v2911
        %v2926 = vpack.c.b16 %v2914, %v2913
        %v2927 = vpack.c.b16 %v2916, %v2915
        %v2928 = vpack.c.b16 %v2918, %v2917
        %v2929 = vpack.c.b16 %v2920, %v2919
        %v2930 = vpack.c.b16 %v2922, %v2921
        %2939 = vmatpush.bf16.msra.mxu0 %v2930
        %2940 = vmatpush.bf16.msra.mxu0 %v2929
        %2941 = vmatpush.bf16.msra.mxu0 %v2928
        %2942 = vmatpush.bf16.msra.mxu0 %v2927
        %2943 = vmatpush.bf16.msra.mxu0 %v2926
        %2944 = vmatpush.bf16.msra.mxu0 %v2925
        %2945 = vmatpush.bf16.msra.mxu0 %v2924
        %2946 = vmatpush.bf16.msra.mxu0 %v2923
        %2947 = vmatmul.bf16.gmra.mxu0 %v2859
        %v2948 = vpop.f32.mrf.mxu0
        %v2949 = vadd.f32 0.0, %v2948
        %v2950 = vpop.f32.mrf.mxu0
        %v2951 = vadd.f32 0.0, %v2950
        %2952 = vmatmul.bf16.gmra.mxu0 %v2860
        %v2953 = vpop.f32.mrf.mxu0
        %v2954 = vadd.f32 0.0, %v2953
        %v2955 = vpop.f32.mrf.mxu0
        %v2956 = vadd.f32 0.0, %v2955
        %2957 = vmatmul.bf16.gmra.mxu0 %v2861
        %v2958 = vpop.f32.mrf.mxu0
        %v2959 = vadd.f32 0.0, %v2958
        %v2960 = vpop.f32.mrf.mxu0
        %v2961 = vadd.f32 0.0, %v2960
        %2962 = vmatmul.bf16.gmra.mxu0 %v2862
        %v2963 = vpop.f32.mrf.mxu0
        %v2964 = vadd.f32 0.0, %v2963
        %v2965 = vpop.f32.mrf.mxu0
        %v2966 = vadd.f32 0.0, %v2965
        %2967 = vmatmul.bf16.gmra.mxu0 %v2863
        %v2968 = vpop.f32.mrf.mxu0
        %v2969 = vadd.f32 0.0, %v2968
        %v2970 = vpop.f32.mrf.mxu0
        %v2971 = vadd.f32 0.0, %v2970
        %2972 = vmatmul.bf16.gmra.mxu0 %v2864
        %v2973 = vpop.f32.mrf.mxu0
        %v2974 = vadd.f32 0.0, %v2973
        %v2975 = vpop.f32.mrf.mxu0
        %v2976 = vadd.f32 0.0, %v2975
        %2977 = vmatmul.bf16.gmra.mxu0 %v2865
        %v2978 = vpop.f32.mrf.mxu0
        %v2979 = vadd.f32 0.0, %v2978
        %v2980 = vpop.f32.mrf.mxu0
        %v2981 = vadd.f32 0.0, %v2980
        %2982 = vmatmul.bf16.gmra.mxu0 %v2866
        %v2983 = vpop.f32.mrf.mxu0
        %v2984 = vadd.f32 0.0, %v2983
        %v2985 = vpop.f32.mrf.mxu0
        %v2986 = vadd.f32 0.0, %v2985
        %2987 = vmatmul.bf16.gmra.mxu0 %v2867
        %v2988 = vpop.f32.mrf.mxu0
        %v2989 = vadd.f32 0.0, %v2988
        %v2990 = vpop.f32.mrf.mxu0
        %v2991 = vadd.f32 0.0, %v2990
        %2992 = vmatmul.bf16.gmra.mxu0 %v2868
        %v2993 = vpop.f32.mrf.mxu0
        %v2994 = vadd.f32 0.0, %v2993
        %v2995 = vpop.f32.mrf.mxu0
        %v2996 = vadd.f32 0.0, %v2995
        %2997 = vmatmul.bf16.gmra.mxu0 %v2869
        %v2998 = vpop.f32.mrf.mxu0
        %v2999 = vadd.f32 0.0, %v2998
        %v3000 = vpop.f32.mrf.mxu0
        %v3001 = vadd.f32 0.0, %v3000
        %3002 = vmatmul.bf16.gmra.mxu0 %v2870
        %v3003 = vpop.f32.mrf.mxu0
        %v3004 = vadd.f32 0.0, %v3003
        %v3005 = vpop.f32.mrf.mxu0
        %v3006 = vadd.f32 0.0, %v3005
        %3007 = vmatmul.bf16.gmra.mxu0 %v2871
        %v3008 = vpop.f32.mrf.mxu0
        %v3009 = vadd.f32 0.0, %v3008
        %v3010 = vpop.f32.mrf.mxu0
        %v3011 = vadd.f32 0.0, %v3010
        %3012 = vmatmul.bf16.gmra.mxu0 %v2872
        %v3013 = vpop.f32.mrf.mxu0
        %v3014 = vadd.f32 0.0, %v3013
        %v3015 = vpop.f32.mrf.mxu0
        %v3016 = vadd.f32 0.0, %v3015
        %3017 = vmatmul.bf16.gmra.mxu0 %v2873
        %v3018 = vpop.f32.mrf.mxu0
        %v3019 = vadd.f32 0.0, %v3018
        %v3020 = vpop.f32.mrf.mxu0
        %v3021 = vadd.f32 0.0, %v3020
        %3022 = vmatmul.bf16.gmra.mxu0 %v2874
        %v3023 = vpop.f32.mrf.mxu0
        %v3024 = vadd.f32 0.0, %v3023
        %v3025 = vpop.f32.mrf.mxu0
        %v3026 = vadd.f32 0.0, %v3025
        %3027 = vdwg.mxu0
        %v3028 = vadd.f32 %v2710, %v2949
        %v3029 = vadd.f32 %v2711, %v2951
        %v3030 = vadd.f32 %v2712, %v2954
        %v3031 = vadd.f32 %v2713, %v2956
        %v3032 = vadd.f32 %v2714, %v2959
        %v3033 = vadd.f32 %v2715, %v2961
        %v3034 = vadd.f32 %v2716, %v2964
        %v3035 = vadd.f32 %v2717, %v2966
        %v3036 = vadd.f32 %v2718, %v2969
        %v3037 = vadd.f32 %v2719, %v2971
        %v3038 = vadd.f32 %v2720, %v2974
        %v3039 = vadd.f32 %v2721, %v2976
        %v3040 = vadd.f32 %v2722, %v2979
        %v3041 = vadd.f32 %v2723, %v2981
        %v3042 = vadd.f32 %v2724, %v2984
        %v3043 = vadd.f32 %v2725, %v2986
        %v3044 = vadd.f32 %v2726, %v2989
        %v3045 = vadd.f32 %v2727, %v2991
        %v3046 = vadd.f32 %v2728, %v2994
        %v3047 = vadd.f32 %v2729, %v2996
        %v3048 = vadd.f32 %v2730, %v2999
        %v3049 = vadd.f32 %v2731, %v3001
        %v3050 = vadd.f32 %v2732, %v3004
        %v3051 = vadd.f32 %v2733, %v3006
        %v3052 = vadd.f32 %v2734, %v3009
        %v3053 = vadd.f32 %v2735, %v3011
        %v3054 = vadd.f32 %v2736, %v3014
        %v3055 = vadd.f32 %v2737, %v3016
        %v3056 = vadd.f32 %v2738, %v3019
        %v3057 = vadd.f32 %v2739, %v3021
        %v3058 = vadd.f32 %v2740, %v3024
        %v3059 = vadd.f32 %v2741, %v3026
        %v3060 = vld [vmem:[%s2] sm:$0x1]
        %v3062 = vperm.slane %v3060, 0
        %v3064 = vadd.f32 %v3028, %v3062
        %v3065 = vadd.f32 %v3029, %v3062
        %v3066 = vadd.f32 %v3030, %v3062
        %v3067 = vadd.f32 %v3031, %v3062
        %v3068 = vadd.f32 %v3032, %v3062
        %v3069 = vadd.f32 %v3033, %v3062
        %v3070 = vadd.f32 %v3034, %v3062
        %v3071 = vadd.f32 %v3035, %v3062
        %v3072 = vadd.f32 %v3036, %v3062
        %v3073 = vadd.f32 %v3037, %v3062
        %v3074 = vadd.f32 %v3038, %v3062
        %v3075 = vadd.f32 %v3039, %v3062
        %v3076 = vadd.f32 %v3040, %v3062
        %v3077 = vadd.f32 %v3041, %v3062
        %v3078 = vadd.f32 %v3042, %v3062
        %v3079 = vadd.f32 %v3043, %v3062
        %v3080 = vadd.f32 %v3044, %v3062
        %v3081 = vadd.f32 %v3045, %v3062
        %v3082 = vadd.f32 %v3046, %v3062
        %v3083 = vadd.f32 %v3047, %v3062
        %v3084 = vadd.f32 %v3048, %v3062
        %v3085 = vadd.f32 %v3049, %v3062
        %v3086 = vadd.f32 %v3050, %v3062
        %v3087 = vadd.f32 %v3051, %v3062
        %v3088 = vadd.f32 %v3052, %v3062
        %v3089 = vadd.f32 %v3053, %v3062
        %v3090 = vadd.f32 %v3054, %v3062
        %v3091 = vadd.f32 %v3055, %v3062
        %v3092 = vadd.f32 %v3056, %v3062
        %v3093 = vadd.f32 %v3057, %v3062
        %v3094 = vadd.f32 %v3058, %v3062
        %v3095 = vadd.f32 %v3059, %v3062
        %v3096 = vpack.c.bf16 %v3064, %v3064
        %v3097 = vpack.c.bf16 %v3065, %v3065
        %v3098 = vpack.c.bf16 %v3066, %v3066
        %v3099 = vpack.c.bf16 %v3067, %v3067
        %v3100 = vpack.c.bf16 %v3068, %v3068
        %v3101 = vpack.c.bf16 %v3069, %v3069
        %v3102 = vpack.c.bf16 %v3070, %v3070
        %v3103 = vpack.c.bf16 %v3071, %v3071
        %v3104 = vpack.c.bf16 %v3072, %v3072
        %v3105 = vpack.c.bf16 %v3073, %v3073
        %v3106 = vpack.c.bf16 %v3074, %v3074
        %v3107 = vpack.c.bf16 %v3075, %v3075
        %v3108 = vpack.c.bf16 %v3076, %v3076
        %v3109 = vpack.c.bf16 %v3077, %v3077
        %v3110 = vpack.c.bf16 %v3078, %v3078
        %v3111 = vpack.c.bf16 %v3079, %v3079
        %v3112 = vpack.c.bf16 %v3080, %v3080
        %v3113 = vpack.c.bf16 %v3081, %v3081
        %v3114 = vpack.c.bf16 %v3082, %v3082
        %v3115 = vpack.c.bf16 %v3083, %v3083
        %v3116 = vpack.c.bf16 %v3084, %v3084
        %v3117 = vpack.c.bf16 %v3085, %v3085
        %v3118 = vpack.c.bf16 %v3086, %v3086
        %v3119 = vpack.c.bf16 %v3087, %v3087
        %v3120 = vpack.c.bf16 %v3088, %v3088
        %v3121 = vpack.c.bf16 %v3089, %v3089
        %v3122 = vpack.c.bf16 %v3090, %v3090
        %v3123 = vpack.c.bf16 %v3091, %v3091
        %v3124 = vpack.c.bf16 %v3092, %v3092
        %v3125 = vpack.c.bf16 %v3093, %v3093
        %v3126 = vpack.c.bf16 %v3094, %v3094
        %v3127 = vpack.c.bf16 %v3095, %v3095
        %3128 = vst [vmem:[%s254] sm:$0xf] %v3096
        %3129 = vst [vmem:[%s254 + $0x4] sm:$0xf] %v3097
        %3130 = vst [vmem:[%s254 + $0x8] sm:$0xf] %v3098
        %3131 = vst [vmem:[%s254 + $0xc] sm:$0xf] %v3099
        %3132 = vst [vmem:[%s254 + $0x10] sm:$0xf] %v3100
        %3133 = vst [vmem:[%s254 + $0x14] sm:$0xf] %v3101
        %3134 = vst [vmem:[%s254 + $0x18] sm:$0xf] %v3102
        %3135 = vst [vmem:[%s254 + $0x1c] sm:$0xf] %v3103
        %3136 = vst [vmem:[%s254 + $0x20] sm:$0xf] %v3104
        %3137 = vst [vmem:[%s254 + $0x24] sm:$0xf] %v3105
        %3138 = vst [vmem:[%s254 + $0x28] sm:$0xf] %v3106
        %3139 = vst [vmem:[%s254 + $0x2c] sm:$0xf] %v3107
        %3140 = vst [vmem:[%s254 + $0x30] sm:$0xf] %v3108
        %3141 = vst [vmem:[%s254 + $0x34] sm:$0xf] %v3109
        %3142 = vst [vmem:[%s254 + $0x38] sm:$0xf] %v3110
        %3143 = vst [vmem:[%s254 + $0x3c] sm:$0xf] %v3111
        %3144 = vst [vmem:[%s254 + $0x40] sm:$0xf] %v3112
        %3145 = vst [vmem:[%s254 + $0x44] sm:$0xf] %v3113
        %3146 = vst [vmem:[%s254 + $0x48] sm:$0xf] %v3114
        %3147 = vst [vmem:[%s254 + $0x4c] sm:$0xf] %v3115
        %3148 = vst [vmem:[%s254 + $0x50] sm:$0xf] %v3116
        %3149 = vst [vmem:[%s254 + $0x54] sm:$0xf] %v3117
        %3150 = vst [vmem:[%s254 + $0x58] sm:$0xf] %v3118
        %3151 = vst [vmem:[%s254 + $0x5c] sm:$0xf] %v3119
        %3152 = vst [vmem:[%s254 + $0x60] sm:$0xf] %v3120
        %3153 = vst [vmem:[%s254 + $0x64] sm:$0xf] %v3121
        %3154 = vst [vmem:[%s254 + $0x68] sm:$0xf] %v3122
        %3155 = vst [vmem:[%s254 + $0x6c] sm:$0xf] %v3123
        %3156 = vst [vmem:[%s254 + $0x70] sm:$0xf] %v3124
        %3157 = vst [vmem:[%s254 + $0x74] sm:$0xf] %v3125
        %3158 = vst [vmem:[%s254 + $0x78] sm:$0xf] %v3126
        %3159 = vst [vmem:[%s254 + $0x7c] sm:$0xf] %v3127
        %s3160 = ssub.s32 16, %s263
        %s3161 = smul.u32 %s3160, 16
        %p3162 = scmp.lt.s32.totalorder %s3161, 256
        %s3163 = scalar_select %p3162, %s3161, 256
        %v3164 = vlaneseq
        %v3165 = vshrl.u32 %v3164, 7
        %v3166 = vadd.s32 %v3165, 8
        %v3167 = vadd.s32 %v3165, 16
        %v3168 = vadd.s32 %v3165, 24
        %v3169 = vadd.s32 %v3165, 32
        %v3170 = vadd.s32 %v3165, 40
        %v3171 = vadd.s32 %v3165, 48
        %v3172 = vadd.s32 %v3165, 56
        %v3173 = vadd.s32 %v3165, 64
        %v3174 = vadd.s32 %v3165, 72
        %v3175 = vadd.s32 %v3165, 80
        %v3176 = vadd.s32 %v3165, 88
        %v3177 = vadd.s32 %v3165, 96
        %v3178 = vadd.s32 %v3165, 104
        %v3179 = vadd.s32 %v3165, 112
        %v3180 = vadd.s32 %v3165, 120
        %v3181 = vadd.s32 %v3165, 128
        %v3182 = vadd.s32 %v3165, 136
        %v3183 = vadd.s32 %v3165, 144
        %v3184 = vadd.s32 %v3165, 152
        %v3185 = vadd.s32 %v3165, 160
        %v3186 = vadd.s32 %v3165, 168
        %v3187 = vadd.s32 %v3165, 176
        %v3188 = vadd.s32 %v3165, 184
        %v3189 = vadd.s32 %v3165, 192
        %v3190 = vadd.s32 %v3165, 200
        %v3191 = vadd.s32 %v3165, 208
        %v3192 = vadd.s32 %v3165, 216
        %v3193 = vadd.s32 %v3165, 224
        %v3194 = vadd.s32 %v3165, 232
        %v3195 = vadd.s32 %v3165, 240
        %v3196 = vadd.s32 %v3165, 248
        %v3197 = vstv %s3163
        %vm3198 = vcmp.lt.s32.totalorder %v3165, %v3197
        %vm3199 = vcmp.lt.s32.totalorder %v3166, %v3197
        %vm3200 = vcmp.lt.s32.totalorder %v3167, %v3197
        %vm3201 = vcmp.lt.s32.totalorder %v3168, %v3197
        %vm3202 = vcmp.lt.s32.totalorder %v3169, %v3197
        %vm3203 = vcmp.lt.s32.totalorder %v3170, %v3197
        %vm3204 = vcmp.lt.s32.totalorder %v3171, %v3197
        %vm3205 = vcmp.lt.s32.totalorder %v3172, %v3197
        %vm3206 = vcmp.lt.s32.totalorder %v3173, %v3197
        %vm3207 = vcmp.lt.s32.totalorder %v3174, %v3197
        %vm3208 = vcmp.lt.s32.totalorder %v3175, %v3197
        %vm3209 = vcmp.lt.s32.totalorder %v3176, %v3197
        %vm3210 = vcmp.lt.s32.totalorder %v3177, %v3197
        %vm3211 = vcmp.lt.s32.totalorder %v3178, %v3197
        %vm3212 = vcmp.lt.s32.totalorder %v3179, %v3197
        %vm3213 = vcmp.lt.s32.totalorder %v3180, %v3197
        %vm3214 = vcmp.lt.s32.totalorder %v3181, %v3197
        %vm3215 = vcmp.lt.s32.totalorder %v3182, %v3197
        %vm3216 = vcmp.lt.s32.totalorder %v3183, %v3197
        %vm3217 = vcmp.lt.s32.totalorder %v3184, %v3197
        %vm3218 = vcmp.lt.s32.totalorder %v3185, %v3197
        %vm3219 = vcmp.lt.s32.totalorder %v3186, %v3197
        %vm3220 = vcmp.lt.s32.totalorder %v3187, %v3197
        %vm3221 = vcmp.lt.s32.totalorder %v3188, %v3197
        %vm3222 = vcmp.lt.s32.totalorder %v3189, %v3197
        %vm3223 = vcmp.lt.s32.totalorder %v3190, %v3197
        %vm3224 = vcmp.lt.s32.totalorder %v3191, %v3197
        %vm3225 = vcmp.lt.s32.totalorder %v3192, %v3197
        %vm3226 = vcmp.lt.s32.totalorder %v3193, %v3197
        %vm3227 = vcmp.lt.s32.totalorder %v3194, %v3197
        %vm3228 = vcmp.lt.s32.totalorder %v3195, %v3197
        %vm3229 = vcmp.lt.s32.totalorder %v3196, %v3197
        %v3230 = vsel %vm3198, 1, 0
        %v3231 = vsel %vm3199, 1, 0
        %v3232 = vsel %vm3200, 1, 0
        %v3233 = vsel %vm3201, 1, 0
        %v3234 = vsel %vm3202, 1, 0
        %v3235 = vsel %vm3203, 1, 0
        %v3236 = vsel %vm3204, 1, 0
        %v3237 = vsel %vm3205, 1, 0
        %v3238 = vsel %vm3206, 1, 0
        %v3239 = vsel %vm3207, 1, 0
        %v3240 = vsel %vm3208, 1, 0
        %v3241 = vsel %vm3209, 1, 0
        %v3242 = vsel %vm3210, 1, 0
        %v3243 = vsel %vm3211, 1, 0
        %v3244 = vsel %vm3212, 1, 0
        %v3245 = vsel %vm3213, 1, 0
        %v3246 = vsel %vm3214, 1, 0
        %v3247 = vsel %vm3215, 1, 0
        %v3248 = vsel %vm3216, 1, 0
        %v3249 = vsel %vm3217, 1, 0
        %v3250 = vsel %vm3218, 1, 0
        %v3251 = vsel %vm3219, 1, 0
        %v3252 = vsel %vm3220, 1, 0
        %v3253 = vsel %vm3221, 1, 0
        %v3254 = vsel %vm3222, 1, 0
        %v3255 = vsel %vm3223, 1, 0
        %v3256 = vsel %vm3224, 1, 0
        %v3257 = vsel %vm3225, 1, 0
        %v3258 = vsel %vm3226, 1, 0
        %v3259 = vsel %vm3227, 1, 0
        %v3260 = vsel %vm3228, 1, 0
        %v3261 = vsel %vm3229, 1, 0
        %v3262 = vcvt.s32.f32 %v3230
        %v3263 = vcvt.s32.f32 %v3231
        %v3264 = vcvt.s32.f32 %v3232
        %v3265 = vcvt.s32.f32 %v3233
        %v3266 = vcvt.s32.f32 %v3234
        %v3267 = vcvt.s32.f32 %v3235
        %v3268 = vcvt.s32.f32 %v3236
        %v3269 = vcvt.s32.f32 %v3237
        %v3270 = vcvt.s32.f32 %v3238
        %v3271 = vcvt.s32.f32 %v3239
        %v3272 = vcvt.s32.f32 %v3240
        %v3273 = vcvt.s32.f32 %v3241
        %v3274 = vcvt.s32.f32 %v3242
        %v3275 = vcvt.s32.f32 %v3243
        %v3276 = vcvt.s32.f32 %v3244
        %v3277 = vcvt.s32.f32 %v3245
        %v3278 = vcvt.s32.f32 %v3246
        %v3279 = vcvt.s32.f32 %v3247
        %v3280 = vcvt.s32.f32 %v3248
        %v3281 = vcvt.s32.f32 %v3249
        %v3282 = vcvt.s32.f32 %v3250
        %v3283 = vcvt.s32.f32 %v3251
        %v3284 = vcvt.s32.f32 %v3252
        %v3285 = vcvt.s32.f32 %v3253
        %v3286 = vcvt.s32.f32 %v3254
        %v3287 = vcvt.s32.f32 %v3255
        %v3288 = vcvt.s32.f32 %v3256
        %v3289 = vcvt.s32.f32 %v3257
        %v3290 = vcvt.s32.f32 %v3258
        %v3291 = vcvt.s32.f32 %v3259
        %v3292 = vcvt.s32.f32 %v3260
        %v3293 = vcvt.s32.f32 %v3261
        %v3294 = vmul.f32 %v3064, %v3262
        %v3295 = vmul.f32 %v3065, %v3263
        %v3296 = vmul.f32 %v3066, %v3264
        %v3297 = vmul.f32 %v3067, %v3265
        %v3298 = vmul.f32 %v3068, %v3266
        %v3299 = vmul.f32 %v3069, %v3267
        %v3300 = vmul.f32 %v3070, %v3268
        %v3301 = vmul.f32 %v3071, %v3269
        %v3302 = vmul.f32 %v3072, %v3270
        %v3303 = vmul.f32 %v3073, %v3271
        %v3304 = vmul.f32 %v3074, %v3272
        %v3305 = vmul.f32 %v3075, %v3273
        %v3306 = vmul.f32 %v3076, %v3274
        %v3307 = vmul.f32 %v3077, %v3275
        %v3308 = vmul.f32 %v3078, %v3276
        %v3309 = vmul.f32 %v3079, %v3277
        %v3310 = vmul.f32 %v3080, %v3278
        %v3311 = vmul.f32 %v3081, %v3279
        %v3312 = vmul.f32 %v3082, %v3280
        %v3313 = vmul.f32 %v3083, %v3281
        %v3314 = vmul.f32 %v3084, %v3282
        %v3315 = vmul.f32 %v3085, %v3283
        %v3316 = vmul.f32 %v3086, %v3284
        %v3317 = vmul.f32 %v3087, %v3285
        %v3318 = vmul.f32 %v3088, %v3286
        %v3319 = vmul.f32 %v3089, %v3287
        %v3320 = vmul.f32 %v3090, %v3288
        %v3321 = vmul.f32 %v3091, %v3289
        %v3322 = vmul.f32 %v3092, %v3290
        %v3323 = vmul.f32 %v3093, %v3291
        %v3324 = vmul.f32 %v3094, %v3292
        %v3325 = vmul.f32 %v3095, %v3293
        %v3326 = vadd.f32 %v3294, %v3295
        %v3327 = vadd.f32 %v3326, %v3296
        %v3328 = vadd.f32 %v3327, %v3297
        %v3329 = vadd.f32 %v3328, %v3298
        %v3330 = vadd.f32 %v3329, %v3299
        %v3331 = vadd.f32 %v3330, %v3300
        %v3332 = vadd.f32 %v3331, %v3301
        %v3333 = vadd.f32 %v3332, %v3302
        %v3334 = vadd.f32 %v3333, %v3303
        %v3335 = vadd.f32 %v3334, %v3304
        %v3336 = vadd.f32 %v3335, %v3305
        %v3337 = vadd.f32 %v3336, %v3306
        %v3338 = vadd.f32 %v3337, %v3307
        %v3339 = vadd.f32 %v3338, %v3308
        %v3340 = vadd.f32 %v3339, %v3309
        %v3341 = vadd.f32 %v3340, %v3310
        %v3342 = vadd.f32 %v3341, %v3311
        %v3343 = vadd.f32 %v3342, %v3312
        %v3344 = vadd.f32 %v3343, %v3313
        %v3345 = vadd.f32 %v3344, %v3314
        %v3346 = vadd.f32 %v3345, %v3315
        %v3347 = vadd.f32 %v3346, %v3316
        %v3348 = vadd.f32 %v3347, %v3317
        %v3349 = vadd.f32 %v3348, %v3318
        %v3350 = vadd.f32 %v3349, %v3319
        %v3351 = vadd.f32 %v3350, %v3320
        %v3352 = vadd.f32 %v3351, %v3321
        %v3353 = vadd.f32 %v3352, %v3322
        %v3354 = vadd.f32 %v3353, %v3323
        %v3355 = vadd.f32 %v3354, %v3324
        %v3356 = vadd.f32 %v3355, %v3325
        %v3357 = vrot.slane %v3356, 4
        %v3358 = vadd.f32 %v3356, %v3357
        %v3359 = vrot.slane %v3358, 2
        %v3360 = vadd.f32 %v3358, %v3359
        %v3361 = vrot.slane %v3360, 1
        %v3362 = vadd.f32 %v3360, %v3361
        %v3363 = vmul.f32 %v3294, %v3064
        %v3364 = vmul.f32 %v3295, %v3065
        %v3365 = vmul.f32 %v3296, %v3066
        %v3366 = vmul.f32 %v3297, %v3067
        %v3367 = vmul.f32 %v3298, %v3068
        %v3368 = vmul.f32 %v3299, %v3069
        %v3369 = vmul.f32 %v3300, %v3070
        %v3370 = vmul.f32 %v3301, %v3071
        %v3371 = vmul.f32 %v3302, %v3072
        %v3372 = vmul.f32 %v3303, %v3073
        %v3373 = vmul.f32 %v3304, %v3074
        %v3374 = vmul.f32 %v3305, %v3075
        %v3375 = vmul.f32 %v3306, %v3076
        %v3376 = vmul.f32 %v3307, %v3077
        %v3377 = vmul.f32 %v3308, %v3078
        %v3378 = vmul.f32 %v3309, %v3079
        %v3379 = vmul.f32 %v3310, %v3080
        %v3380 = vmul.f32 %v3311, %v3081
        %v3381 = vmul.f32 %v3312, %v3082
        %v3382 = vmul.f32 %v3313, %v3083
        %v3383 = vmul.f32 %v3314, %v3084
        %v3384 = vmul.f32 %v3315, %v3085
        %v3385 = vmul.f32 %v3316, %v3086
        %v3386 = vmul.f32 %v3317, %v3087
        %v3387 = vmul.f32 %v3318, %v3088
        %v3388 = vmul.f32 %v3319, %v3089
        %v3389 = vmul.f32 %v3320, %v3090
        %v3390 = vmul.f32 %v3321, %v3091
        %v3391 = vmul.f32 %v3322, %v3092
        %v3392 = vmul.f32 %v3323, %v3093
        %v3393 = vmul.f32 %v3324, %v3094
        %v3394 = vmul.f32 %v3325, %v3095
        %v3395 = vadd.f32 %v3363, %v3364
        %v3396 = vadd.f32 %v3395, %v3365
        %v3397 = vadd.f32 %v3396, %v3366
        %v3398 = vadd.f32 %v3397, %v3367
        %v3399 = vadd.f32 %v3398, %v3368
        %v3400 = vadd.f32 %v3399, %v3369
        %v3401 = vadd.f32 %v3400, %v3370
        %v3402 = vadd.f32 %v3401, %v3371
        %v3403 = vadd.f32 %v3402, %v3372
        %v3404 = vadd.f32 %v3403, %v3373
        %v3405 = vadd.f32 %v3404, %v3374
        %v3406 = vadd.f32 %v3405, %v3375
        %v3407 = vadd.f32 %v3406, %v3376
        %v3408 = vadd.f32 %v3407, %v3377
        %v3409 = vadd.f32 %v3408, %v3378
        %v3410 = vadd.f32 %v3409, %v3379
        %v3411 = vadd.f32 %v3410, %v3380
        %v3412 = vadd.f32 %v3411, %v3381
        %v3413 = vadd.f32 %v3412, %v3382
        %v3414 = vadd.f32 %v3413, %v3383
        %v3415 = vadd.f32 %v3414, %v3384
        %v3416 = vadd.f32 %v3415, %v3385
        %v3417 = vadd.f32 %v3416, %v3386
        %v3418 = vadd.f32 %v3417, %v3387
        %v3419 = vadd.f32 %v3418, %v3388
        %v3420 = vadd.f32 %v3419, %v3389
        %v3421 = vadd.f32 %v3420, %v3390
        %v3422 = vadd.f32 %v3421, %v3391
        %v3423 = vadd.f32 %v3422, %v3392
        %v3424 = vadd.f32 %v3423, %v3393
        %v3425 = vadd.f32 %v3424, %v3394
        %v3426 = vrot.slane %v3425, 4
        %v3427 = vadd.f32 %v3425, %v3426
        %v3428 = vrot.slane %v3427, 2
        %v3429 = vadd.f32 %v3427, %v3428
        %v3430 = vrot.slane %v3429, 1
        %v3431 = vadd.f32 %v3429, %v3430
        %vm3432 = vcmask 1040384
        %v3433 = vsel %vm3432, %v3362, %v3431
        %vm3434 = vcmask 1041408
        %v3435 = vsel %vm3434, %v3433, 0.0
        %3436 = vst [vmem:[%s261] sm:$0xff] %v3435
        %s3437 = sand.u32 %s116, 1
        %s3438 = scalar_lea.sflag [#allocation4], %s3437
        %s3439 = sand.u32 %s116, 1
        %s3440 = smul.addr %s3439, 128
        %s3441 = scalar_lea.vmem [#allocation7], %s3440
        %s3442 = sand.u32 %s144, 1
        %s3443 = scalar_lea.sflag [#allocation9], %s3442
        %s3444 = sand.u32 %s144, 1
        %s3445 = smul.addr %s3444, 8
        %s3446 = scalar_lea.vmem [#allocation8], %s3445
        // Predicated region
        $region41: #{tpu_custom_call.1} parent=31 // pred_check
          %p3447 = pneg %p126
        $region42: #{tpu_custom_call.1} parent=31 // pred_check_branch
          %3449 = sbr.rel (%p3447) target = $region44
        $region43: #{tpu_custom_call.1} parent=31 // pred_region
          %s3450 = smul.u32 32, %s31
          %3452 = vsyncadd %s3438, 0
          %s3453 = smul.addr %s30, 32
          %s3454 = sadd.s32 %s3450, %s3453
          %s3455 = smul.addr %s3454, 4
          %s3456 = scalar_lea.hbm %s3, %s3455
          %s3457 = sshll.u32 %s3441, 4
          %s3458 = int_to_ptr.vmem [resolvable:$true] %s3457
          %s3459 = sshll.u32 %s3456, 4
          %s3460 = int_to_ptr.hbm [resolvable:$true] %s3459
          %3465 = dma.vmem_to_hbm [thread:$0]  %s3458, 2048, %s3460, %s3438, 64, 64, 4
        $region44: #{tpu_custom_call.1} parent=31 // pred_fallthru
          _
        // Predicated region
        $region45: #{tpu_custom_call.1} parent=31 // pred_check
          %p3466 = pneg %p154
        $region46: #{tpu_custom_call.1} parent=31 // pred_check_branch
          %3468 = sbr.rel (%p3466) target = $region48
        $region47: #{tpu_custom_call.1} parent=31 // pred_region
          %3470 = vsyncadd %s3443, 0
          %s3471 = sadd.s32 %s31, %s30
          %s3472 = smul.addr %s3471, 8
          %s3473 = scalar_lea.hbm %s4, %s3472
          %s3475 = sshll.u32 %s3446, 4
          %s3476 = int_to_ptr.vmem [resolvable:$true] %s3475
          %s3477 = sshll.u32 %s3473, 4
          %s3478 = int_to_ptr.hbm [resolvable:$true] %s3477
          %3480 = dma.vmem_to_hbm [thread:$0]  %s3476, 128, %s3478, %s3443
        $region48: #{tpu_custom_call.1} parent=31 // pred_fallthru
          _
      $region32: #{tpu_custom_call.1} parent=5 // pred_fallthru
        _
      %p3481 = scmp.le.s32.totalorder 2, %s21
      // Predicated region
      $region49: #{tpu_custom_call.1} parent=5 // pred_check
        %p3482 = pneg %p3481
      $region50: #{tpu_custom_call.1} parent=5 // pred_check_branch
        %3484 = sbr.rel (%p3482) target = $region52
      $region51: #{tpu_custom_call.1} parent=5 // pred_region
        %s3485 = ssub.s32 %s21, 2
        // Predicated region
        $region53: #{tpu_custom_call.1} parent=51 // pred_check
          %p3486 = pneg %p132
        $region54: #{tpu_custom_call.1} parent=51 // pred_check_branch
          %3488 = sbr.rel (%p3486) target = $region56
        $region55: #{tpu_custom_call.1} parent=51 // pred_region
          %s3489 = sand.u32 %s117, 1
          %s3490 = scalar_lea.sflag [#allocation4], %s3489
          %s3491 = sand.u32 %s117, 1
          %s3492 = smul.addr %s3491, 128
          %s3493 = scalar_lea.vmem [#allocation7], %s3492
          %3495 = dma.done %s3490, 2048
        $region56: #{tpu_custom_call.1} parent=51 // pred_fallthru
          _
        // Predicated region
        $region57: #{tpu_custom_call.1} parent=51 // pred_check
          %p3496 = pneg %p160
        $region58: #{tpu_custom_call.1} parent=51 // pred_check_branch
          %3498 = sbr.rel (%p3496) target = $region60
        $region59: #{tpu_custom_call.1} parent=51 // pred_region
          %s3499 = sand.u32 %s145, 1
          %s3500 = scalar_lea.sflag [#allocation9], %s3499
          %s3501 = sand.u32 %s145, 1
          %s3502 = smul.addr %s3501, 8
          %s3503 = scalar_lea.vmem [#allocation8], %s3502
          %3505 = dma.done %s3500, 128
        $region60: #{tpu_custom_call.1} parent=51 // pred_fallthru
          _
      $region52: #{tpu_custom_call.1} parent=5 // pred_fallthru
        _
    $region6: #{tpu_custom_call.1} parent=1 // loop_footer
      %s25 = sadd.s32 1, %s21
    $region7: #{tpu_custom_call.1} parent=1 // loop_footer_branch
      %20 = sbr.rel target = $region3
    $region8: #{tpu_custom_call.1} parent=1 // loop_exit
      _
    %3506 = vsyncpa [#allocation3], 1
    %s3507 = scalar_lea.sflag [#allocation3], 1
    %3508 = vsyncpa %s3507, 1
    %3509 = vsyncpa [#allocation6], 1
    %3510 = vsyncpa [#allocation4], 1
    %s3511 = scalar_lea.sflag [#allocation4], 1
    %3512 = vsyncpa %s3511, 1
    %3513 = vsyncpa [#allocation9], 1
    %s3514 = scalar_lea.sflag [#allocation9], 1
    %3515 = vsyncpa %s3514, 1

</llo_original>
